<compile_context>
chip_gen: v7x
topology: tpu7x:2x2x1
jax: 0.10.0
libtpu: 0.0.40
codegen_flags: <defaults>
</compile_context>

<pallas_src>
import jax
import jax.numpy as jnp
from jax.experimental import pallas as pl
from jax.experimental.pallas import tpu as pltpu


def _round_up8(c):
    return ((c + 7) // 8) * 8


def _make_fused_kernel(H, W, N, layer_dims):
    """layer_dims: list of (padded_cin, kernel_size) per layer (static)."""
    n_layers = len(layer_dims)

    def kernel(*args):
        x_ref, hi_ref, wi_ref = args[0], args[1], args[2]
        wt_refs = args[3:3 + n_layers]          # per-layer weights (Pout, k*k*Pin)
        o_ref = args[3 + n_layers]              # (P_last, N) output
        col_ref = args[4 + n_layers]            # VMEM im2col scratch (max_rows, N)

        hh = hi_ref[...]                        # (1, N) int32: output row index h
        ww = wi_ref[...]                        # (1, N) int32: output col index w

        act = x_ref[...]                        # (P0, N) f32, zeros in padded rows
        for li, (pin, k) in enumerate(layer_dims):
            p_lo = (k - 1) // 2                 # 'same' low-side padding
            for dh in range(k):
                for dw in range(k):
                    oh = dh - p_lo
                    ow = dw - p_lo
                    # want shifted[:, p] = act[:, p + oh*W + ow] (circular; edges masked)
                    shift = (-(oh * W + ow)) % N
                    shifted = act if shift == 0 else pltpu.roll(act, shift, axis=1)
                    # zero positions whose source pixel lies outside the image
                    valid = ((hh >= -oh) & (hh < H - oh) &
                             (ww >= -ow) & (ww < W - ow))
                    t = dh * k + dw
                    col_ref[t * pin:(t + 1) * pin, :] = jnp.where(valid, shifted, 0.0)
            rows = k * k * pin
            # one MXU matmul per layer, f32 accumulation, fused ReLU
            act = jnp.maximum(
                jnp.dot(wt_refs[li][...], col_ref[0:rows, :],
                        preferred_element_type=jnp.float32),
                0.0)
        o_ref[...] = act                        # lane-dense (P_last, 512) store

    return kernel


def dynamic_conv_net(x_nchw, kernels, num_kernels, kernel_sizes):
    """Reproduces DynamicConvNet.forward. x: (B, 1, H, W); kernels: (1, total)."""
    B, cin0, H, W = x_nchw.shape
    assert cin0 == 1, "module's first-layer .view forces a single input channel"
    n_layers = len(num_kernels)
    N = B * H * W

    # padded channel counts at each layer boundary (multiples of 8 sublanes)
    pad_c = [_round_up8(cin0)] + [_round_up8(c) for c in num_kernels]

    # weights: OIHW slice -> (O, KH, KW, I) -> zero-pad channels -> (Pout, k*k*Pin)
    w_list = []
    offset, prev_c = 0, 1
    for li, (nk, ks) in enumerate(zip(num_kernels, kernel_sizes)):
        cnt = nk * prev_c * ks * ks
        w = kernels[0, offset:offset + cnt].reshape(nk, prev_c, ks, ks)   # OIHW
        w = jnp.transpose(w, (0, 2, 3, 1))                                # O,KH,KW,I
        w = jnp.pad(w, ((0, pad_c[li + 1] - nk), (0, 0), (0, 0),
                        (0, pad_c[li] - prev_c)))
        w_list.append(
            w.reshape(pad_c[li + 1], ks * ks * pad_c[li]).astype(jnp.float32))
        offset += cnt
        prev_c = nk

    # input: NCHW -> channels-major flat (P0, B*H*W), zero-padded channel rows
    x_flat = jnp.transpose(x_nchw, (1, 0, 2, 3)).reshape(cin0, N).astype(jnp.float32)
    x_flat = jnp.pad(x_flat, ((0, pad_c[0] - cin0), (0, 0)))

    # per-output-pixel (h, w) indices for the boundary masks (computed once in XLA)
    p = jnp.arange(N, dtype=jnp.int32)
    h_idx = ((p % (H * W)) // W).reshape(1, N)
    w_idx = (p % W).reshape(1, N)

    max_rows = max(ks * ks * pad_c[li] for li, ks in enumerate(kernel_sizes))
    layer_dims = [(pad_c[li], kernel_sizes[li]) for li in range(n_layers)]
    kernel_fn = _make_fused_kernel(H, W, N, layer_dims)

    n_in = 3 + n_layers
    out_flat = pl.pallas_call(
        kernel_fn,
        out_shape=jax.ShapeDtypeStruct((pad_c[-1], N), jnp.float32),
        in_specs=[pl.BlockSpec(memory_space=pltpu.MemorySpace.VMEM)] * n_in,
        out_specs=pl.BlockSpec(memory_space=pltpu.MemorySpace.VMEM),
        scratch_shapes=[pltpu.VMEM((max_rows, N), jnp.float32)],
    )(x_flat, h_idx, w_idx, *w_list)

    # (C_pad, B*H*W) -> (B, C, H, W); tiny (8 KiB) reshape/transpose in XLA
    out = out_flat[:num_kernels[-1]].reshape(num_kernels[-1], B, H, W)
    return jnp.transpose(out, (1, 0, 2, 3))


def _reference(x_nchw, kernels, num_kernels, kernel_sizes):
    """Plain-JAX reference (mirrors F.conv2d(padding='same') + relu)."""
    x = x_nchw.astype(jnp.float32)
    prev_c, offset = 1, 0
    for nk, ks in zip(num_kernels, kernel_sizes):
        cnt = nk * prev_c * ks * ks
        w = kernels[0, offset:offset + cnt].reshape(nk, prev_c, ks, ks)
        x = jax.lax.conv_general_dilated(
            x, w, window_strides=(1, 1), padding="SAME",
            dimension_numbers=("NCHW", "OIHW", "NCHW"))
        x = jnp.maximum(x, 0.0)
        offset += cnt
        prev_c = nk
    return x


if __name__ == "__main__":
    num_kernels = [4, 8, 4]
    kernel_sizes = [3, 3, 3]
    in_channels = 1  # forced by the reference's first-layer .view(..., 1, k, k)

    B, H, W = 2, 16, 16
    total_params, prev_c = 0, 1
    for nk, ks in zip(num_kernels, kernel_sizes):
        total_params += nk * prev_c * ks * ks
        prev_c = nk

    key = jax.random.PRNGKey(0)
    kx, kw = jax.random.split(key)
    x = jax.random.normal(kx, (B, in_channels, H, W), dtype=jnp.float32)
    kernels = jax.random.normal(kw, (1, total_params), dtype=jnp.float32) * 0.1

    fwd = jax.jit(lambda xx, kk: dynamic_conv_net(xx, kk, num_kernels, kernel_sizes))
    out = jax.block_until_ready(fwd(x, kernels))

    ref = _reference(x, kernels, num_kernels, kernel_sizes)
    assert out.shape == (B, num_kernels[-1], H, W)
    assert jnp.allclose(out, ref, atol=1e-4, rtol=1e-4)

    print("KERNEL_OK")
</pallas_src>

<mosaic_0001>
module attributes {stable_mosaic.version = 11 : i64} {
  func.func @kernel(%arg0: memref<8x512xf32, #tpu.memory_space<vmem>>, %arg1: memref<1x512xi32, #tpu.memory_space<vmem>>, %arg2: memref<1x512xi32, #tpu.memory_space<vmem>>, %arg3: memref<8x72xf32, #tpu.memory_space<vmem>>, %arg4: memref<8x72xf32, #tpu.memory_space<vmem>>, %arg5: memref<8x72xf32, #tpu.memory_space<vmem>>, %arg6: memref<8x512xf32, #tpu.memory_space<vmem>>, %arg7: memref<72x512xf32, #tpu.memory_space<vmem>>) attributes {dimension_semantics = [], scalar_prefetch = 0 : i64, scratch_operands = 1 : i64, tpu.core_type = #tpu.core_type<tc>} {
    %c0 = arith.constant 0 : index
    %c0_0 = arith.constant 0 : index
    %0 = vector.load %arg1[%c0, %c0_0] : memref<1x512xi32, #tpu.memory_space<vmem>>, vector<1x512xi32>
    %c0_1 = arith.constant 0 : index
    %c0_2 = arith.constant 0 : index
    %1 = vector.load %arg2[%c0_1, %c0_2] : memref<1x512xi32, #tpu.memory_space<vmem>>, vector<1x512xi32>
    %c0_3 = arith.constant 0 : index
    %c0_4 = arith.constant 0 : index
    %2 = vector.load %arg0[%c0_3, %c0_4] : memref<8x512xf32, #tpu.memory_space<vmem>>, vector<8x512xf32>
    %c17_i32 = arith.constant 17 : i32
    %3 = tpu.dynamic_rotate %2 by %c17_i32 dim 1 : vector<8x512xf32>, i32 -> vector<8x512xf32>
    %c1_i32 = arith.constant 1 : i32
    %4 = vector.broadcast %c1_i32 : i32 to vector<1x512xi32>
    %5 = arith.cmpi sge, %0, %4 : vector<1x512xi32>
    %c17_i32_5 = arith.constant 17 : i32
    %6 = vector.broadcast %c17_i32_5 : i32 to vector<1x512xi32>
    %7 = arith.cmpi slt, %0, %6 : vector<1x512xi32>
    %8 = arith.andi %5, %7 : vector<1x512xi1>
    %c1_i32_6 = arith.constant 1 : i32
    %9 = vector.broadcast %c1_i32_6 : i32 to vector<1x512xi32>
    %10 = arith.cmpi sge, %1, %9 : vector<1x512xi32>
    %11 = arith.andi %8, %10 : vector<1x512xi1>
    %c17_i32_7 = arith.constant 17 : i32
    %12 = vector.broadcast %c17_i32_7 : i32 to vector<1x512xi32>
    %13 = arith.cmpi slt, %1, %12 : vector<1x512xi32>
    %14 = arith.andi %11, %13 : vector<1x512xi1>
    %cst = arith.constant 0.000000e+00 : f32
    %15 = vector.shape_cast %14 : vector<1x512xi1> to vector<1x512xi1>
    %16 = vector.broadcast %15 : vector<1x512xi1> to vector<8x512xi1>
    %17 = vector.broadcast %cst : f32 to vector<8x512xf32>
    %18 = arith.select %16, %3, %17 : vector<8x512xi1>, vector<8x512xf32>
    %c0_8 = arith.constant 0 : index
    %c0_9 = arith.constant 0 : index
    %19 = vector.load %arg7[%c0_8, %c0_9] : memref<72x512xf32, #tpu.memory_space<vmem>>, vector<8x512xf32>
    tpu.vector_store %arg7[%c0_8, %c0_9], %18 {strides = array<i32>} : memref<72x512xf32, #tpu.memory_space<vmem>>, vector<8x512xf32>,
    %c16_i32 = arith.constant 16 : i32
    %20 = tpu.dynamic_rotate %2 by %c16_i32 dim 1 : vector<8x512xf32>, i32 -> vector<8x512xf32>
    %c1_i32_10 = arith.constant 1 : i32
    %21 = vector.broadcast %c1_i32_10 : i32 to vector<1x512xi32>
    %22 = arith.cmpi sge, %0, %21 : vector<1x512xi32>
    %c17_i32_11 = arith.constant 17 : i32
    %23 = vector.broadcast %c17_i32_11 : i32 to vector<1x512xi32>
    %24 = arith.cmpi slt, %0, %23 : vector<1x512xi32>
    %25 = arith.andi %22, %24 : vector<1x512xi1>
    %c0_i32 = arith.constant 0 : i32
    %26 = vector.broadcast %c0_i32 : i32 to vector<1x512xi32>
    %27 = arith.cmpi sge, %1, %26 : vector<1x512xi32>
    %28 = arith.andi %25, %27 : vector<1x512xi1>
    %c16_i32_12 = arith.constant 16 : i32
    %29 = vector.broadcast %c16_i32_12 : i32 to vector<1x512xi32>
    %30 = arith.cmpi slt, %1, %29 : vector<1x512xi32>
    %31 = arith.andi %28, %30 : vector<1x512xi1>
    %cst_13 = arith.constant 0.000000e+00 : f32
    %32 = vector.shape_cast %31 : vector<1x512xi1> to vector<1x512xi1>
    %33 = vector.broadcast %32 : vector<1x512xi1> to vector<8x512xi1>
    %34 = vector.broadcast %cst_13 : f32 to vector<8x512xf32>
    %35 = arith.select %33, %20, %34 : vector<8x512xi1>, vector<8x512xf32>
    %c8 = arith.constant 8 : index
    %c0_14 = arith.constant 0 : index
    %36 = vector.load %arg7[%c8, %c0_14] : memref<72x512xf32, #tpu.memory_space<vmem>>, vector<8x512xf32>
    tpu.vector_store %arg7[%c8, %c0_14], %35 {strides = array<i32>} : memref<72x512xf32, #tpu.memory_space<vmem>>, vector<8x512xf32>,
    %c15_i32 = arith.constant 15 : i32
    %37 = tpu.dynamic_rotate %2 by %c15_i32 dim 1 : vector<8x512xf32>, i32 -> vector<8x512xf32>
    %c1_i32_15 = arith.constant 1 : i32
    %38 = vector.broadcast %c1_i32_15 : i32 to vector<1x512xi32>
    %39 = arith.cmpi sge, %0, %38 : vector<1x512xi32>
    %c17_i32_16 = arith.constant 17 : i32
    %40 = vector.broadcast %c17_i32_16 : i32 to vector<1x512xi32>
    %41 = arith.cmpi slt, %0, %40 : vector<1x512xi32>
    %42 = arith.andi %39, %41 : vector<1x512xi1>
    %c-1_i32 = arith.constant -1 : i32
    %43 = vector.broadcast %c-1_i32 : i32 to vector<1x512xi32>
    %44 = arith.cmpi sge, %1, %43 : vector<1x512xi32>
    %45 = arith.andi %42, %44 : vector<1x512xi1>
    %c15_i32_17 = arith.constant 15 : i32
    %46 = vector.broadcast %c15_i32_17 : i32 to vector<1x512xi32>
    %47 = arith.cmpi slt, %1, %46 : vector<1x512xi32>
    %48 = arith.andi %45, %47 : vector<1x512xi1>
    %cst_18 = arith.constant 0.000000e+00 : f32
    %49 = vector.shape_cast %48 : vector<1x512xi1> to vector<1x512xi1>
    %50 = vector.broadcast %49 : vector<1x512xi1> to vector<8x512xi1>
    %51 = vector.broadcast %cst_18 : f32 to vector<8x512xf32>
    %52 = arith.select %50, %37, %51 : vector<8x512xi1>, vector<8x512xf32>
    %c16 = arith.constant 16 : index
    %c0_19 = arith.constant 0 : index
    %53 = vector.load %arg7[%c16, %c0_19] : memref<72x512xf32, #tpu.memory_space<vmem>>, vector<8x512xf32>
    tpu.vector_store %arg7[%c16, %c0_19], %52 {strides = array<i32>} : memref<72x512xf32, #tpu.memory_space<vmem>>, vector<8x512xf32>,
    %c1_i32_20 = arith.constant 1 : i32
    %54 = tpu.dynamic_rotate %2 by %c1_i32_20 dim 1 : vector<8x512xf32>, i32 -> vector<8x512xf32>
    %c0_i32_21 = arith.constant 0 : i32
    %55 = vector.broadcast %c0_i32_21 : i32 to vector<1x512xi32>
    %56 = arith.cmpi sge, %0, %55 : vector<1x512xi32>
    %c16_i32_22 = arith.constant 16 : i32
    %57 = vector.broadcast %c16_i32_22 : i32 to vector<1x512xi32>
    %58 = arith.cmpi slt, %0, %57 : vector<1x512xi32>
    %59 = arith.andi %56, %58 : vector<1x512xi1>
    %c1_i32_23 = arith.constant 1 : i32
    %60 = vector.broadcast %c1_i32_23 : i32 to vector<1x512xi32>
    %61 = arith.cmpi sge, %1, %60 : vector<1x512xi32>
    %62 = arith.andi %59, %61 : vector<1x512xi1>
    %c17_i32_24 = arith.constant 17 : i32
    %63 = vector.broadcast %c17_i32_24 : i32 to vector<1x512xi32>
    %64 = arith.cmpi slt, %1, %63 : vector<1x512xi32>
    %65 = arith.andi %62, %64 : vector<1x512xi1>
    %cst_25 = arith.constant 0.000000e+00 : f32
    %66 = vector.shape_cast %65 : vector<1x512xi1> to vector<1x512xi1>
    %67 = vector.broadcast %66 : vector<1x512xi1> to vector<8x512xi1>
    %68 = vector.broadcast %cst_25 : f32 to vector<8x512xf32>
    %69 = arith.select %67, %54, %68 : vector<8x512xi1>, vector<8x512xf32>
    %c24 = arith.constant 24 : index
    %c0_26 = arith.constant 0 : index
    %70 = vector.load %arg7[%c24, %c0_26] : memref<72x512xf32, #tpu.memory_space<vmem>>, vector<8x512xf32>
    tpu.vector_store %arg7[%c24, %c0_26], %69 {strides = array<i32>} : memref<72x512xf32, #tpu.memory_space<vmem>>, vector<8x512xf32>,
    %c0_i32_27 = arith.constant 0 : i32
    %71 = vector.broadcast %c0_i32_27 : i32 to vector<1x512xi32>
    %72 = arith.cmpi sge, %0, %71 : vector<1x512xi32>
    %c16_i32_28 = arith.constant 16 : i32
    %73 = vector.broadcast %c16_i32_28 : i32 to vector<1x512xi32>
    %74 = arith.cmpi slt, %0, %73 : vector<1x512xi32>
    %75 = arith.andi %72, %74 : vector<1x512xi1>
    %c0_i32_29 = arith.constant 0 : i32
    %76 = vector.broadcast %c0_i32_29 : i32 to vector<1x512xi32>
    %77 = arith.cmpi sge, %1, %76 : vector<1x512xi32>
    %78 = arith.andi %75, %77 : vector<1x512xi1>
    %c16_i32_30 = arith.constant 16 : i32
    %79 = vector.broadcast %c16_i32_30 : i32 to vector<1x512xi32>
    %80 = arith.cmpi slt, %1, %79 : vector<1x512xi32>
    %81 = arith.andi %78, %80 : vector<1x512xi1>
    %cst_31 = arith.constant 0.000000e+00 : f32
    %82 = vector.shape_cast %81 : vector<1x512xi1> to vector<1x512xi1>
    %83 = vector.broadcast %82 : vector<1x512xi1> to vector<8x512xi1>
    %84 = vector.broadcast %cst_31 : f32 to vector<8x512xf32>
    %85 = arith.select %83, %2, %84 : vector<8x512xi1>, vector<8x512xf32>
    %c32 = arith.constant 32 : index
    %c0_32 = arith.constant 0 : index
    %86 = vector.load %arg7[%c32, %c0_32] : memref<72x512xf32, #tpu.memory_space<vmem>>, vector<8x512xf32>
    tpu.vector_store %arg7[%c32, %c0_32], %85 {strides = array<i32>} : memref<72x512xf32, #tpu.memory_space<vmem>>, vector<8x512xf32>,
    %c511_i32 = arith.constant 511 : i32
    %87 = tpu.dynamic_rotate %2 by %c511_i32 dim 1 : vector<8x512xf32>, i32 -> vector<8x512xf32>
    %c0_i32_33 = arith.constant 0 : i32
    %88 = vector.broadcast %c0_i32_33 : i32 to vector<1x512xi32>
    %89 = arith.cmpi sge, %0, %88 : vector<1x512xi32>
    %c16_i32_34 = arith.constant 16 : i32
    %90 = vector.broadcast %c16_i32_34 : i32 to vector<1x512xi32>
    %91 = arith.cmpi slt, %0, %90 : vector<1x512xi32>
    %92 = arith.andi %89, %91 : vector<1x512xi1>
    %c-1_i32_35 = arith.constant -1 : i32
    %93 = vector.broadcast %c-1_i32_35 : i32 to vector<1x512xi32>
    %94 = arith.cmpi sge, %1, %93 : vector<1x512xi32>
    %95 = arith.andi %92, %94 : vector<1x512xi1>
    %c15_i32_36 = arith.constant 15 : i32
    %96 = vector.broadcast %c15_i32_36 : i32 to vector<1x512xi32>
    %97 = arith.cmpi slt, %1, %96 : vector<1x512xi32>
    %98 = arith.andi %95, %97 : vector<1x512xi1>
    %cst_37 = arith.constant 0.000000e+00 : f32
    %99 = vector.shape_cast %98 : vector<1x512xi1> to vector<1x512xi1>
    %100 = vector.broadcast %99 : vector<1x512xi1> to vector<8x512xi1>
    %101 = vector.broadcast %cst_37 : f32 to vector<8x512xf32>
    %102 = arith.select %100, %87, %101 : vector<8x512xi1>, vector<8x512xf32>
    %c40 = arith.constant 40 : index
    %c0_38 = arith.constant 0 : index
    %103 = vector.load %arg7[%c40, %c0_38] : memref<72x512xf32, #tpu.memory_space<vmem>>, vector<8x512xf32>
    tpu.vector_store %arg7[%c40, %c0_38], %102 {strides = array<i32>} : memref<72x512xf32, #tpu.memory_space<vmem>>, vector<8x512xf32>,
    %c497_i32 = arith.constant 497 : i32
    %104 = tpu.dynamic_rotate %2 by %c497_i32 dim 1 : vector<8x512xf32>, i32 -> vector<8x512xf32>
    %c-1_i32_39 = arith.constant -1 : i32
    %105 = vector.broadcast %c-1_i32_39 : i32 to vector<1x512xi32>
    %106 = arith.cmpi sge, %0, %105 : vector<1x512xi32>
    %c15_i32_40 = arith.constant 15 : i32
    %107 = vector.broadcast %c15_i32_40 : i32 to vector<1x512xi32>
    %108 = arith.cmpi slt, %0, %107 : vector<1x512xi32>
    %109 = arith.andi %106, %108 : vector<1x512xi1>
    %c1_i32_41 = arith.constant 1 : i32
    %110 = vector.broadcast %c1_i32_41 : i32 to vector<1x512xi32>
    %111 = arith.cmpi sge, %1, %110 : vector<1x512xi32>
    %112 = arith.andi %109, %111 : vector<1x512xi1>
    %c17_i32_42 = arith.constant 17 : i32
    %113 = vector.broadcast %c17_i32_42 : i32 to vector<1x512xi32>
    %114 = arith.cmpi slt, %1, %113 : vector<1x512xi32>
    %115 = arith.andi %112, %114 : vector<1x512xi1>
    %cst_43 = arith.constant 0.000000e+00 : f32
    %116 = vector.shape_cast %115 : vector<1x512xi1> to vector<1x512xi1>
    %117 = vector.broadcast %116 : vector<1x512xi1> to vector<8x512xi1>
    %118 = vector.broadcast %cst_43 : f32 to vector<8x512xf32>
    %119 = arith.select %117, %104, %118 : vector<8x512xi1>, vector<8x512xf32>
    %c48 = arith.constant 48 : index
    %c0_44 = arith.constant 0 : index
    %120 = vector.load %arg7[%c48, %c0_44] : memref<72x512xf32, #tpu.memory_space<vmem>>, vector<8x512xf32>
    tpu.vector_store %arg7[%c48, %c0_44], %119 {strides = array<i32>} : memref<72x512xf32, #tpu.memory_space<vmem>>, vector<8x512xf32>,
    %c496_i32 = arith.constant 496 : i32
    %121 = tpu.dynamic_rotate %2 by %c496_i32 dim 1 : vector<8x512xf32>, i32 -> vector<8x512xf32>
    %c-1_i32_45 = arith.constant -1 : i32
    %122 = vector.broadcast %c-1_i32_45 : i32 to vector<1x512xi32>
    %123 = arith.cmpi sge, %0, %122 : vector<1x512xi32>
    %c15_i32_46 = arith.constant 15 : i32
    %124 = vector.broadcast %c15_i32_46 : i32 to vector<1x512xi32>
    %125 = arith.cmpi slt, %0, %124 : vector<1x512xi32>
    %126 = arith.andi %123, %125 : vector<1x512xi1>
    %c0_i32_47 = arith.constant 0 : i32
    %127 = vector.broadcast %c0_i32_47 : i32 to vector<1x512xi32>
    %128 = arith.cmpi sge, %1, %127 : vector<1x512xi32>
    %129 = arith.andi %126, %128 : vector<1x512xi1>
    %c16_i32_48 = arith.constant 16 : i32
    %130 = vector.broadcast %c16_i32_48 : i32 to vector<1x512xi32>
    %131 = arith.cmpi slt, %1, %130 : vector<1x512xi32>
    %132 = arith.andi %129, %131 : vector<1x512xi1>
    %cst_49 = arith.constant 0.000000e+00 : f32
    %133 = vector.shape_cast %132 : vector<1x512xi1> to vector<1x512xi1>
    %134 = vector.broadcast %133 : vector<1x512xi1> to vector<8x512xi1>
    %135 = vector.broadcast %cst_49 : f32 to vector<8x512xf32>
    %136 = arith.select %134, %121, %135 : vector<8x512xi1>, vector<8x512xf32>
    %c56 = arith.constant 56 : index
    %c0_50 = arith.constant 0 : index
    %137 = vector.load %arg7[%c56, %c0_50] : memref<72x512xf32, #tpu.memory_space<vmem>>, vector<8x512xf32>
    tpu.vector_store %arg7[%c56, %c0_50], %136 {strides = array<i32>} : memref<72x512xf32, #tpu.memory_space<vmem>>, vector<8x512xf32>,
    %c495_i32 = arith.constant 495 : i32
    %138 = tpu.dynamic_rotate %2 by %c495_i32 dim 1 : vector<8x512xf32>, i32 -> vector<8x512xf32>
    %c-1_i32_51 = arith.constant -1 : i32
    %139 = vector.broadcast %c-1_i32_51 : i32 to vector<1x512xi32>
    %140 = arith.cmpi sge, %0, %139 : vector<1x512xi32>
    %c15_i32_52 = arith.constant 15 : i32
    %141 = vector.broadcast %c15_i32_52 : i32 to vector<1x512xi32>
    %142 = arith.cmpi slt, %0, %141 : vector<1x512xi32>
    %143 = arith.andi %140, %142 : vector<1x512xi1>
    %c-1_i32_53 = arith.constant -1 : i32
    %144 = vector.broadcast %c-1_i32_53 : i32 to vector<1x512xi32>
    %145 = arith.cmpi sge, %1, %144 : vector<1x512xi32>
    %146 = arith.andi %143, %145 : vector<1x512xi1>
    %c15_i32_54 = arith.constant 15 : i32
    %147 = vector.broadcast %c15_i32_54 : i32 to vector<1x512xi32>
    %148 = arith.cmpi slt, %1, %147 : vector<1x512xi32>
    %149 = arith.andi %146, %148 : vector<1x512xi1>
    %cst_55 = arith.constant 0.000000e+00 : f32
    %150 = vector.shape_cast %149 : vector<1x512xi1> to vector<1x512xi1>
    %151 = vector.broadcast %150 : vector<1x512xi1> to vector<8x512xi1>
    %152 = vector.broadcast %cst_55 : f32 to vector<8x512xf32>
    %153 = arith.select %151, %138, %152 : vector<8x512xi1>, vector<8x512xf32>
    %c64 = arith.constant 64 : index
    %c0_56 = arith.constant 0 : index
    %154 = vector.load %arg7[%c64, %c0_56] : memref<72x512xf32, #tpu.memory_space<vmem>>, vector<8x512xf32>
    tpu.vector_store %arg7[%c64, %c0_56], %153 {strides = array<i32>} : memref<72x512xf32, #tpu.memory_space<vmem>>, vector<8x512xf32>,
    %c0_57 = arith.constant 0 : index
    %c0_58 = arith.constant 0 : index
    %155 = vector.load %arg3[%c0_57, %c0_58] : memref<8x72xf32, #tpu.memory_space<vmem>>, vector<8x72xf32>
    %c0_59 = arith.constant 0 : index
    %c0_60 = arith.constant 0 : index
    %156 = vector.load %arg7[%c0_59, %c0_60] : memref<72x512xf32, #tpu.memory_space<vmem>>, vector<72x512xf32>
    %cst_61 = arith.constant dense<0.000000e+00> : vector<8x512xf32>
    %157 = tpu.matmul %155, %156, %cst_61 {dimension_numbers = #tpu.dot_dimension_numbers<[1], [0], [0], [1], [0, 0, 1, 1], [], []>} : vector<8x72xf32>, vector<72x512xf32>, vector<8x512xf32> -> vector<8x512xf32>
    %cst_62 = arith.constant 0.000000e+00 : f32
    %158 = vector.broadcast %cst_62 : f32 to vector<8x512xf32>
    %159 = arith.maximumf %157, %158 : vector<8x512xf32>
    %c17_i32_63 = arith.constant 17 : i32
    %160 = tpu.dynamic_rotate %159 by %c17_i32_63 dim 1 : vector<8x512xf32>, i32 -> vector<8x512xf32>
    %c1_i32_64 = arith.constant 1 : i32
    %161 = vector.broadcast %c1_i32_64 : i32 to vector<1x512xi32>
    %162 = arith.cmpi sge, %0, %161 : vector<1x512xi32>
    %c17_i32_65 = arith.constant 17 : i32
    %163 = vector.broadcast %c17_i32_65 : i32 to vector<1x512xi32>
    %164 = arith.cmpi slt, %0, %163 : vector<1x512xi32>
    %165 = arith.andi %162, %164 : vector<1x512xi1>
    %c1_i32_66 = arith.constant 1 : i32
    %166 = vector.broadcast %c1_i32_66 : i32 to vector<1x512xi32>
    %167 = arith.cmpi sge, %1, %166 : vector<1x512xi32>
    %168 = arith.andi %165, %167 : vector<1x512xi1>
    %c17_i32_67 = arith.constant 17 : i32
    %169 = vector.broadcast %c17_i32_67 : i32 to vector<1x512xi32>
    %170 = arith.cmpi slt, %1, %169 : vector<1x512xi32>
    %171 = arith.andi %168, %170 : vector<1x512xi1>
    %cst_68 = arith.constant 0.000000e+00 : f32
    %172 = vector.shape_cast %171 : vector<1x512xi1> to vector<1x512xi1>
    %173 = vector.broadcast %172 : vector<1x512xi1> to vector<8x512xi1>
    %174 = vector.broadcast %cst_68 : f32 to vector<8x512xf32>
    %175 = arith.select %173, %160, %174 : vector<8x512xi1>, vector<8x512xf32>
    %c0_69 = arith.constant 0 : index
    %c0_70 = arith.constant 0 : index
    %176 = vector.load %arg7[%c0_69, %c0_70] : memref<72x512xf32, #tpu.memory_space<vmem>>, vector<8x512xf32>
    tpu.vector_store %arg7[%c0_69, %c0_70], %175 {strides = array<i32>} : memref<72x512xf32, #tpu.memory_space<vmem>>, vector<8x512xf32>,
    %c16_i32_71 = arith.constant 16 : i32
    %177 = tpu.dynamic_rotate %159 by %c16_i32_71 dim 1 : vector<8x512xf32>, i32 -> vector<8x512xf32>
    %c1_i32_72 = arith.constant 1 : i32
    %178 = vector.broadcast %c1_i32_72 : i32 to vector<1x512xi32>
    %179 = arith.cmpi sge, %0, %178 : vector<1x512xi32>
    %c17_i32_73 = arith.constant 17 : i32
    %180 = vector.broadcast %c17_i32_73 : i32 to vector<1x512xi32>
    %181 = arith.cmpi slt, %0, %180 : vector<1x512xi32>
    %182 = arith.andi %179, %181 : vector<1x512xi1>
    %c0_i32_74 = arith.constant 0 : i32
    %183 = vector.broadcast %c0_i32_74 : i32 to vector<1x512xi32>
    %184 = arith.cmpi sge, %1, %183 : vector<1x512xi32>
    %185 = arith.andi %182, %184 : vector<1x512xi1>
    %c16_i32_75 = arith.constant 16 : i32
    %186 = vector.broadcast %c16_i32_75 : i32 to vector<1x512xi32>
    %187 = arith.cmpi slt, %1, %186 : vector<1x512xi32>
    %188 = arith.andi %185, %187 : vector<1x512xi1>
    %cst_76 = arith.constant 0.000000e+00 : f32
    %189 = vector.shape_cast %188 : vector<1x512xi1> to vector<1x512xi1>
    %190 = vector.broadcast %189 : vector<1x512xi1> to vector<8x512xi1>
    %191 = vector.broadcast %cst_76 : f32 to vector<8x512xf32>
    %192 = arith.select %190, %177, %191 : vector<8x512xi1>, vector<8x512xf32>
    %c8_77 = arith.constant 8 : index
    %c0_78 = arith.constant 0 : index
    %193 = vector.load %arg7[%c8_77, %c0_78] : memref<72x512xf32, #tpu.memory_space<vmem>>, vector<8x512xf32>
    tpu.vector_store %arg7[%c8_77, %c0_78], %192 {strides = array<i32>} : memref<72x512xf32, #tpu.memory_space<vmem>>, vector<8x512xf32>,
    %c15_i32_79 = arith.constant 15 : i32
    %194 = tpu.dynamic_rotate %159 by %c15_i32_79 dim 1 : vector<8x512xf32>, i32 -> vector<8x512xf32>
    %c1_i32_80 = arith.constant 1 : i32
    %195 = vector.broadcast %c1_i32_80 : i32 to vector<1x512xi32>
    %196 = arith.cmpi sge, %0, %195 : vector<1x512xi32>
    %c17_i32_81 = arith.constant 17 : i32
    %197 = vector.broadcast %c17_i32_81 : i32 to vector<1x512xi32>
    %198 = arith.cmpi slt, %0, %197 : vector<1x512xi32>
    %199 = arith.andi %196, %198 : vector<1x512xi1>
    %c-1_i32_82 = arith.constant -1 : i32
    %200 = vector.broadcast %c-1_i32_82 : i32 to vector<1x512xi32>
    %201 = arith.cmpi sge, %1, %200 : vector<1x512xi32>
    %202 = arith.andi %199, %201 : vector<1x512xi1>
    %c15_i32_83 = arith.constant 15 : i32
    %203 = vector.broadcast %c15_i32_83 : i32 to vector<1x512xi32>
    %204 = arith.cmpi slt, %1, %203 : vector<1x512xi32>
    %205 = arith.andi %202, %204 : vector<1x512xi1>
    %cst_84 = arith.constant 0.000000e+00 : f32
    %206 = vector.shape_cast %205 : vector<1x512xi1> to vector<1x512xi1>
    %207 = vector.broadcast %206 : vector<1x512xi1> to vector<8x512xi1>
    %208 = vector.broadcast %cst_84 : f32 to vector<8x512xf32>
    %209 = arith.select %207, %194, %208 : vector<8x512xi1>, vector<8x512xf32>
    %c16_85 = arith.constant 16 : index
    %c0_86 = arith.constant 0 : index
    %210 = vector.load %arg7[%c16_85, %c0_86] : memref<72x512xf32, #tpu.memory_space<vmem>>, vector<8x512xf32>
    tpu.vector_store %arg7[%c16_85, %c0_86], %209 {strides = array<i32>} : memref<72x512xf32, #tpu.memory_space<vmem>>, vector<8x512xf32>,
    %c1_i32_87 = arith.constant 1 : i32
    %211 = tpu.dynamic_rotate %159 by %c1_i32_87 dim 1 : vector<8x512xf32>, i32 -> vector<8x512xf32>
    %c0_i32_88 = arith.constant 0 : i32
    %212 = vector.broadcast %c0_i32_88 : i32 to vector<1x512xi32>
    %213 = arith.cmpi sge, %0, %212 : vector<1x512xi32>
    %c16_i32_89 = arith.constant 16 : i32
    %214 = vector.broadcast %c16_i32_89 : i32 to vector<1x512xi32>
    %215 = arith.cmpi slt, %0, %214 : vector<1x512xi32>
    %216 = arith.andi %213, %215 : vector<1x512xi1>
    %c1_i32_90 = arith.constant 1 : i32
    %217 = vector.broadcast %c1_i32_90 : i32 to vector<1x512xi32>
    %218 = arith.cmpi sge, %1, %217 : vector<1x512xi32>
    %219 = arith.andi %216, %218 : vector<1x512xi1>
    %c17_i32_91 = arith.constant 17 : i32
    %220 = vector.broadcast %c17_i32_91 : i32 to vector<1x512xi32>
    %221 = arith.cmpi slt, %1, %220 : vector<1x512xi32>
    %222 = arith.andi %219, %221 : vector<1x512xi1>
    %cst_92 = arith.constant 0.000000e+00 : f32
    %223 = vector.shape_cast %222 : vector<1x512xi1> to vector<1x512xi1>
    %224 = vector.broadcast %223 : vector<1x512xi1> to vector<8x512xi1>
    %225 = vector.broadcast %cst_92 : f32 to vector<8x512xf32>
    %226 = arith.select %224, %211, %225 : vector<8x512xi1>, vector<8x512xf32>
    %c24_93 = arith.constant 24 : index
    %c0_94 = arith.constant 0 : index
    %227 = vector.load %arg7[%c24_93, %c0_94] : memref<72x512xf32, #tpu.memory_space<vmem>>, vector<8x512xf32>
    tpu.vector_store %arg7[%c24_93, %c0_94], %226 {strides = array<i32>} : memref<72x512xf32, #tpu.memory_space<vmem>>, vector<8x512xf32>,
    %c0_i32_95 = arith.constant 0 : i32
    %228 = vector.broadcast %c0_i32_95 : i32 to vector<1x512xi32>
    %229 = arith.cmpi sge, %0, %228 : vector<1x512xi32>
    %c16_i32_96 = arith.constant 16 : i32
    %230 = vector.broadcast %c16_i32_96 : i32 to vector<1x512xi32>
    %231 = arith.cmpi slt, %0, %230 : vector<1x512xi32>
    %232 = arith.andi %229, %231 : vector<1x512xi1>
    %c0_i32_97 = arith.constant 0 : i32
    %233 = vector.broadcast %c0_i32_97 : i32 to vector<1x512xi32>
    %234 = arith.cmpi sge, %1, %233 : vector<1x512xi32>
    %235 = arith.andi %232, %234 : vector<1x512xi1>
    %c16_i32_98 = arith.constant 16 : i32
    %236 = vector.broadcast %c16_i32_98 : i32 to vector<1x512xi32>
    %237 = arith.cmpi slt, %1, %236 : vector<1x512xi32>
    %238 = arith.andi %235, %237 : vector<1x512xi1>
    %cst_99 = arith.constant 0.000000e+00 : f32
    %239 = vector.shape_cast %238 : vector<1x512xi1> to vector<1x512xi1>
    %240 = vector.broadcast %239 : vector<1x512xi1> to vector<8x512xi1>
    %241 = vector.broadcast %cst_99 : f32 to vector<8x512xf32>
    %242 = arith.select %240, %159, %241 : vector<8x512xi1>, vector<8x512xf32>
    %c32_100 = arith.constant 32 : index
    %c0_101 = arith.constant 0 : index
    %243 = vector.load %arg7[%c32_100, %c0_101] : memref<72x512xf32, #tpu.memory_space<vmem>>, vector<8x512xf32>
    tpu.vector_store %arg7[%c32_100, %c0_101], %242 {strides = array<i32>} : memref<72x512xf32, #tpu.memory_space<vmem>>, vector<8x512xf32>,
    %c511_i32_102 = arith.constant 511 : i32
    %244 = tpu.dynamic_rotate %159 by %c511_i32_102 dim 1 : vector<8x512xf32>, i32 -> vector<8x512xf32>
    %c0_i32_103 = arith.constant 0 : i32
    %245 = vector.broadcast %c0_i32_103 : i32 to vector<1x512xi32>
    %246 = arith.cmpi sge, %0, %245 : vector<1x512xi32>
    %c16_i32_104 = arith.constant 16 : i32
    %247 = vector.broadcast %c16_i32_104 : i32 to vector<1x512xi32>
    %248 = arith.cmpi slt, %0, %247 : vector<1x512xi32>
    %249 = arith.andi %246, %248 : vector<1x512xi1>
    %c-1_i32_105 = arith.constant -1 : i32
    %250 = vector.broadcast %c-1_i32_105 : i32 to vector<1x512xi32>
    %251 = arith.cmpi sge, %1, %250 : vector<1x512xi32>
    %252 = arith.andi %249, %251 : vector<1x512xi1>
    %c15_i32_106 = arith.constant 15 : i32
    %253 = vector.broadcast %c15_i32_106 : i32 to vector<1x512xi32>
    %254 = arith.cmpi slt, %1, %253 : vector<1x512xi32>
    %255 = arith.andi %252, %254 : vector<1x512xi1>
    %cst_107 = arith.constant 0.000000e+00 : f32
    %256 = vector.shape_cast %255 : vector<1x512xi1> to vector<1x512xi1>
    %257 = vector.broadcast %256 : vector<1x512xi1> to vector<8x512xi1>
    %258 = vector.broadcast %cst_107 : f32 to vector<8x512xf32>
    %259 = arith.select %257, %244, %258 : vector<8x512xi1>, vector<8x512xf32>
    %c40_108 = arith.constant 40 : index
    %c0_109 = arith.constant 0 : index
    %260 = vector.load %arg7[%c40_108, %c0_109] : memref<72x512xf32, #tpu.memory_space<vmem>>, vector<8x512xf32>
    tpu.vector_store %arg7[%c40_108, %c0_109], %259 {strides = array<i32>} : memref<72x512xf32, #tpu.memory_space<vmem>>, vector<8x512xf32>,
    %c497_i32_110 = arith.constant 497 : i32
    %261 = tpu.dynamic_rotate %159 by %c497_i32_110 dim 1 : vector<8x512xf32>, i32 -> vector<8x512xf32>
    %c-1_i32_111 = arith.constant -1 : i32
    %262 = vector.broadcast %c-1_i32_111 : i32 to vector<1x512xi32>
    %263 = arith.cmpi sge, %0, %262 : vector<1x512xi32>
    %c15_i32_112 = arith.constant 15 : i32
    %264 = vector.broadcast %c15_i32_112 : i32 to vector<1x512xi32>
    %265 = arith.cmpi slt, %0, %264 : vector<1x512xi32>
    %266 = arith.andi %263, %265 : vector<1x512xi1>
    %c1_i32_113 = arith.constant 1 : i32
    %267 = vector.broadcast %c1_i32_113 : i32 to vector<1x512xi32>
    %268 = arith.cmpi sge, %1, %267 : vector<1x512xi32>
    %269 = arith.andi %266, %268 : vector<1x512xi1>
    %c17_i32_114 = arith.constant 17 : i32
    %270 = vector.broadcast %c17_i32_114 : i32 to vector<1x512xi32>
    %271 = arith.cmpi slt, %1, %270 : vector<1x512xi32>
    %272 = arith.andi %269, %271 : vector<1x512xi1>
    %cst_115 = arith.constant 0.000000e+00 : f32
    %273 = vector.shape_cast %272 : vector<1x512xi1> to vector<1x512xi1>
    %274 = vector.broadcast %273 : vector<1x512xi1> to vector<8x512xi1>
    %275 = vector.broadcast %cst_115 : f32 to vector<8x512xf32>
    %276 = arith.select %274, %261, %275 : vector<8x512xi1>, vector<8x512xf32>
    %c48_116 = arith.constant 48 : index
    %c0_117 = arith.constant 0 : index
    %277 = vector.load %arg7[%c48_116, %c0_117] : memref<72x512xf32, #tpu.memory_space<vmem>>, vector<8x512xf32>
    tpu.vector_store %arg7[%c48_116, %c0_117], %276 {strides = array<i32>} : memref<72x512xf32, #tpu.memory_space<vmem>>, vector<8x512xf32>,
    %c496_i32_118 = arith.constant 496 : i32
    %278 = tpu.dynamic_rotate %159 by %c496_i32_118 dim 1 : vector<8x512xf32>, i32 -> vector<8x512xf32>
    %c-1_i32_119 = arith.constant -1 : i32
    %279 = vector.broadcast %c-1_i32_119 : i32 to vector<1x512xi32>
    %280 = arith.cmpi sge, %0, %279 : vector<1x512xi32>
    %c15_i32_120 = arith.constant 15 : i32
    %281 = vector.broadcast %c15_i32_120 : i32 to vector<1x512xi32>
    %282 = arith.cmpi slt, %0, %281 : vector<1x512xi32>
    %283 = arith.andi %280, %282 : vector<1x512xi1>
    %c0_i32_121 = arith.constant 0 : i32
    %284 = vector.broadcast %c0_i32_121 : i32 to vector<1x512xi32>
    %285 = arith.cmpi sge, %1, %284 : vector<1x512xi32>
    %286 = arith.andi %283, %285 : vector<1x512xi1>
    %c16_i32_122 = arith.constant 16 : i32
    %287 = vector.broadcast %c16_i32_122 : i32 to vector<1x512xi32>
    %288 = arith.cmpi slt, %1, %287 : vector<1x512xi32>
    %289 = arith.andi %286, %288 : vector<1x512xi1>
    %cst_123 = arith.constant 0.000000e+00 : f32
    %290 = vector.shape_cast %289 : vector<1x512xi1> to vector<1x512xi1>
    %291 = vector.broadcast %290 : vector<1x512xi1> to vector<8x512xi1>
    %292 = vector.broadcast %cst_123 : f32 to vector<8x512xf32>
    %293 = arith.select %291, %278, %292 : vector<8x512xi1>, vector<8x512xf32>
    %c56_124 = arith.constant 56 : index
    %c0_125 = arith.constant 0 : index
    %294 = vector.load %arg7[%c56_124, %c0_125] : memref<72x512xf32, #tpu.memory_space<vmem>>, vector<8x512xf32>
    tpu.vector_store %arg7[%c56_124, %c0_125], %293 {strides = array<i32>} : memref<72x512xf32, #tpu.memory_space<vmem>>, vector<8x512xf32>,
    %c495_i32_126 = arith.constant 495 : i32
    %295 = tpu.dynamic_rotate %159 by %c495_i32_126 dim 1 : vector<8x512xf32>, i32 -> vector<8x512xf32>
    %c-1_i32_127 = arith.constant -1 : i32
    %296 = vector.broadcast %c-1_i32_127 : i32 to vector<1x512xi32>
    %297 = arith.cmpi sge, %0, %296 : vector<1x512xi32>
    %c15_i32_128 = arith.constant 15 : i32
    %298 = vector.broadcast %c15_i32_128 : i32 to vector<1x512xi32>
    %299 = arith.cmpi slt, %0, %298 : vector<1x512xi32>
    %300 = arith.andi %297, %299 : vector<1x512xi1>
    %c-1_i32_129 = arith.constant -1 : i32
    %301 = vector.broadcast %c-1_i32_129 : i32 to vector<1x512xi32>
    %302 = arith.cmpi sge, %1, %301 : vector<1x512xi32>
    %303 = arith.andi %300, %302 : vector<1x512xi1>
    %c15_i32_130 = arith.constant 15 : i32
    %304 = vector.broadcast %c15_i32_130 : i32 to vector<1x512xi32>
    %305 = arith.cmpi slt, %1, %304 : vector<1x512xi32>
    %306 = arith.andi %303, %305 : vector<1x512xi1>
    %cst_131 = arith.constant 0.000000e+00 : f32
    %307 = vector.shape_cast %306 : vector<1x512xi1> to vector<1x512xi1>
    %308 = vector.broadcast %307 : vector<1x512xi1> to vector<8x512xi1>
    %309 = vector.broadcast %cst_131 : f32 to vector<8x512xf32>
    %310 = arith.select %308, %295, %309 : vector<8x512xi1>, vector<8x512xf32>
    %c64_132 = arith.constant 64 : index
    %c0_133 = arith.constant 0 : index
    %311 = vector.load %arg7[%c64_132, %c0_133] : memref<72x512xf32, #tpu.memory_space<vmem>>, vector<8x512xf32>
    tpu.vector_store %arg7[%c64_132, %c0_133], %310 {strides = array<i32>} : memref<72x512xf32, #tpu.memory_space<vmem>>, vector<8x512xf32>,
    %c0_134 = arith.constant 0 : index
    %c0_135 = arith.constant 0 : index
    %312 = vector.load %arg4[%c0_134, %c0_135] : memref<8x72xf32, #tpu.memory_space<vmem>>, vector<8x72xf32>
    %c0_136 = arith.constant 0 : index
    %c0_137 = arith.constant 0 : index
    %313 = vector.load %arg7[%c0_136, %c0_137] : memref<72x512xf32, #tpu.memory_space<vmem>>, vector<72x512xf32>
    %cst_138 = arith.constant dense<0.000000e+00> : vector<8x512xf32>
    %314 = tpu.matmul %312, %313, %cst_138 {dimension_numbers = #tpu.dot_dimension_numbers<[1], [0], [0], [1], [0, 0, 1, 1], [], []>} : vector<8x72xf32>, vector<72x512xf32>, vector<8x512xf32> -> vector<8x512xf32>
    %cst_139 = arith.constant 0.000000e+00 : f32
    %315 = vector.broadcast %cst_139 : f32 to vector<8x512xf32>
    %316 = arith.maximumf %314, %315 : vector<8x512xf32>
    %c17_i32_140 = arith.constant 17 : i32
    %317 = tpu.dynamic_rotate %316 by %c17_i32_140 dim 1 : vector<8x512xf32>, i32 -> vector<8x512xf32>
    %c1_i32_141 = arith.constant 1 : i32
    %318 = vector.broadcast %c1_i32_141 : i32 to vector<1x512xi32>
    %319 = arith.cmpi sge, %0, %318 : vector<1x512xi32>
    %c17_i32_142 = arith.constant 17 : i32
    %320 = vector.broadcast %c17_i32_142 : i32 to vector<1x512xi32>
    %321 = arith.cmpi slt, %0, %320 : vector<1x512xi32>
    %322 = arith.andi %319, %321 : vector<1x512xi1>
    %c1_i32_143 = arith.constant 1 : i32
    %323 = vector.broadcast %c1_i32_143 : i32 to vector<1x512xi32>
    %324 = arith.cmpi sge, %1, %323 : vector<1x512xi32>
    %325 = arith.andi %322, %324 : vector<1x512xi1>
    %c17_i32_144 = arith.constant 17 : i32
    %326 = vector.broadcast %c17_i32_144 : i32 to vector<1x512xi32>
    %327 = arith.cmpi slt, %1, %326 : vector<1x512xi32>
    %328 = arith.andi %325, %327 : vector<1x512xi1>
    %cst_145 = arith.constant 0.000000e+00 : f32
    %329 = vector.shape_cast %328 : vector<1x512xi1> to vector<1x512xi1>
    %330 = vector.broadcast %329 : vector<1x512xi1> to vector<8x512xi1>
    %331 = vector.broadcast %cst_145 : f32 to vector<8x512xf32>
    %332 = arith.select %330, %317, %331 : vector<8x512xi1>, vector<8x512xf32>
    %c0_146 = arith.constant 0 : index
    %c0_147 = arith.constant 0 : index
    %333 = vector.load %arg7[%c0_146, %c0_147] : memref<72x512xf32, #tpu.memory_space<vmem>>, vector<8x512xf32>
    tpu.vector_store %arg7[%c0_146, %c0_147], %332 {strides = array<i32>} : memref<72x512xf32, #tpu.memory_space<vmem>>, vector<8x512xf32>,
    %c16_i32_148 = arith.constant 16 : i32
    %334 = tpu.dynamic_rotate %316 by %c16_i32_148 dim 1 : vector<8x512xf32>, i32 -> vector<8x512xf32>
    %c1_i32_149 = arith.constant 1 : i32
    %335 = vector.broadcast %c1_i32_149 : i32 to vector<1x512xi32>
    %336 = arith.cmpi sge, %0, %335 : vector<1x512xi32>
    %c17_i32_150 = arith.constant 17 : i32
    %337 = vector.broadcast %c17_i32_150 : i32 to vector<1x512xi32>
    %338 = arith.cmpi slt, %0, %337 : vector<1x512xi32>
    %339 = arith.andi %336, %338 : vector<1x512xi1>
    %c0_i32_151 = arith.constant 0 : i32
    %340 = vector.broadcast %c0_i32_151 : i32 to vector<1x512xi32>
    %341 = arith.cmpi sge, %1, %340 : vector<1x512xi32>
    %342 = arith.andi %339, %341 : vector<1x512xi1>
    %c16_i32_152 = arith.constant 16 : i32
    %343 = vector.broadcast %c16_i32_152 : i32 to vector<1x512xi32>
    %344 = arith.cmpi slt, %1, %343 : vector<1x512xi32>
    %345 = arith.andi %342, %344 : vector<1x512xi1>
    %cst_153 = arith.constant 0.000000e+00 : f32
    %346 = vector.shape_cast %345 : vector<1x512xi1> to vector<1x512xi1>
    %347 = vector.broadcast %346 : vector<1x512xi1> to vector<8x512xi1>
    %348 = vector.broadcast %cst_153 : f32 to vector<8x512xf32>
    %349 = arith.select %347, %334, %348 : vector<8x512xi1>, vector<8x512xf32>
    %c8_154 = arith.constant 8 : index
    %c0_155 = arith.constant 0 : index
    %350 = vector.load %arg7[%c8_154, %c0_155] : memref<72x512xf32, #tpu.memory_space<vmem>>, vector<8x512xf32>
    tpu.vector_store %arg7[%c8_154, %c0_155], %349 {strides = array<i32>} : memref<72x512xf32, #tpu.memory_space<vmem>>, vector<8x512xf32>,
    %c15_i32_156 = arith.constant 15 : i32
    %351 = tpu.dynamic_rotate %316 by %c15_i32_156 dim 1 : vector<8x512xf32>, i32 -> vector<8x512xf32>
    %c1_i32_157 = arith.constant 1 : i32
    %352 = vector.broadcast %c1_i32_157 : i32 to vector<1x512xi32>
    %353 = arith.cmpi sge, %0, %352 : vector<1x512xi32>
    %c17_i32_158 = arith.constant 17 : i32
    %354 = vector.broadcast %c17_i32_158 : i32 to vector<1x512xi32>
    %355 = arith.cmpi slt, %0, %354 : vector<1x512xi32>
    %356 = arith.andi %353, %355 : vector<1x512xi1>
    %c-1_i32_159 = arith.constant -1 : i32
    %357 = vector.broadcast %c-1_i32_159 : i32 to vector<1x512xi32>
    %358 = arith.cmpi sge, %1, %357 : vector<1x512xi32>
    %359 = arith.andi %356, %358 : vector<1x512xi1>
    %c15_i32_160 = arith.constant 15 : i32
    %360 = vector.broadcast %c15_i32_160 : i32 to vector<1x512xi32>
    %361 = arith.cmpi slt, %1, %360 : vector<1x512xi32>
    %362 = arith.andi %359, %361 : vector<1x512xi1>
    %cst_161 = arith.constant 0.000000e+00 : f32
    %363 = vector.shape_cast %362 : vector<1x512xi1> to vector<1x512xi1>
    %364 = vector.broadcast %363 : vector<1x512xi1> to vector<8x512xi1>
    %365 = vector.broadcast %cst_161 : f32 to vector<8x512xf32>
    %366 = arith.select %364, %351, %365 : vector<8x512xi1>, vector<8x512xf32>
    %c16_162 = arith.constant 16 : index
    %c0_163 = arith.constant 0 : index
    %367 = vector.load %arg7[%c16_162, %c0_163] : memref<72x512xf32, #tpu.memory_space<vmem>>, vector<8x512xf32>
    tpu.vector_store %arg7[%c16_162, %c0_163], %366 {strides = array<i32>} : memref<72x512xf32, #tpu.memory_space<vmem>>, vector<8x512xf32>,
    %c1_i32_164 = arith.constant 1 : i32
    %368 = tpu.dynamic_rotate %316 by %c1_i32_164 dim 1 : vector<8x512xf32>, i32 -> vector<8x512xf32>
    %c0_i32_165 = arith.constant 0 : i32
    %369 = vector.broadcast %c0_i32_165 : i32 to vector<1x512xi32>
    %370 = arith.cmpi sge, %0, %369 : vector<1x512xi32>
    %c16_i32_166 = arith.constant 16 : i32
    %371 = vector.broadcast %c16_i32_166 : i32 to vector<1x512xi32>
    %372 = arith.cmpi slt, %0, %371 : vector<1x512xi32>
    %373 = arith.andi %370, %372 : vector<1x512xi1>
    %c1_i32_167 = arith.constant 1 : i32
    %374 = vector.broadcast %c1_i32_167 : i32 to vector<1x512xi32>
    %375 = arith.cmpi sge, %1, %374 : vector<1x512xi32>
    %376 = arith.andi %373, %375 : vector<1x512xi1>
    %c17_i32_168 = arith.constant 17 : i32
    %377 = vector.broadcast %c17_i32_168 : i32 to vector<1x512xi32>
    %378 = arith.cmpi slt, %1, %377 : vector<1x512xi32>
    %379 = arith.andi %376, %378 : vector<1x512xi1>
    %cst_169 = arith.constant 0.000000e+00 : f32
    %380 = vector.shape_cast %379 : vector<1x512xi1> to vector<1x512xi1>
    %381 = vector.broadcast %380 : vector<1x512xi1> to vector<8x512xi1>
    %382 = vector.broadcast %cst_169 : f32 to vector<8x512xf32>
    %383 = arith.select %381, %368, %382 : vector<8x512xi1>, vector<8x512xf32>
    %c24_170 = arith.constant 24 : index
    %c0_171 = arith.constant 0 : index
    %384 = vector.load %arg7[%c24_170, %c0_171] : memref<72x512xf32, #tpu.memory_space<vmem>>, vector<8x512xf32>
    tpu.vector_store %arg7[%c24_170, %c0_171], %383 {strides = array<i32>} : memref<72x512xf32, #tpu.memory_space<vmem>>, vector<8x512xf32>,
    %c0_i32_172 = arith.constant 0 : i32
    %385 = vector.broadcast %c0_i32_172 : i32 to vector<1x512xi32>
    %386 = arith.cmpi sge, %0, %385 : vector<1x512xi32>
    %c16_i32_173 = arith.constant 16 : i32
    %387 = vector.broadcast %c16_i32_173 : i32 to vector<1x512xi32>
    %388 = arith.cmpi slt, %0, %387 : vector<1x512xi32>
    %389 = arith.andi %386, %388 : vector<1x512xi1>
    %c0_i32_174 = arith.constant 0 : i32
    %390 = vector.broadcast %c0_i32_174 : i32 to vector<1x512xi32>
    %391 = arith.cmpi sge, %1, %390 : vector<1x512xi32>
    %392 = arith.andi %389, %391 : vector<1x512xi1>
    %c16_i32_175 = arith.constant 16 : i32
    %393 = vector.broadcast %c16_i32_175 : i32 to vector<1x512xi32>
    %394 = arith.cmpi slt, %1, %393 : vector<1x512xi32>
    %395 = arith.andi %392, %394 : vector<1x512xi1>
    %cst_176 = arith.constant 0.000000e+00 : f32
    %396 = vector.shape_cast %395 : vector<1x512xi1> to vector<1x512xi1>
    %397 = vector.broadcast %396 : vector<1x512xi1> to vector<8x512xi1>
    %398 = vector.broadcast %cst_176 : f32 to vector<8x512xf32>
    %399 = arith.select %397, %316, %398 : vector<8x512xi1>, vector<8x512xf32>
    %c32_177 = arith.constant 32 : index
    %c0_178 = arith.constant 0 : index
    %400 = vector.load %arg7[%c32_177, %c0_178] : memref<72x512xf32, #tpu.memory_space<vmem>>, vector<8x512xf32>
    tpu.vector_store %arg7[%c32_177, %c0_178], %399 {strides = array<i32>} : memref<72x512xf32, #tpu.memory_space<vmem>>, vector<8x512xf32>,
    %c511_i32_179 = arith.constant 511 : i32
    %401 = tpu.dynamic_rotate %316 by %c511_i32_179 dim 1 : vector<8x512xf32>, i32 -> vector<8x512xf32>
    %c0_i32_180 = arith.constant 0 : i32
    %402 = vector.broadcast %c0_i32_180 : i32 to vector<1x512xi32>
    %403 = arith.cmpi sge, %0, %402 : vector<1x512xi32>
    %c16_i32_181 = arith.constant 16 : i32
    %404 = vector.broadcast %c16_i32_181 : i32 to vector<1x512xi32>
    %405 = arith.cmpi slt, %0, %404 : vector<1x512xi32>
    %406 = arith.andi %403, %405 : vector<1x512xi1>
    %c-1_i32_182 = arith.constant -1 : i32
    %407 = vector.broadcast %c-1_i32_182 : i32 to vector<1x512xi32>
    %408 = arith.cmpi sge, %1, %407 : vector<1x512xi32>
    %409 = arith.andi %406, %408 : vector<1x512xi1>
    %c15_i32_183 = arith.constant 15 : i32
    %410 = vector.broadcast %c15_i32_183 : i32 to vector<1x512xi32>
    %411 = arith.cmpi slt, %1, %410 : vector<1x512xi32>
    %412 = arith.andi %409, %411 : vector<1x512xi1>
    %cst_184 = arith.constant 0.000000e+00 : f32
    %413 = vector.shape_cast %412 : vector<1x512xi1> to vector<1x512xi1>
    %414 = vector.broadcast %413 : vector<1x512xi1> to vector<8x512xi1>
    %415 = vector.broadcast %cst_184 : f32 to vector<8x512xf32>
    %416 = arith.select %414, %401, %415 : vector<8x512xi1>, vector<8x512xf32>
    %c40_185 = arith.constant 40 : index
    %c0_186 = arith.constant 0 : index
    %417 = vector.load %arg7[%c40_185, %c0_186] : memref<72x512xf32, #tpu.memory_space<vmem>>, vector<8x512xf32>
    tpu.vector_store %arg7[%c40_185, %c0_186], %416 {strides = array<i32>} : memref<72x512xf32, #tpu.memory_space<vmem>>, vector<8x512xf32>,
    %c497_i32_187 = arith.constant 497 : i32
    %418 = tpu.dynamic_rotate %316 by %c497_i32_187 dim 1 : vector<8x512xf32>, i32 -> vector<8x512xf32>
    %c-1_i32_188 = arith.constant -1 : i32
    %419 = vector.broadcast %c-1_i32_188 : i32 to vector<1x512xi32>
    %420 = arith.cmpi sge, %0, %419 : vector<1x512xi32>
    %c15_i32_189 = arith.constant 15 : i32
    %421 = vector.broadcast %c15_i32_189 : i32 to vector<1x512xi32>
    %422 = arith.cmpi slt, %0, %421 : vector<1x512xi32>
    %423 = arith.andi %420, %422 : vector<1x512xi1>
    %c1_i32_190 = arith.constant 1 : i32
    %424 = vector.broadcast %c1_i32_190 : i32 to vector<1x512xi32>
    %425 = arith.cmpi sge, %1, %424 : vector<1x512xi32>
    %426 = arith.andi %423, %425 : vector<1x512xi1>
    %c17_i32_191 = arith.constant 17 : i32
    %427 = vector.broadcast %c17_i32_191 : i32 to vector<1x512xi32>
    %428 = arith.cmpi slt, %1, %427 : vector<1x512xi32>
    %429 = arith.andi %426, %428 : vector<1x512xi1>
    %cst_192 = arith.constant 0.000000e+00 : f32
    %430 = vector.shape_cast %429 : vector<1x512xi1> to vector<1x512xi1>
    %431 = vector.broadcast %430 : vector<1x512xi1> to vector<8x512xi1>
    %432 = vector.broadcast %cst_192 : f32 to vector<8x512xf32>
    %433 = arith.select %431, %418, %432 : vector<8x512xi1>, vector<8x512xf32>
    %c48_193 = arith.constant 48 : index
    %c0_194 = arith.constant 0 : index
    %434 = vector.load %arg7[%c48_193, %c0_194] : memref<72x512xf32, #tpu.memory_space<vmem>>, vector<8x512xf32>
    tpu.vector_store %arg7[%c48_193, %c0_194], %433 {strides = array<i32>} : memref<72x512xf32, #tpu.memory_space<vmem>>, vector<8x512xf32>,
    %c496_i32_195 = arith.constant 496 : i32
    %435 = tpu.dynamic_rotate %316 by %c496_i32_195 dim 1 : vector<8x512xf32>, i32 -> vector<8x512xf32>
    %c-1_i32_196 = arith.constant -1 : i32
    %436 = vector.broadcast %c-1_i32_196 : i32 to vector<1x512xi32>
    %437 = arith.cmpi sge, %0, %436 : vector<1x512xi32>
    %c15_i32_197 = arith.constant 15 : i32
    %438 = vector.broadcast %c15_i32_197 : i32 to vector<1x512xi32>
    %439 = arith.cmpi slt, %0, %438 : vector<1x512xi32>
    %440 = arith.andi %437, %439 : vector<1x512xi1>
    %c0_i32_198 = arith.constant 0 : i32
    %441 = vector.broadcast %c0_i32_198 : i32 to vector<1x512xi32>
    %442 = arith.cmpi sge, %1, %441 : vector<1x512xi32>
    %443 = arith.andi %440, %442 : vector<1x512xi1>
    %c16_i32_199 = arith.constant 16 : i32
    %444 = vector.broadcast %c16_i32_199 : i32 to vector<1x512xi32>
    %445 = arith.cmpi slt, %1, %444 : vector<1x512xi32>
    %446 = arith.andi %443, %445 : vector<1x512xi1>
    %cst_200 = arith.constant 0.000000e+00 : f32
    %447 = vector.shape_cast %446 : vector<1x512xi1> to vector<1x512xi1>
    %448 = vector.broadcast %447 : vector<1x512xi1> to vector<8x512xi1>
    %449 = vector.broadcast %cst_200 : f32 to vector<8x512xf32>
    %450 = arith.select %448, %435, %449 : vector<8x512xi1>, vector<8x512xf32>
    %c56_201 = arith.constant 56 : index
    %c0_202 = arith.constant 0 : index
    %451 = vector.load %arg7[%c56_201, %c0_202] : memref<72x512xf32, #tpu.memory_space<vmem>>, vector<8x512xf32>
    tpu.vector_store %arg7[%c56_201, %c0_202], %450 {strides = array<i32>} : memref<72x512xf32, #tpu.memory_space<vmem>>, vector<8x512xf32>,
    %c495_i32_203 = arith.constant 495 : i32
    %452 = tpu.dynamic_rotate %316 by %c495_i32_203 dim 1 : vector<8x512xf32>, i32 -> vector<8x512xf32>
    %c-1_i32_204 = arith.constant -1 : i32
    %453 = vector.broadcast %c-1_i32_204 : i32 to vector<1x512xi32>
    %454 = arith.cmpi sge, %0, %453 : vector<1x512xi32>
    %c15_i32_205 = arith.constant 15 : i32
    %455 = vector.broadcast %c15_i32_205 : i32 to vector<1x512xi32>
    %456 = arith.cmpi slt, %0, %455 : vector<1x512xi32>
    %457 = arith.andi %454, %456 : vector<1x512xi1>
    %c-1_i32_206 = arith.constant -1 : i32
    %458 = vector.broadcast %c-1_i32_206 : i32 to vector<1x512xi32>
    %459 = arith.cmpi sge, %1, %458 : vector<1x512xi32>
    %460 = arith.andi %457, %459 : vector<1x512xi1>
    %c15_i32_207 = arith.constant 15 : i32
    %461 = vector.broadcast %c15_i32_207 : i32 to vector<1x512xi32>
    %462 = arith.cmpi slt, %1, %461 : vector<1x512xi32>
    %463 = arith.andi %460, %462 : vector<1x512xi1>
    %cst_208 = arith.constant 0.000000e+00 : f32
    %464 = vector.shape_cast %463 : vector<1x512xi1> to vector<1x512xi1>
    %465 = vector.broadcast %464 : vector<1x512xi1> to vector<8x512xi1>
    %466 = vector.broadcast %cst_208 : f32 to vector<8x512xf32>
    %467 = arith.select %465, %452, %466 : vector<8x512xi1>, vector<8x512xf32>
    %c64_209 = arith.constant 64 : index
    %c0_210 = arith.constant 0 : index
    %468 = vector.load %arg7[%c64_209, %c0_210] : memref<72x512xf32, #tpu.memory_space<vmem>>, vector<8x512xf32>
    tpu.vector_store %arg7[%c64_209, %c0_210], %467 {strides = array<i32>} : memref<72x512xf32, #tpu.memory_space<vmem>>, vector<8x512xf32>,
    %c0_211 = arith.constant 0 : index
    %c0_212 = arith.constant 0 : index
    %469 = vector.load %arg5[%c0_211, %c0_212] : memref<8x72xf32, #tpu.memory_space<vmem>>, vector<8x72xf32>
    %c0_213 = arith.constant 0 : index
    %c0_214 = arith.constant 0 : index
    %470 = vector.load %arg7[%c0_213, %c0_214] : memref<72x512xf32, #tpu.memory_space<vmem>>, vector<72x512xf32>
    %cst_215 = arith.constant dense<0.000000e+00> : vector<8x512xf32>
    %471 = tpu.matmul %469, %470, %cst_215 {dimension_numbers = #tpu.dot_dimension_numbers<[1], [0], [0], [1], [0, 0, 1, 1], [], []>} : vector<8x72xf32>, vector<72x512xf32>, vector<8x512xf32> -> vector<8x512xf32>
    %cst_216 = arith.constant 0.000000e+00 : f32
    %472 = vector.broadcast %cst_216 : f32 to vector<8x512xf32>
    %473 = arith.maximumf %471, %472 : vector<8x512xf32>
    %c0_217 = arith.constant 0 : index
    %c0_218 = arith.constant 0 : index
    %474 = vector.load %arg6[%c0_217, %c0_218] : memref<8x512xf32, #tpu.memory_space<vmem>>, vector<8x512xf32>
    tpu.vector_store %arg6[%c0_217, %c0_218], %473 {strides = array<i32>} : memref<8x512xf32, #tpu.memory_space<vmem>>, vector<8x512xf32>,
    return
  }
}

</mosaic_0001>

<llo_original>
// kernel: squeeze.4
$region0: #{squeeze.4}
  %s0 = inlined_call_operand.vmem [shape: f32[288], index: 0, kind: input, shape index: {}]
  %s1 = inlined_call_operand.vmem [shape: f32[8,4,3,3], index: 1, kind: output, shape index: {}]
  $region1: #{squeeze.4} parent=0
    #allocation0 [shape = 'u8[131072]{0}', space=vmem, size = 0x20000, scoped, tag = 'scoped mem for output reshape']
    #allocation1 [shape = 'u8[4096]{0}', space=vmem, size = 0x1000, scoped, tag = 'scoped mem for input reshape']
    %s3 = sshllo.u32 0, 4
    %v4 = vld [vmem:[%s0] sm:%s3]
    %5 = vst [vmem:[#allocation1] sm:%s3] %v4
    %v6 = vld [vmem:[#allocation1] sm:$0x1]
    %vm7 = vcmask 23552
    %8 = vst.msk [vmem:[#allocation0] sm:$0x1] %vm7, %v6
    %s9 = scalar_lea.vmem [#allocation1], 1
    %v10 = vld [vmem:[%s9] sm:$0x1]
    %11 = vrot.lane.b32.xlu0 %v10, 127
    %v12 = vpop.permute.xlu0 %11
    %vm13 = vcmask 23552
    %s14 = scalar_lea.vmem [#allocation0], 113
    %15 = vst.msk [vmem:[%s14] sm:$0x1] %vm13, %v12
    %s16 = scalar_lea.vmem [#allocation1], 2
    %v17 = vld [vmem:[%s16] sm:$0x1]
    %18 = vrot.lane.b32.xlu0 %v17, 126
    %v19 = vpop.permute.xlu0 %18
    %vm20 = vcmask 23552
    %s21 = scalar_lea.vmem [#allocation0], 226
    %22 = vst.msk [vmem:[%s21] sm:$0x1] %vm20, %v19
    %v23 = vld [vmem:[#allocation1] sm:$0x1]
    %24 = vrot.lane.b32.xlu0 %v23, 125
    %v25 = vpop.permute.xlu0 %24
    %vm26 = vcmask 23552
    %s27 = scalar_lea.vmem [#allocation0], 1
    %28 = vst.msk [vmem:[%s27] sm:$0x1] %vm26, %v25
    %s29 = scalar_lea.vmem [#allocation1], 1
    %v30 = vld [vmem:[%s29] sm:$0x1]
    %31 = vrot.lane.b32.xlu0 %v30, 124
    %v32 = vpop.permute.xlu0 %31
    %vm33 = vcmask 23552
    %s34 = scalar_lea.vmem [#allocation0], 114
    %35 = vst.msk [vmem:[%s34] sm:$0x1] %vm33, %v32
    %s36 = scalar_lea.vmem [#allocation1], 2
    %v37 = vld [vmem:[%s36] sm:$0x1]
    %38 = vrot.lane.b32.xlu0 %v37, 123
    %v39 = vpop.permute.xlu0 %38
    %vm40 = vcmask 23552
    %s41 = scalar_lea.vmem [#allocation0], 232
    %42 = vst.msk [vmem:[%s41] sm:$0x1] %vm40, %v39
    %v43 = vld [vmem:[#allocation1] sm:$0x1]
    %44 = vrot.lane.b32.xlu0 %v43, 122
    %v45 = vpop.permute.xlu0 %44
    %vm46 = vcmask 23552
    %s47 = scalar_lea.vmem [#allocation0], 2
    %48 = vst.msk [vmem:[%s47] sm:$0x1] %vm46, %v45
    %s49 = scalar_lea.vmem [#allocation1], 1
    %v50 = vld [vmem:[%s49] sm:$0x1]
    %51 = vrot.lane.b32.xlu0 %v50, 121
    %v52 = vpop.permute.xlu0 %51
    %vm53 = vcmask 23552
    %s54 = scalar_lea.vmem [#allocation0], 120
    %55 = vst.msk [vmem:[%s54] sm:$0x1] %vm53, %v52
    %s56 = scalar_lea.vmem [#allocation1], 2
    %v57 = vld [vmem:[%s56] sm:$0x1]
    %58 = vrot.lane.b32.xlu0 %v57, 120
    %v59 = vpop.permute.xlu0 %58
    %vm60 = vcmask 23552
    %s61 = scalar_lea.vmem [#allocation0], 233
    %62 = vst.msk [vmem:[%s61] sm:$0x1] %vm60, %v59
    %v63 = vld [vmem:[#allocation1] sm:$0x1]
    %64 = vrot.lane.b32.xlu0 %v63, 119
    %v65 = vpop.permute.xlu0 %64
    %vm66 = vcmask 23552
    %s67 = scalar_lea.vmem [#allocation0], 8
    %68 = vst.msk [vmem:[%s67] sm:$0x1] %vm66, %v65
    %s69 = scalar_lea.vmem [#allocation1], 1
    %v70 = vld [vmem:[%s69] sm:$0x1]
    %71 = vrot.lane.b32.xlu0 %v70, 118
    %v72 = vpop.permute.xlu0 %71
    %vm73 = vcmask 23552
    %s74 = scalar_lea.vmem [#allocation0], 121
    %75 = vst.msk [vmem:[%s74] sm:$0x1] %vm73, %v72
    %s76 = scalar_lea.vmem [#allocation1], 2
    %v77 = vld [vmem:[%s76] sm:$0x1]
    %78 = vrot.lane.b32.xlu0 %v77, 117
    %v79 = vpop.permute.xlu0 %78
    %vm80 = vcmask 23552
    %s81 = scalar_lea.vmem [#allocation0], 234
    %82 = vst.msk [vmem:[%s81] sm:$0x1] %vm80, %v79
    %v83 = vld [vmem:[#allocation1] sm:$0x1]
    %84 = vrot.lane.b32.xlu0 %v83, 116
    %v85 = vpop.permute.xlu0 %84
    %vm86 = vcmask 23552
    %s87 = scalar_lea.vmem [#allocation0], 9
    %88 = vst.msk [vmem:[%s87] sm:$0x1] %vm86, %v85
    %s89 = scalar_lea.vmem [#allocation1], 1
    %v90 = vld [vmem:[%s89] sm:$0x1]
    %91 = vrot.lane.b32.xlu0 %v90, 115
    %v92 = vpop.permute.xlu0 %91
    %vm93 = vcmask 23552
    %s94 = scalar_lea.vmem [#allocation0], 122
    %95 = vst.msk [vmem:[%s94] sm:$0x1] %vm93, %v92
    %s96 = scalar_lea.vmem [#allocation1], 2
    %v97 = vld [vmem:[%s96] sm:$0x1]
    %98 = vrot.lane.b32.xlu0 %v97, 114
    %v99 = vpop.permute.xlu0 %98
    %vm100 = vcmask 23552
    %s101 = scalar_lea.vmem [#allocation0], 240
    %102 = vst.msk [vmem:[%s101] sm:$0x1] %vm100, %v99
    %v103 = vld [vmem:[#allocation1] sm:$0x1]
    %104 = vrot.lane.b32.xlu0 %v103, 113
    %v105 = vpop.permute.xlu0 %104
    %vm106 = vcmask 23552
    %s107 = scalar_lea.vmem [#allocation0], 10
    %108 = vst.msk [vmem:[%s107] sm:$0x1] %vm106, %v105
    %s109 = scalar_lea.vmem [#allocation1], 1
    %v110 = vld [vmem:[%s109] sm:$0x1]
    %111 = vrot.lane.b32.xlu0 %v110, 112
    %v112 = vpop.permute.xlu0 %111
    %vm113 = vcmask 23552
    %s114 = scalar_lea.vmem [#allocation0], 128
    %115 = vst.msk [vmem:[%s114] sm:$0x1] %vm113, %v112
    %s116 = scalar_lea.vmem [#allocation1], 2
    %v117 = vld [vmem:[%s116] sm:$0x1]
    %118 = vrot.lane.b32.xlu0 %v117, 111
    %v119 = vpop.permute.xlu0 %118
    %vm120 = vcmask 23552
    %s121 = scalar_lea.vmem [#allocation0], 241
    %122 = vst.msk [vmem:[%s121] sm:$0x1] %vm120, %v119
    %v123 = vld [vmem:[#allocation1] sm:$0x1]
    %124 = vrot.lane.b32.xlu0 %v123, 110
    %v125 = vpop.permute.xlu0 %124
    %vm126 = vcmask 23552
    %s127 = scalar_lea.vmem [#allocation0], 16
    %128 = vst.msk [vmem:[%s127] sm:$0x1] %vm126, %v125
    %s129 = scalar_lea.vmem [#allocation1], 1
    %v130 = vld [vmem:[%s129] sm:$0x1]
    %131 = vrot.lane.b32.xlu0 %v130, 109
    %v132 = vpop.permute.xlu0 %131
    %vm133 = vcmask 23552
    %s134 = scalar_lea.vmem [#allocation0], 129
    %135 = vst.msk [vmem:[%s134] sm:$0x1] %vm133, %v132
    %s136 = scalar_lea.vmem [#allocation1], 2
    %v137 = vld [vmem:[%s136] sm:$0x1]
    %138 = vrot.lane.b32.xlu0 %v137, 108
    %v139 = vpop.permute.xlu0 %138
    %vm140 = vcmask 23552
    %s141 = scalar_lea.vmem [#allocation0], 242
    %142 = vst.msk [vmem:[%s141] sm:$0x1] %vm140, %v139
    %v143 = vld [vmem:[#allocation1] sm:$0x1]
    %144 = vrot.lane.b32.xlu0 %v143, 107
    %v145 = vpop.permute.xlu0 %144
    %vm146 = vcmask 23552
    %s147 = scalar_lea.vmem [#allocation0], 17
    %148 = vst.msk [vmem:[%s147] sm:$0x1] %vm146, %v145
    %s149 = scalar_lea.vmem [#allocation1], 1
    %v150 = vld [vmem:[%s149] sm:$0x1]
    %151 = vrot.lane.b32.xlu0 %v150, 106
    %v152 = vpop.permute.xlu0 %151
    %vm153 = vcmask 23552
    %s154 = scalar_lea.vmem [#allocation0], 130
    %155 = vst.msk [vmem:[%s154] sm:$0x1] %vm153, %v152
    %s156 = scalar_lea.vmem [#allocation1], 2
    %v157 = vld [vmem:[%s156] sm:$0x1]
    %158 = vrot.lane.b32.xlu0 %v157, 105
    %v159 = vpop.permute.xlu0 %158
    %vm160 = vcmask 23552
    %s161 = scalar_lea.vmem [#allocation0], 248
    %162 = vst.msk [vmem:[%s161] sm:$0x1] %vm160, %v159
    %v163 = vld [vmem:[#allocation1] sm:$0x1]
    %164 = vrot.lane.b32.xlu0 %v163, 104
    %v165 = vpop.permute.xlu0 %164
    %vm166 = vcmask 23552
    %s167 = scalar_lea.vmem [#allocation0], 18
    %168 = vst.msk [vmem:[%s167] sm:$0x1] %vm166, %v165
    %s169 = scalar_lea.vmem [#allocation1], 1
    %v170 = vld [vmem:[%s169] sm:$0x1]
    %171 = vrot.lane.b32.xlu0 %v170, 103
    %v172 = vpop.permute.xlu0 %171
    %vm173 = vcmask 23552
    %s174 = scalar_lea.vmem [#allocation0], 136
    %175 = vst.msk [vmem:[%s174] sm:$0x1] %vm173, %v172
    %s176 = scalar_lea.vmem [#allocation1], 2
    %v177 = vld [vmem:[%s176] sm:$0x1]
    %178 = vrot.lane.b32.xlu0 %v177, 102
    %v179 = vpop.permute.xlu0 %178
    %vm180 = vcmask 23552
    %s181 = scalar_lea.vmem [#allocation0], 249
    %182 = vst.msk [vmem:[%s181] sm:$0x1] %vm180, %v179
    %v183 = vld [vmem:[#allocation1] sm:$0x1]
    %184 = vrot.lane.b32.xlu0 %v183, 101
    %v185 = vpop.permute.xlu0 %184
    %vm186 = vcmask 23552
    %s187 = scalar_lea.vmem [#allocation0], 24
    %188 = vst.msk [vmem:[%s187] sm:$0x1] %vm186, %v185
    %s189 = scalar_lea.vmem [#allocation1], 1
    %v190 = vld [vmem:[%s189] sm:$0x1]
    %191 = vrot.lane.b32.xlu0 %v190, 100
    %v192 = vpop.permute.xlu0 %191
    %vm193 = vcmask 23552
    %s194 = scalar_lea.vmem [#allocation0], 137
    %195 = vst.msk [vmem:[%s194] sm:$0x1] %vm193, %v192
    %s196 = scalar_lea.vmem [#allocation1], 2
    %v197 = vld [vmem:[%s196] sm:$0x1]
    %198 = vrot.lane.b32.xlu0 %v197, 99
    %v199 = vpop.permute.xlu0 %198
    %vm200 = vcmask 23552
    %s201 = scalar_lea.vmem [#allocation0], 250
    %202 = vst.msk [vmem:[%s201] sm:$0x1] %vm200, %v199
    %v203 = vld [vmem:[#allocation1] sm:$0x1]
    %204 = vrot.lane.b32.xlu0 %v203, 98
    %v205 = vpop.permute.xlu0 %204
    %vm206 = vcmask 23552
    %s207 = scalar_lea.vmem [#allocation0], 25
    %208 = vst.msk [vmem:[%s207] sm:$0x1] %vm206, %v205
    %s209 = scalar_lea.vmem [#allocation1], 1
    %v210 = vld [vmem:[%s209] sm:$0x1]
    %211 = vrot.lane.b32.xlu0 %v210, 97
    %v212 = vpop.permute.xlu0 %211
    %vm213 = vcmask 23552
    %s214 = scalar_lea.vmem [#allocation0], 138
    %215 = vst.msk [vmem:[%s214] sm:$0x1] %vm213, %v212
    %v216 = vld [vmem:[#allocation1] sm:$0x1]
    %217 = vrot.lane.b32.xlu0 %v216, 95
    %v218 = vpop.permute.xlu0 %217
    %vm219 = vcmask 23552
    %s220 = scalar_lea.vmem [#allocation0], 26
    %221 = vst.msk [vmem:[%s220] sm:$0x1] %vm219, %v218
    %s222 = scalar_lea.vmem [#allocation1], 1
    %v223 = vld [vmem:[%s222] sm:$0x1]
    %224 = vrot.lane.b32.xlu0 %v223, 94
    %v225 = vpop.permute.xlu0 %224
    %vm226 = vcmask 23552
    %s227 = scalar_lea.vmem [#allocation0], 144
    %228 = vst.msk [vmem:[%s227] sm:$0x1] %vm226, %v225
    %v229 = vld [vmem:[#allocation1] sm:$0x1]
    %230 = vrot.lane.b32.xlu0 %v229, 92
    %v231 = vpop.permute.xlu0 %230
    %vm232 = vcmask 23552
    %s233 = scalar_lea.vmem [#allocation0], 32
    %234 = vst.msk [vmem:[%s233] sm:$0x1] %vm232, %v231
    %s235 = scalar_lea.vmem [#allocation1], 1
    %v236 = vld [vmem:[%s235] sm:$0x1]
    %237 = vrot.lane.b32.xlu0 %v236, 91
    %v238 = vpop.permute.xlu0 %237
    %vm239 = vcmask 23552
    %s240 = scalar_lea.vmem [#allocation0], 145
    %241 = vst.msk [vmem:[%s240] sm:$0x1] %vm239, %v238
    %v242 = vld [vmem:[#allocation1] sm:$0x1]
    %243 = vrot.lane.b32.xlu0 %v242, 89
    %v244 = vpop.permute.xlu0 %243
    %vm245 = vcmask 23552
    %s246 = scalar_lea.vmem [#allocation0], 33
    %247 = vst.msk [vmem:[%s246] sm:$0x1] %vm245, %v244
    %s248 = scalar_lea.vmem [#allocation1], 1
    %v249 = vld [vmem:[%s248] sm:$0x1]
    %250 = vrot.lane.b32.xlu0 %v249, 88
    %v251 = vpop.permute.xlu0 %250
    %vm252 = vcmask 23552
    %s253 = scalar_lea.vmem [#allocation0], 146
    %254 = vst.msk [vmem:[%s253] sm:$0x1] %vm252, %v251
    %v255 = vld [vmem:[#allocation1] sm:$0x1]
    %256 = vrot.lane.b32.xlu0 %v255, 86
    %v257 = vpop.permute.xlu0 %256
    %vm258 = vcmask 23552
    %s259 = scalar_lea.vmem [#allocation0], 34
    %260 = vst.msk [vmem:[%s259] sm:$0x1] %vm258, %v257
    %s261 = scalar_lea.vmem [#allocation1], 1
    %v262 = vld [vmem:[%s261] sm:$0x1]
    %263 = vrot.lane.b32.xlu0 %v262, 85
    %v264 = vpop.permute.xlu0 %263
    %vm265 = vcmask 23552
    %s266 = scalar_lea.vmem [#allocation0], 152
    %267 = vst.msk [vmem:[%s266] sm:$0x1] %vm265, %v264
    %v268 = vld [vmem:[#allocation1] sm:$0x1]
    %269 = vrot.lane.b32.xlu0 %v268, 83
    %v270 = vpop.permute.xlu0 %269
    %vm271 = vcmask 23552
    %s272 = scalar_lea.vmem [#allocation0], 40
    %273 = vst.msk [vmem:[%s272] sm:$0x1] %vm271, %v270
    %s274 = scalar_lea.vmem [#allocation1], 1
    %v275 = vld [vmem:[%s274] sm:$0x1]
    %276 = vrot.lane.b32.xlu0 %v275, 82
    %v277 = vpop.permute.xlu0 %276
    %vm278 = vcmask 23552
    %s279 = scalar_lea.vmem [#allocation0], 153
    %280 = vst.msk [vmem:[%s279] sm:$0x1] %vm278, %v277
    %v281 = vld [vmem:[#allocation1] sm:$0x1]
    %282 = vrot.lane.b32.xlu0 %v281, 80
    %v283 = vpop.permute.xlu0 %282
    %vm284 = vcmask 23552
    %s285 = scalar_lea.vmem [#allocation0], 41
    %286 = vst.msk [vmem:[%s285] sm:$0x1] %vm284, %v283
    %s287 = scalar_lea.vmem [#allocation1], 1
    %v288 = vld [vmem:[%s287] sm:$0x1]
    %289 = vrot.lane.b32.xlu0 %v288, 79
    %v290 = vpop.permute.xlu0 %289
    %vm291 = vcmask 23552
    %s292 = scalar_lea.vmem [#allocation0], 154
    %293 = vst.msk [vmem:[%s292] sm:$0x1] %vm291, %v290
    %v294 = vld [vmem:[#allocation1] sm:$0x1]
    %295 = vrot.lane.b32.xlu0 %v294, 77
    %v296 = vpop.permute.xlu0 %295
    %vm297 = vcmask 23552
    %s298 = scalar_lea.vmem [#allocation0], 42
    %299 = vst.msk [vmem:[%s298] sm:$0x1] %vm297, %v296
    %s300 = scalar_lea.vmem [#allocation1], 1
    %v301 = vld [vmem:[%s300] sm:$0x1]
    %302 = vrot.lane.b32.xlu0 %v301, 76
    %v303 = vpop.permute.xlu0 %302
    %vm304 = vcmask 23552
    %s305 = scalar_lea.vmem [#allocation0], 160
    %306 = vst.msk [vmem:[%s305] sm:$0x1] %vm304, %v303
    %v307 = vld [vmem:[#allocation1] sm:$0x1]
    %308 = vrot.lane.b32.xlu0 %v307, 74
    %v309 = vpop.permute.xlu0 %308
    %vm310 = vcmask 23552
    %s311 = scalar_lea.vmem [#allocation0], 48
    %312 = vst.msk [vmem:[%s311] sm:$0x1] %vm310, %v309
    %s313 = scalar_lea.vmem [#allocation1], 1
    %v314 = vld [vmem:[%s313] sm:$0x1]
    %315 = vrot.lane.b32.xlu0 %v314, 73
    %v316 = vpop.permute.xlu0 %315
    %vm317 = vcmask 23552
    %s318 = scalar_lea.vmem [#allocation0], 161
    %319 = vst.msk [vmem:[%s318] sm:$0x1] %vm317, %v316
    %v320 = vld [vmem:[#allocation1] sm:$0x1]
    %321 = vrot.lane.b32.xlu0 %v320, 71
    %v322 = vpop.permute.xlu0 %321
    %vm323 = vcmask 23552
    %s324 = scalar_lea.vmem [#allocation0], 49
    %325 = vst.msk [vmem:[%s324] sm:$0x1] %vm323, %v322
    %s326 = scalar_lea.vmem [#allocation1], 1
    %v327 = vld [vmem:[%s326] sm:$0x1]
    %328 = vrot.lane.b32.xlu0 %v327, 70
    %v329 = vpop.permute.xlu0 %328
    %vm330 = vcmask 23552
    %s331 = scalar_lea.vmem [#allocation0], 162
    %332 = vst.msk [vmem:[%s331] sm:$0x1] %vm330, %v329
    %v333 = vld [vmem:[#allocation1] sm:$0x1]
    %334 = vrot.lane.b32.xlu0 %v333, 68
    %v335 = vpop.permute.xlu0 %334
    %vm336 = vcmask 23552
    %s337 = scalar_lea.vmem [#allocation0], 50
    %338 = vst.msk [vmem:[%s337] sm:$0x1] %vm336, %v335
    %s339 = scalar_lea.vmem [#allocation1], 1
    %v340 = vld [vmem:[%s339] sm:$0x1]
    %341 = vrot.lane.b32.xlu0 %v340, 67
    %v342 = vpop.permute.xlu0 %341
    %vm343 = vcmask 23552
    %s344 = scalar_lea.vmem [#allocation0], 168
    %345 = vst.msk [vmem:[%s344] sm:$0x1] %vm343, %v342
    %v346 = vld [vmem:[#allocation1] sm:$0x1]
    %347 = vrot.lane.b32.xlu0 %v346, 65
    %v348 = vpop.permute.xlu0 %347
    %vm349 = vcmask 23552
    %s350 = scalar_lea.vmem [#allocation0], 56
    %351 = vst.msk [vmem:[%s350] sm:$0x1] %vm349, %v348
    %s352 = scalar_lea.vmem [#allocation1], 1
    %v353 = vld [vmem:[%s352] sm:$0x1]
    %354 = vrot.lane.b32.xlu0 %v353, 64
    %v355 = vpop.permute.xlu0 %354
    %vm356 = vcmask 23552
    %s357 = scalar_lea.vmem [#allocation0], 169
    %358 = vst.msk [vmem:[%s357] sm:$0x1] %vm356, %v355
    %v359 = vld [vmem:[#allocation1] sm:$0x1]
    %360 = vrot.lane.b32.xlu0 %v359, 62
    %v361 = vpop.permute.xlu0 %360
    %vm362 = vcmask 23552
    %s363 = scalar_lea.vmem [#allocation0], 57
    %364 = vst.msk [vmem:[%s363] sm:$0x1] %vm362, %v361
    %s365 = scalar_lea.vmem [#allocation1], 1
    %v366 = vld [vmem:[%s365] sm:$0x1]
    %367 = vrot.lane.b32.xlu0 %v366, 61
    %v368 = vpop.permute.xlu0 %367
    %vm369 = vcmask 23552
    %s370 = scalar_lea.vmem [#allocation0], 170
    %371 = vst.msk [vmem:[%s370] sm:$0x1] %vm369, %v368
    %v372 = vld [vmem:[#allocation1] sm:$0x1]
    %373 = vrot.lane.b32.xlu0 %v372, 59
    %v374 = vpop.permute.xlu0 %373
    %vm375 = vcmask 23552
    %s376 = scalar_lea.vmem [#allocation0], 58
    %377 = vst.msk [vmem:[%s376] sm:$0x1] %vm375, %v374
    %s378 = scalar_lea.vmem [#allocation1], 1
    %v379 = vld [vmem:[%s378] sm:$0x1]
    %380 = vrot.lane.b32.xlu0 %v379, 58
    %v381 = vpop.permute.xlu0 %380
    %vm382 = vcmask 23552
    %s383 = scalar_lea.vmem [#allocation0], 176
    %384 = vst.msk [vmem:[%s383] sm:$0x1] %vm382, %v381
    %v385 = vld [vmem:[#allocation1] sm:$0x1]
    %386 = vrot.lane.b32.xlu0 %v385, 56
    %v387 = vpop.permute.xlu0 %386
    %vm388 = vcmask 23552
    %s389 = scalar_lea.vmem [#allocation0], 64
    %390 = vst.msk [vmem:[%s389] sm:$0x1] %vm388, %v387
    %s391 = scalar_lea.vmem [#allocation1], 1
    %v392 = vld [vmem:[%s391] sm:$0x1]
    %393 = vrot.lane.b32.xlu0 %v392, 55
    %v394 = vpop.permute.xlu0 %393
    %vm395 = vcmask 23552
    %s396 = scalar_lea.vmem [#allocation0], 177
    %397 = vst.msk [vmem:[%s396] sm:$0x1] %vm395, %v394
    %v398 = vld [vmem:[#allocation1] sm:$0x1]
    %399 = vrot.lane.b32.xlu0 %v398, 53
    %v400 = vpop.permute.xlu0 %399
    %vm401 = vcmask 23552
    %s402 = scalar_lea.vmem [#allocation0], 65
    %403 = vst.msk [vmem:[%s402] sm:$0x1] %vm401, %v400
    %s404 = scalar_lea.vmem [#allocation1], 1
    %v405 = vld [vmem:[%s404] sm:$0x1]
    %406 = vrot.lane.b32.xlu0 %v405, 52
    %v407 = vpop.permute.xlu0 %406
    %vm408 = vcmask 23552
    %s409 = scalar_lea.vmem [#allocation0], 178
    %410 = vst.msk [vmem:[%s409] sm:$0x1] %vm408, %v407
    %v411 = vld [vmem:[#allocation1] sm:$0x1]
    %412 = vrot.lane.b32.xlu0 %v411, 50
    %v413 = vpop.permute.xlu0 %412
    %vm414 = vcmask 23552
    %s415 = scalar_lea.vmem [#allocation0], 66
    %416 = vst.msk [vmem:[%s415] sm:$0x1] %vm414, %v413
    %s417 = scalar_lea.vmem [#allocation1], 1
    %v418 = vld [vmem:[%s417] sm:$0x1]
    %419 = vrot.lane.b32.xlu0 %v418, 49
    %v420 = vpop.permute.xlu0 %419
    %vm421 = vcmask 23552
    %s422 = scalar_lea.vmem [#allocation0], 184
    %423 = vst.msk [vmem:[%s422] sm:$0x1] %vm421, %v420
    %v424 = vld [vmem:[#allocation1] sm:$0x1]
    %425 = vrot.lane.b32.xlu0 %v424, 47
    %v426 = vpop.permute.xlu0 %425
    %vm427 = vcmask 23552
    %s428 = scalar_lea.vmem [#allocation0], 72
    %429 = vst.msk [vmem:[%s428] sm:$0x1] %vm427, %v426
    %s430 = scalar_lea.vmem [#allocation1], 1
    %v431 = vld [vmem:[%s430] sm:$0x1]
    %432 = vrot.lane.b32.xlu0 %v431, 46
    %v433 = vpop.permute.xlu0 %432
    %vm434 = vcmask 23552
    %s435 = scalar_lea.vmem [#allocation0], 185
    %436 = vst.msk [vmem:[%s435] sm:$0x1] %vm434, %v433
    %v437 = vld [vmem:[#allocation1] sm:$0x1]
    %438 = vrot.lane.b32.xlu0 %v437, 44
    %v439 = vpop.permute.xlu0 %438
    %vm440 = vcmask 23552
    %s441 = scalar_lea.vmem [#allocation0], 73
    %442 = vst.msk [vmem:[%s441] sm:$0x1] %vm440, %v439
    %s443 = scalar_lea.vmem [#allocation1], 1
    %v444 = vld [vmem:[%s443] sm:$0x1]
    %445 = vrot.lane.b32.xlu0 %v444, 43
    %v446 = vpop.permute.xlu0 %445
    %vm447 = vcmask 23552
    %s448 = scalar_lea.vmem [#allocation0], 186
    %449 = vst.msk [vmem:[%s448] sm:$0x1] %vm447, %v446
    %v450 = vld [vmem:[#allocation1] sm:$0x1]
    %451 = vrot.lane.b32.xlu0 %v450, 41
    %v452 = vpop.permute.xlu0 %451
    %vm453 = vcmask 23552
    %s454 = scalar_lea.vmem [#allocation0], 74
    %455 = vst.msk [vmem:[%s454] sm:$0x1] %vm453, %v452
    %s456 = scalar_lea.vmem [#allocation1], 1
    %v457 = vld [vmem:[%s456] sm:$0x1]
    %458 = vrot.lane.b32.xlu0 %v457, 40
    %v459 = vpop.permute.xlu0 %458
    %vm460 = vcmask 23552
    %s461 = scalar_lea.vmem [#allocation0], 192
    %462 = vst.msk [vmem:[%s461] sm:$0x1] %vm460, %v459
    %v463 = vld [vmem:[#allocation1] sm:$0x1]
    %464 = vrot.lane.b32.xlu0 %v463, 38
    %v465 = vpop.permute.xlu0 %464
    %vm466 = vcmask 23552
    %s467 = scalar_lea.vmem [#allocation0], 80
    %468 = vst.msk [vmem:[%s467] sm:$0x1] %vm466, %v465
    %s469 = scalar_lea.vmem [#allocation1], 1
    %v470 = vld [vmem:[%s469] sm:$0x1]
    %471 = vrot.lane.b32.xlu0 %v470, 37
    %v472 = vpop.permute.xlu0 %471
    %vm473 = vcmask 23552
    %s474 = scalar_lea.vmem [#allocation0], 193
    %475 = vst.msk [vmem:[%s474] sm:$0x1] %vm473, %v472
    %v476 = vld [vmem:[#allocation1] sm:$0x1]
    %477 = vrot.lane.b32.xlu0 %v476, 35
    %v478 = vpop.permute.xlu0 %477
    %vm479 = vcmask 23552
    %s480 = scalar_lea.vmem [#allocation0], 81
    %481 = vst.msk [vmem:[%s480] sm:$0x1] %vm479, %v478
    %s482 = scalar_lea.vmem [#allocation1], 1
    %v483 = vld [vmem:[%s482] sm:$0x1]
    %484 = vrot.lane.b32.xlu0 %v483, 34
    %v485 = vpop.permute.xlu0 %484
    %vm486 = vcmask 23552
    %s487 = scalar_lea.vmem [#allocation0], 194
    %488 = vst.msk [vmem:[%s487] sm:$0x1] %vm486, %v485
    %v489 = vld [vmem:[#allocation1] sm:$0x1]
    %490 = vrot.lane.b32.xlu0 %v489, 32
    %v491 = vpop.permute.xlu0 %490
    %vm492 = vcmask 23552
    %s493 = scalar_lea.vmem [#allocation0], 82
    %494 = vst.msk [vmem:[%s493] sm:$0x1] %vm492, %v491
    %s495 = scalar_lea.vmem [#allocation1], 1
    %v496 = vld [vmem:[%s495] sm:$0x1]
    %497 = vrot.lane.b32.xlu0 %v496, 31
    %v498 = vpop.permute.xlu0 %497
    %vm499 = vcmask 23552
    %s500 = scalar_lea.vmem [#allocation0], 200
    %501 = vst.msk [vmem:[%s500] sm:$0x1] %vm499, %v498
    %v502 = vld [vmem:[#allocation1] sm:$0x1]
    %503 = vrot.lane.b32.xlu0 %v502, 29
    %v504 = vpop.permute.xlu0 %503
    %vm505 = vcmask 23552
    %s506 = scalar_lea.vmem [#allocation0], 88
    %507 = vst.msk [vmem:[%s506] sm:$0x1] %vm505, %v504
    %s508 = scalar_lea.vmem [#allocation1], 1
    %v509 = vld [vmem:[%s508] sm:$0x1]
    %510 = vrot.lane.b32.xlu0 %v509, 28
    %v511 = vpop.permute.xlu0 %510
    %vm512 = vcmask 23552
    %s513 = scalar_lea.vmem [#allocation0], 201
    %514 = vst.msk [vmem:[%s513] sm:$0x1] %vm512, %v511
    %v515 = vld [vmem:[#allocation1] sm:$0x1]
    %516 = vrot.lane.b32.xlu0 %v515, 26
    %v517 = vpop.permute.xlu0 %516
    %vm518 = vcmask 23552
    %s519 = scalar_lea.vmem [#allocation0], 89
    %520 = vst.msk [vmem:[%s519] sm:$0x1] %vm518, %v517
    %s521 = scalar_lea.vmem [#allocation1], 1
    %v522 = vld [vmem:[%s521] sm:$0x1]
    %523 = vrot.lane.b32.xlu0 %v522, 25
    %v524 = vpop.permute.xlu0 %523
    %vm525 = vcmask 23552
    %s526 = scalar_lea.vmem [#allocation0], 202
    %527 = vst.msk [vmem:[%s526] sm:$0x1] %vm525, %v524
    %v528 = vld [vmem:[#allocation1] sm:$0x1]
    %529 = vrot.lane.b32.xlu0 %v528, 23
    %v530 = vpop.permute.xlu0 %529
    %vm531 = vcmask 23552
    %s532 = scalar_lea.vmem [#allocation0], 90
    %533 = vst.msk [vmem:[%s532] sm:$0x1] %vm531, %v530
    %s534 = scalar_lea.vmem [#allocation1], 1
    %v535 = vld [vmem:[%s534] sm:$0x1]
    %536 = vrot.lane.b32.xlu0 %v535, 22
    %v537 = vpop.permute.xlu0 %536
    %vm538 = vcmask 23552
    %s539 = scalar_lea.vmem [#allocation0], 208
    %540 = vst.msk [vmem:[%s539] sm:$0x1] %vm538, %v537
    %v541 = vld [vmem:[#allocation1] sm:$0x1]
    %542 = vrot.lane.b32.xlu0 %v541, 20
    %v543 = vpop.permute.xlu0 %542
    %vm544 = vcmask 23552
    %s545 = scalar_lea.vmem [#allocation0], 96
    %546 = vst.msk [vmem:[%s545] sm:$0x1] %vm544, %v543
    %s547 = scalar_lea.vmem [#allocation1], 1
    %v548 = vld [vmem:[%s547] sm:$0x1]
    %549 = vrot.lane.b32.xlu0 %v548, 19
    %v550 = vpop.permute.xlu0 %549
    %vm551 = vcmask 23552
    %s552 = scalar_lea.vmem [#allocation0], 209
    %553 = vst.msk [vmem:[%s552] sm:$0x1] %vm551, %v550
    %v554 = vld [vmem:[#allocation1] sm:$0x1]
    %555 = vrot.lane.b32.xlu0 %v554, 17
    %v556 = vpop.permute.xlu0 %555
    %vm557 = vcmask 23552
    %s558 = scalar_lea.vmem [#allocation0], 97
    %559 = vst.msk [vmem:[%s558] sm:$0x1] %vm557, %v556
    %s560 = scalar_lea.vmem [#allocation1], 1
    %v561 = vld [vmem:[%s560] sm:$0x1]
    %562 = vrot.lane.b32.xlu0 %v561, 16
    %v563 = vpop.permute.xlu0 %562
    %vm564 = vcmask 23552
    %s565 = scalar_lea.vmem [#allocation0], 210
    %566 = vst.msk [vmem:[%s565] sm:$0x1] %vm564, %v563
    %v567 = vld [vmem:[#allocation1] sm:$0x1]
    %568 = vrot.lane.b32.xlu0 %v567, 14
    %v569 = vpop.permute.xlu0 %568
    %vm570 = vcmask 23552
    %s571 = scalar_lea.vmem [#allocation0], 98
    %572 = vst.msk [vmem:[%s571] sm:$0x1] %vm570, %v569
    %s573 = scalar_lea.vmem [#allocation1], 1
    %v574 = vld [vmem:[%s573] sm:$0x1]
    %575 = vrot.lane.b32.xlu0 %v574, 13
    %v576 = vpop.permute.xlu0 %575
    %vm577 = vcmask 23552
    %s578 = scalar_lea.vmem [#allocation0], 216
    %579 = vst.msk [vmem:[%s578] sm:$0x1] %vm577, %v576
    %v580 = vld [vmem:[#allocation1] sm:$0x1]
    %581 = vrot.lane.b32.xlu0 %v580, 11
    %v582 = vpop.permute.xlu0 %581
    %vm583 = vcmask 23552
    %s584 = scalar_lea.vmem [#allocation0], 104
    %585 = vst.msk [vmem:[%s584] sm:$0x1] %vm583, %v582
    %s586 = scalar_lea.vmem [#allocation1], 1
    %v587 = vld [vmem:[%s586] sm:$0x1]
    %588 = vrot.lane.b32.xlu0 %v587, 10
    %v589 = vpop.permute.xlu0 %588
    %vm590 = vcmask 23552
    %s591 = scalar_lea.vmem [#allocation0], 217
    %592 = vst.msk [vmem:[%s591] sm:$0x1] %vm590, %v589
    %v593 = vld [vmem:[#allocation1] sm:$0x1]
    %594 = vrot.lane.b32.xlu0 %v593, 8
    %v595 = vpop.permute.xlu0 %594
    %vm596 = vcmask 23552
    %s597 = scalar_lea.vmem [#allocation0], 105
    %598 = vst.msk [vmem:[%s597] sm:$0x1] %vm596, %v595
    %s599 = scalar_lea.vmem [#allocation1], 1
    %v600 = vld [vmem:[%s599] sm:$0x1]
    %601 = vrot.lane.b32.xlu0 %v600, 7
    %v602 = vpop.permute.xlu0 %601
    %vm603 = vcmask 23552
    %s604 = scalar_lea.vmem [#allocation0], 218
    %605 = vst.msk [vmem:[%s604] sm:$0x1] %vm603, %v602
    %v606 = vld [vmem:[#allocation1] sm:$0x1]
    %607 = vrot.lane.b32.xlu0 %v606, 5
    %v608 = vpop.permute.xlu0 %607
    %vm609 = vcmask 23552
    %s610 = scalar_lea.vmem [#allocation0], 106
    %611 = vst.msk [vmem:[%s610] sm:$0x1] %vm609, %v608
    %s612 = scalar_lea.vmem [#allocation1], 1
    %v613 = vld [vmem:[%s612] sm:$0x1]
    %614 = vrot.lane.b32.xlu0 %v613, 4
    %v615 = vpop.permute.xlu0 %614
    %vm616 = vcmask 23552
    %s617 = scalar_lea.vmem [#allocation0], 224
    %618 = vst.msk [vmem:[%s617] sm:$0x1] %vm616, %v615
    %v619 = vld [vmem:[#allocation1] sm:$0x1]
    %s620 = scalar_lea.vmem [#allocation1], 1
    %v621 = vld [vmem:[%s620] sm:$0x1]
    %vm622 = vcmask 1031168
    %v623 = vsel %vm622, %v621, %v619
    %624 = vrot.lane.b32.xlu0 %v623, 2
    %v625 = vpop.permute.xlu0 %624
    %vm626 = vcmask 15360
    %s627 = scalar_lea.vmem [#allocation0], 112
    %628 = vst.msk [vmem:[%s627] sm:$0x1] %vm626, %v625
    %vm629 = vcmask 23568
    %s630 = scalar_lea.vmem [#allocation0], 112
    %631 = vst.msk [vmem:[%s630] sm:$0x1] %vm629, %v625
    %s632 = scalar_lea.vmem [#allocation1], 1
    %v633 = vld [vmem:[%s632] sm:$0x1]
    %s634 = scalar_lea.vmem [#allocation1], 2
    %v635 = vld [vmem:[%s634] sm:$0x1]
    %vm636 = vcmask 1039360
    %v637 = vsel %vm636, %v635, %v633
    %638 = vrot.lane.b32.xlu0 %v637, 1
    %v639 = vpop.permute.xlu0 %638
    %vm640 = vcmask 7168
    %s641 = scalar_lea.vmem [#allocation0], 225
    %642 = vst.msk [vmem:[%s641] sm:$0x1] %vm640, %v639
    %vm643 = vcmask 23560
    %s644 = scalar_lea.vmem [#allocation0], 225
    %645 = vst.msk [vmem:[%s644] sm:$0x1] %vm643, %v639
    %s647 = sshllo.u32 0, 4
    %v649 = vld [vmem:[#allocation0] sm:%s647]
    %s650 = sshllo.u32 0, 4
    %651 = vst [vmem:[%s1] sm:%s650] %v649
    %s652 = scalar_lea.vmem [#allocation0], 8
    %v653 = vld [vmem:[%s652] sm:%s647]
    %s654 = sshllo.u32 0, 4
    %s655 = scalar_lea.vmem %s1, 4
    %656 = vst [vmem:[%s655] sm:%s654] %v653
    %s657 = scalar_lea.vmem [#allocation0], 16
    %v658 = vld [vmem:[%s657] sm:%s647]
    %s659 = sshllo.u32 0, 4
    %s660 = smul.addr 4, 2
    %s661 = scalar_lea.vmem %s1, %s660
    %662 = vst [vmem:[%s661] sm:%s659] %v658
    %s663 = scalar_lea.vmem [#allocation0], 24
    %v664 = vld [vmem:[%s663] sm:%s647]
    %s665 = sshllo.u32 0, 4
    %s666 = smul.addr 4, 3
    %s667 = scalar_lea.vmem %s1, %s666
    %668 = vst [vmem:[%s667] sm:%s665] %v664
    %s669 = scalar_lea.vmem [#allocation0], 32
    %v670 = vld [vmem:[%s669] sm:%s647]
    %s671 = sshllo.u32 0, 4
    %s672 = smul.addr 4, 4
    %s673 = scalar_lea.vmem %s1, %s672
    %674 = vst [vmem:[%s673] sm:%s671] %v670
    %s675 = scalar_lea.vmem [#allocation0], 40
    %v676 = vld [vmem:[%s675] sm:%s647]
    %s677 = sshllo.u32 0, 4
    %s678 = smul.addr 4, 5
    %s679 = scalar_lea.vmem %s1, %s678
    %680 = vst [vmem:[%s679] sm:%s677] %v676
    %s681 = scalar_lea.vmem [#allocation0], 48
    %v682 = vld [vmem:[%s681] sm:%s647]
    %s683 = sshllo.u32 0, 4
    %s684 = smul.addr 4, 6
    %s685 = scalar_lea.vmem %s1, %s684
    %686 = vst [vmem:[%s685] sm:%s683] %v682
    %s687 = scalar_lea.vmem [#allocation0], 56
    %v688 = vld [vmem:[%s687] sm:%s647]
    %s689 = sshllo.u32 0, 4
    %s690 = smul.addr 4, 7
    %s691 = scalar_lea.vmem %s1, %s690
    %692 = vst [vmem:[%s691] sm:%s689] %v688
    %s693 = scalar_lea.vmem [#allocation0], 64
    %v694 = vld [vmem:[%s693] sm:%s647]
    %s695 = sshllo.u32 0, 4
    %s696 = smul.addr 4, 8
    %s697 = scalar_lea.vmem %s1, %s696
    %698 = vst [vmem:[%s697] sm:%s695] %v694
    %s699 = scalar_lea.vmem [#allocation0], 72
    %v700 = vld [vmem:[%s699] sm:%s647]
    %s701 = sshllo.u32 0, 4
    %s702 = smul.addr 4, 9
    %s703 = scalar_lea.vmem %s1, %s702
    %704 = vst [vmem:[%s703] sm:%s701] %v700
    %s705 = scalar_lea.vmem [#allocation0], 80
    %v706 = vld [vmem:[%s705] sm:%s647]
    %s707 = sshllo.u32 0, 4
    %s708 = smul.addr 4, 10
    %s709 = scalar_lea.vmem %s1, %s708
    %710 = vst [vmem:[%s709] sm:%s707] %v706
    %s711 = scalar_lea.vmem [#allocation0], 88
    %v712 = vld [vmem:[%s711] sm:%s647]
    %s713 = sshllo.u32 0, 4
    %s714 = smul.addr 4, 11
    %s715 = scalar_lea.vmem %s1, %s714
    %716 = vst [vmem:[%s715] sm:%s713] %v712
    %s717 = scalar_lea.vmem [#allocation0], 96
    %v718 = vld [vmem:[%s717] sm:%s647]
    %s719 = sshllo.u32 0, 4
    %s720 = smul.addr 4, 12
    %s721 = scalar_lea.vmem %s1, %s720
    %722 = vst [vmem:[%s721] sm:%s719] %v718
    %s723 = scalar_lea.vmem [#allocation0], 104
    %v724 = vld [vmem:[%s723] sm:%s647]
    %s725 = sshllo.u32 0, 4
    %s726 = smul.addr 4, 13
    %s727 = scalar_lea.vmem %s1, %s726
    %728 = vst [vmem:[%s727] sm:%s725] %v724
    %s729 = scalar_lea.vmem [#allocation0], 112
    %v730 = vld [vmem:[%s729] sm:%s647]
    %s731 = sshllo.u32 0, 4
    %s732 = smul.addr 4, 14
    %s733 = scalar_lea.vmem %s1, %s732
    %734 = vst [vmem:[%s733] sm:%s731] %v730
    %s735 = scalar_lea.vmem [#allocation0], 120
    %v736 = vld [vmem:[%s735] sm:%s647]
    %s737 = sshllo.u32 0, 4
    %s738 = smul.addr 4, 15
    %s739 = scalar_lea.vmem %s1, %s738
    %740 = vst [vmem:[%s739] sm:%s737] %v736
    %s741 = scalar_lea.vmem [#allocation0], 128
    %v742 = vld [vmem:[%s741] sm:%s647]
    %s743 = sshllo.u32 0, 4
    %s744 = smul.addr 4, 16
    %s745 = scalar_lea.vmem %s1, %s744
    %746 = vst [vmem:[%s745] sm:%s743] %v742
    %s747 = scalar_lea.vmem [#allocation0], 136
    %v748 = vld [vmem:[%s747] sm:%s647]
    %s749 = sshllo.u32 0, 4
    %s750 = smul.addr 4, 17
    %s751 = scalar_lea.vmem %s1, %s750
    %752 = vst [vmem:[%s751] sm:%s749] %v748
    %s753 = scalar_lea.vmem [#allocation0], 144
    %v754 = vld [vmem:[%s753] sm:%s647]
    %s755 = sshllo.u32 0, 4
    %s756 = smul.addr 4, 18
    %s757 = scalar_lea.vmem %s1, %s756
    %758 = vst [vmem:[%s757] sm:%s755] %v754
    %s759 = scalar_lea.vmem [#allocation0], 152
    %v760 = vld [vmem:[%s759] sm:%s647]
    %s761 = sshllo.u32 0, 4
    %s762 = smul.addr 4, 19
    %s763 = scalar_lea.vmem %s1, %s762
    %764 = vst [vmem:[%s763] sm:%s761] %v760
    %s765 = scalar_lea.vmem [#allocation0], 160
    %v766 = vld [vmem:[%s765] sm:%s647]
    %s767 = sshllo.u32 0, 4
    %s768 = smul.addr 4, 20
    %s769 = scalar_lea.vmem %s1, %s768
    %770 = vst [vmem:[%s769] sm:%s767] %v766
    %s771 = scalar_lea.vmem [#allocation0], 168
    %v772 = vld [vmem:[%s771] sm:%s647]
    %s773 = sshllo.u32 0, 4
    %s774 = smul.addr 4, 21
    %s775 = scalar_lea.vmem %s1, %s774
    %776 = vst [vmem:[%s775] sm:%s773] %v772
    %s777 = scalar_lea.vmem [#allocation0], 176
    %v778 = vld [vmem:[%s777] sm:%s647]
    %s779 = sshllo.u32 0, 4
    %s780 = smul.addr 4, 22
    %s781 = scalar_lea.vmem %s1, %s780
    %782 = vst [vmem:[%s781] sm:%s779] %v778
    %s783 = scalar_lea.vmem [#allocation0], 184
    %v784 = vld [vmem:[%s783] sm:%s647]
    %s785 = sshllo.u32 0, 4
    %s786 = smul.addr 4, 23
    %s787 = scalar_lea.vmem %s1, %s786
    %788 = vst [vmem:[%s787] sm:%s785] %v784
    %s789 = scalar_lea.vmem [#allocation0], 192
    %v790 = vld [vmem:[%s789] sm:%s647]
    %s791 = sshllo.u32 0, 4
    %s792 = smul.addr 4, 24
    %s793 = scalar_lea.vmem %s1, %s792
    %794 = vst [vmem:[%s793] sm:%s791] %v790
    %s795 = scalar_lea.vmem [#allocation0], 200
    %v796 = vld [vmem:[%s795] sm:%s647]
    %s797 = sshllo.u32 0, 4
    %s798 = smul.addr 4, 25
    %s799 = scalar_lea.vmem %s1, %s798
    %800 = vst [vmem:[%s799] sm:%s797] %v796
    %s801 = scalar_lea.vmem [#allocation0], 208
    %v802 = vld [vmem:[%s801] sm:%s647]
    %s803 = sshllo.u32 0, 4
    %s804 = smul.addr 4, 26
    %s805 = scalar_lea.vmem %s1, %s804
    %806 = vst [vmem:[%s805] sm:%s803] %v802
    %s807 = scalar_lea.vmem [#allocation0], 216
    %v808 = vld [vmem:[%s807] sm:%s647]
    %s809 = sshllo.u32 0, 4
    %s810 = smul.addr 4, 27
    %s811 = scalar_lea.vmem %s1, %s810
    %812 = vst [vmem:[%s811] sm:%s809] %v808
    %s813 = scalar_lea.vmem [#allocation0], 224
    %v814 = vld [vmem:[%s813] sm:%s647]
    %s815 = sshllo.u32 0, 4
    %s816 = smul.addr 4, 28
    %s817 = scalar_lea.vmem %s1, %s816
    %818 = vst [vmem:[%s817] sm:%s815] %v814
    %s819 = scalar_lea.vmem [#allocation0], 232
    %v820 = vld [vmem:[%s819] sm:%s647]
    %s821 = sshllo.u32 0, 4
    %s822 = smul.addr 4, 29
    %s823 = scalar_lea.vmem %s1, %s822
    %824 = vst [vmem:[%s823] sm:%s821] %v820
    %s825 = scalar_lea.vmem [#allocation0], 240
    %v826 = vld [vmem:[%s825] sm:%s647]
    %s827 = sshllo.u32 0, 4
    %s828 = smul.addr 4, 30
    %s829 = scalar_lea.vmem %s1, %s828
    %830 = vst [vmem:[%s829] sm:%s827] %v826
    %s831 = scalar_lea.vmem [#allocation0], 248
    %v832 = vld [vmem:[%s831] sm:%s647]
    %s833 = sshllo.u32 0, 4
    %s834 = smul.addr 4, 31
    %s835 = scalar_lea.vmem %s1, %s834
    %836 = vst [vmem:[%s835] sm:%s833] %v832

// kernel: squeeze.5
$region0: #{squeeze.5}
  %s0 = inlined_call_operand.vmem [shape: f32[288], index: 0, kind: input, shape index: {}]
  %s1 = inlined_call_operand.vmem [shape: f32[4,8,3,3], index: 1, kind: output, shape index: {}]
  $region1: #{squeeze.5} parent=0
    #allocation0 [shape = 'u8[131072]{0}', space=vmem, size = 0x20000, scoped, tag = 'scoped mem for output reshape']
    #allocation1 [shape = 'u8[4096]{0}', space=vmem, size = 0x1000, scoped, tag = 'scoped mem for input reshape']
    %s3 = sshllo.u32 0, 4
    %v4 = vld [vmem:[%s0] sm:%s3]
    %5 = vst [vmem:[#allocation1] sm:%s3] %v4
    %v6 = vld [vmem:[#allocation1] sm:$0x1]
    %vm7 = vcmask 23552
    %8 = vst.msk [vmem:[#allocation0] sm:$0x1] %vm7, %v6
    %s9 = scalar_lea.vmem [#allocation1], 1
    %v10 = vld [vmem:[%s9] sm:$0x1]
    %11 = vrot.lane.b32.xlu0 %v10, 127
    %v12 = vpop.permute.xlu0 %11
    %vm13 = vcmask 23552
    %s14 = scalar_lea.vmem [#allocation0], 113
    %15 = vst.msk [vmem:[%s14] sm:$0x1] %vm13, %v12
    %s16 = scalar_lea.vmem [#allocation1], 2
    %v17 = vld [vmem:[%s16] sm:$0x1]
    %18 = vrot.lane.b32.xlu0 %v17, 126
    %v19 = vpop.permute.xlu0 %18
    %vm20 = vcmask 23552
    %s21 = scalar_lea.vmem [#allocation0], 226
    %22 = vst.msk [vmem:[%s21] sm:$0x1] %vm20, %v19
    %v23 = vld [vmem:[#allocation1] sm:$0x1]
    %24 = vrot.lane.b32.xlu0 %v23, 125
    %v25 = vpop.permute.xlu0 %24
    %vm26 = vcmask 23552
    %s27 = scalar_lea.vmem [#allocation0], 1
    %28 = vst.msk [vmem:[%s27] sm:$0x1] %vm26, %v25
    %s29 = scalar_lea.vmem [#allocation1], 1
    %v30 = vld [vmem:[%s29] sm:$0x1]
    %31 = vrot.lane.b32.xlu0 %v30, 124
    %v32 = vpop.permute.xlu0 %31
    %vm33 = vcmask 23552
    %s34 = scalar_lea.vmem [#allocation0], 114
    %35 = vst.msk [vmem:[%s34] sm:$0x1] %vm33, %v32
    %s36 = scalar_lea.vmem [#allocation1], 2
    %v37 = vld [vmem:[%s36] sm:$0x1]
    %38 = vrot.lane.b32.xlu0 %v37, 123
    %v39 = vpop.permute.xlu0 %38
    %vm40 = vcmask 23552
    %s41 = scalar_lea.vmem [#allocation0], 232
    %42 = vst.msk [vmem:[%s41] sm:$0x1] %vm40, %v39
    %v43 = vld [vmem:[#allocation1] sm:$0x1]
    %44 = vrot.lane.b32.xlu0 %v43, 122
    %v45 = vpop.permute.xlu0 %44
    %vm46 = vcmask 23552
    %s47 = scalar_lea.vmem [#allocation0], 2
    %48 = vst.msk [vmem:[%s47] sm:$0x1] %vm46, %v45
    %s49 = scalar_lea.vmem [#allocation1], 1
    %v50 = vld [vmem:[%s49] sm:$0x1]
    %51 = vrot.lane.b32.xlu0 %v50, 121
    %v52 = vpop.permute.xlu0 %51
    %vm53 = vcmask 23552
    %s54 = scalar_lea.vmem [#allocation0], 120
    %55 = vst.msk [vmem:[%s54] sm:$0x1] %vm53, %v52
    %s56 = scalar_lea.vmem [#allocation1], 2
    %v57 = vld [vmem:[%s56] sm:$0x1]
    %58 = vrot.lane.b32.xlu0 %v57, 120
    %v59 = vpop.permute.xlu0 %58
    %vm60 = vcmask 23552
    %s61 = scalar_lea.vmem [#allocation0], 233
    %62 = vst.msk [vmem:[%s61] sm:$0x1] %vm60, %v59
    %v63 = vld [vmem:[#allocation1] sm:$0x1]
    %64 = vrot.lane.b32.xlu0 %v63, 119
    %v65 = vpop.permute.xlu0 %64
    %vm66 = vcmask 23552
    %s67 = scalar_lea.vmem [#allocation0], 8
    %68 = vst.msk [vmem:[%s67] sm:$0x1] %vm66, %v65
    %s69 = scalar_lea.vmem [#allocation1], 1
    %v70 = vld [vmem:[%s69] sm:$0x1]
    %71 = vrot.lane.b32.xlu0 %v70, 118
    %v72 = vpop.permute.xlu0 %71
    %vm73 = vcmask 23552
    %s74 = scalar_lea.vmem [#allocation0], 121
    %75 = vst.msk [vmem:[%s74] sm:$0x1] %vm73, %v72
    %s76 = scalar_lea.vmem [#allocation1], 2
    %v77 = vld [vmem:[%s76] sm:$0x1]
    %78 = vrot.lane.b32.xlu0 %v77, 117
    %v79 = vpop.permute.xlu0 %78
    %vm80 = vcmask 23552
    %s81 = scalar_lea.vmem [#allocation0], 234
    %82 = vst.msk [vmem:[%s81] sm:$0x1] %vm80, %v79
    %v83 = vld [vmem:[#allocation1] sm:$0x1]
    %84 = vrot.lane.b32.xlu0 %v83, 116
    %v85 = vpop.permute.xlu0 %84
    %vm86 = vcmask 23552
    %s87 = scalar_lea.vmem [#allocation0], 9
    %88 = vst.msk [vmem:[%s87] sm:$0x1] %vm86, %v85
    %s89 = scalar_lea.vmem [#allocation1], 1
    %v90 = vld [vmem:[%s89] sm:$0x1]
    %91 = vrot.lane.b32.xlu0 %v90, 115
    %v92 = vpop.permute.xlu0 %91
    %vm93 = vcmask 23552
    %s94 = scalar_lea.vmem [#allocation0], 122
    %95 = vst.msk [vmem:[%s94] sm:$0x1] %vm93, %v92
    %s96 = scalar_lea.vmem [#allocation1], 2
    %v97 = vld [vmem:[%s96] sm:$0x1]
    %98 = vrot.lane.b32.xlu0 %v97, 114
    %v99 = vpop.permute.xlu0 %98
    %vm100 = vcmask 23552
    %s101 = scalar_lea.vmem [#allocation0], 240
    %102 = vst.msk [vmem:[%s101] sm:$0x1] %vm100, %v99
    %v103 = vld [vmem:[#allocation1] sm:$0x1]
    %104 = vrot.lane.b32.xlu0 %v103, 113
    %v105 = vpop.permute.xlu0 %104
    %vm106 = vcmask 23552
    %s107 = scalar_lea.vmem [#allocation0], 10
    %108 = vst.msk [vmem:[%s107] sm:$0x1] %vm106, %v105
    %s109 = scalar_lea.vmem [#allocation1], 1
    %v110 = vld [vmem:[%s109] sm:$0x1]
    %111 = vrot.lane.b32.xlu0 %v110, 112
    %v112 = vpop.permute.xlu0 %111
    %vm113 = vcmask 23552
    %s114 = scalar_lea.vmem [#allocation0], 128
    %115 = vst.msk [vmem:[%s114] sm:$0x1] %vm113, %v112
    %s116 = scalar_lea.vmem [#allocation1], 2
    %v117 = vld [vmem:[%s116] sm:$0x1]
    %118 = vrot.lane.b32.xlu0 %v117, 111
    %v119 = vpop.permute.xlu0 %118
    %vm120 = vcmask 23552
    %s121 = scalar_lea.vmem [#allocation0], 241
    %122 = vst.msk [vmem:[%s121] sm:$0x1] %vm120, %v119
    %v123 = vld [vmem:[#allocation1] sm:$0x1]
    %124 = vrot.lane.b32.xlu0 %v123, 110
    %v125 = vpop.permute.xlu0 %124
    %vm126 = vcmask 23552
    %s127 = scalar_lea.vmem [#allocation0], 16
    %128 = vst.msk [vmem:[%s127] sm:$0x1] %vm126, %v125
    %s129 = scalar_lea.vmem [#allocation1], 1
    %v130 = vld [vmem:[%s129] sm:$0x1]
    %131 = vrot.lane.b32.xlu0 %v130, 109
    %v132 = vpop.permute.xlu0 %131
    %vm133 = vcmask 23552
    %s134 = scalar_lea.vmem [#allocation0], 129
    %135 = vst.msk [vmem:[%s134] sm:$0x1] %vm133, %v132
    %s136 = scalar_lea.vmem [#allocation1], 2
    %v137 = vld [vmem:[%s136] sm:$0x1]
    %138 = vrot.lane.b32.xlu0 %v137, 108
    %v139 = vpop.permute.xlu0 %138
    %vm140 = vcmask 23552
    %s141 = scalar_lea.vmem [#allocation0], 242
    %142 = vst.msk [vmem:[%s141] sm:$0x1] %vm140, %v139
    %v143 = vld [vmem:[#allocation1] sm:$0x1]
    %144 = vrot.lane.b32.xlu0 %v143, 107
    %v145 = vpop.permute.xlu0 %144
    %vm146 = vcmask 23552
    %s147 = scalar_lea.vmem [#allocation0], 17
    %148 = vst.msk [vmem:[%s147] sm:$0x1] %vm146, %v145
    %s149 = scalar_lea.vmem [#allocation1], 1
    %v150 = vld [vmem:[%s149] sm:$0x1]
    %151 = vrot.lane.b32.xlu0 %v150, 106
    %v152 = vpop.permute.xlu0 %151
    %vm153 = vcmask 23552
    %s154 = scalar_lea.vmem [#allocation0], 130
    %155 = vst.msk [vmem:[%s154] sm:$0x1] %vm153, %v152
    %s156 = scalar_lea.vmem [#allocation1], 2
    %v157 = vld [vmem:[%s156] sm:$0x1]
    %158 = vrot.lane.b32.xlu0 %v157, 105
    %v159 = vpop.permute.xlu0 %158
    %vm160 = vcmask 23552
    %s161 = scalar_lea.vmem [#allocation0], 248
    %162 = vst.msk [vmem:[%s161] sm:$0x1] %vm160, %v159
    %v163 = vld [vmem:[#allocation1] sm:$0x1]
    %164 = vrot.lane.b32.xlu0 %v163, 104
    %v165 = vpop.permute.xlu0 %164
    %vm166 = vcmask 23552
    %s167 = scalar_lea.vmem [#allocation0], 18
    %168 = vst.msk [vmem:[%s167] sm:$0x1] %vm166, %v165
    %s169 = scalar_lea.vmem [#allocation1], 1
    %v170 = vld [vmem:[%s169] sm:$0x1]
    %171 = vrot.lane.b32.xlu0 %v170, 103
    %v172 = vpop.permute.xlu0 %171
    %vm173 = vcmask 23552
    %s174 = scalar_lea.vmem [#allocation0], 136
    %175 = vst.msk [vmem:[%s174] sm:$0x1] %vm173, %v172
    %s176 = scalar_lea.vmem [#allocation1], 2
    %v177 = vld [vmem:[%s176] sm:$0x1]
    %178 = vrot.lane.b32.xlu0 %v177, 102
    %v179 = vpop.permute.xlu0 %178
    %vm180 = vcmask 23552
    %s181 = scalar_lea.vmem [#allocation0], 249
    %182 = vst.msk [vmem:[%s181] sm:$0x1] %vm180, %v179
    %v183 = vld [vmem:[#allocation1] sm:$0x1]
    %184 = vrot.lane.b32.xlu0 %v183, 101
    %v185 = vpop.permute.xlu0 %184
    %vm186 = vcmask 23552
    %s187 = scalar_lea.vmem [#allocation0], 24
    %188 = vst.msk [vmem:[%s187] sm:$0x1] %vm186, %v185
    %s189 = scalar_lea.vmem [#allocation1], 1
    %v190 = vld [vmem:[%s189] sm:$0x1]
    %191 = vrot.lane.b32.xlu0 %v190, 100
    %v192 = vpop.permute.xlu0 %191
    %vm193 = vcmask 23552
    %s194 = scalar_lea.vmem [#allocation0], 137
    %195 = vst.msk [vmem:[%s194] sm:$0x1] %vm193, %v192
    %s196 = scalar_lea.vmem [#allocation1], 2
    %v197 = vld [vmem:[%s196] sm:$0x1]
    %198 = vrot.lane.b32.xlu0 %v197, 99
    %v199 = vpop.permute.xlu0 %198
    %vm200 = vcmask 23552
    %s201 = scalar_lea.vmem [#allocation0], 250
    %202 = vst.msk [vmem:[%s201] sm:$0x1] %vm200, %v199
    %v203 = vld [vmem:[#allocation1] sm:$0x1]
    %204 = vrot.lane.b32.xlu0 %v203, 98
    %v205 = vpop.permute.xlu0 %204
    %vm206 = vcmask 23552
    %s207 = scalar_lea.vmem [#allocation0], 25
    %208 = vst.msk [vmem:[%s207] sm:$0x1] %vm206, %v205
    %s209 = scalar_lea.vmem [#allocation1], 1
    %v210 = vld [vmem:[%s209] sm:$0x1]
    %211 = vrot.lane.b32.xlu0 %v210, 97
    %v212 = vpop.permute.xlu0 %211
    %vm213 = vcmask 23552
    %s214 = scalar_lea.vmem [#allocation0], 138
    %215 = vst.msk [vmem:[%s214] sm:$0x1] %vm213, %v212
    %v216 = vld [vmem:[#allocation1] sm:$0x1]
    %217 = vrot.lane.b32.xlu0 %v216, 95
    %v218 = vpop.permute.xlu0 %217
    %vm219 = vcmask 23552
    %s220 = scalar_lea.vmem [#allocation0], 26
    %221 = vst.msk [vmem:[%s220] sm:$0x1] %vm219, %v218
    %s222 = scalar_lea.vmem [#allocation1], 1
    %v223 = vld [vmem:[%s222] sm:$0x1]
    %224 = vrot.lane.b32.xlu0 %v223, 94
    %v225 = vpop.permute.xlu0 %224
    %vm226 = vcmask 23552
    %s227 = scalar_lea.vmem [#allocation0], 144
    %228 = vst.msk [vmem:[%s227] sm:$0x1] %vm226, %v225
    %v229 = vld [vmem:[#allocation1] sm:$0x1]
    %230 = vrot.lane.b32.xlu0 %v229, 92
    %v231 = vpop.permute.xlu0 %230
    %vm232 = vcmask 23552
    %s233 = scalar_lea.vmem [#allocation0], 32
    %234 = vst.msk [vmem:[%s233] sm:$0x1] %vm232, %v231
    %s235 = scalar_lea.vmem [#allocation1], 1
    %v236 = vld [vmem:[%s235] sm:$0x1]
    %237 = vrot.lane.b32.xlu0 %v236, 91
    %v238 = vpop.permute.xlu0 %237
    %vm239 = vcmask 23552
    %s240 = scalar_lea.vmem [#allocation0], 145
    %241 = vst.msk [vmem:[%s240] sm:$0x1] %vm239, %v238
    %v242 = vld [vmem:[#allocation1] sm:$0x1]
    %243 = vrot.lane.b32.xlu0 %v242, 89
    %v244 = vpop.permute.xlu0 %243
    %vm245 = vcmask 23552
    %s246 = scalar_lea.vmem [#allocation0], 33
    %247 = vst.msk [vmem:[%s246] sm:$0x1] %vm245, %v244
    %s248 = scalar_lea.vmem [#allocation1], 1
    %v249 = vld [vmem:[%s248] sm:$0x1]
    %250 = vrot.lane.b32.xlu0 %v249, 88
    %v251 = vpop.permute.xlu0 %250
    %vm252 = vcmask 23552
    %s253 = scalar_lea.vmem [#allocation0], 146
    %254 = vst.msk [vmem:[%s253] sm:$0x1] %vm252, %v251
    %v255 = vld [vmem:[#allocation1] sm:$0x1]
    %256 = vrot.lane.b32.xlu0 %v255, 86
    %v257 = vpop.permute.xlu0 %256
    %vm258 = vcmask 23552
    %s259 = scalar_lea.vmem [#allocation0], 34
    %260 = vst.msk [vmem:[%s259] sm:$0x1] %vm258, %v257
    %s261 = scalar_lea.vmem [#allocation1], 1
    %v262 = vld [vmem:[%s261] sm:$0x1]
    %263 = vrot.lane.b32.xlu0 %v262, 85
    %v264 = vpop.permute.xlu0 %263
    %vm265 = vcmask 23552
    %s266 = scalar_lea.vmem [#allocation0], 152
    %267 = vst.msk [vmem:[%s266] sm:$0x1] %vm265, %v264
    %v268 = vld [vmem:[#allocation1] sm:$0x1]
    %269 = vrot.lane.b32.xlu0 %v268, 83
    %v270 = vpop.permute.xlu0 %269
    %vm271 = vcmask 23552
    %s272 = scalar_lea.vmem [#allocation0], 40
    %273 = vst.msk [vmem:[%s272] sm:$0x1] %vm271, %v270
    %s274 = scalar_lea.vmem [#allocation1], 1
    %v275 = vld [vmem:[%s274] sm:$0x1]
    %276 = vrot.lane.b32.xlu0 %v275, 82
    %v277 = vpop.permute.xlu0 %276
    %vm278 = vcmask 23552
    %s279 = scalar_lea.vmem [#allocation0], 153
    %280 = vst.msk [vmem:[%s279] sm:$0x1] %vm278, %v277
    %v281 = vld [vmem:[#allocation1] sm:$0x1]
    %282 = vrot.lane.b32.xlu0 %v281, 80
    %v283 = vpop.permute.xlu0 %282
    %vm284 = vcmask 23552
    %s285 = scalar_lea.vmem [#allocation0], 41
    %286 = vst.msk [vmem:[%s285] sm:$0x1] %vm284, %v283
    %s287 = scalar_lea.vmem [#allocation1], 1
    %v288 = vld [vmem:[%s287] sm:$0x1]
    %289 = vrot.lane.b32.xlu0 %v288, 79
    %v290 = vpop.permute.xlu0 %289
    %vm291 = vcmask 23552
    %s292 = scalar_lea.vmem [#allocation0], 154
    %293 = vst.msk [vmem:[%s292] sm:$0x1] %vm291, %v290
    %v294 = vld [vmem:[#allocation1] sm:$0x1]
    %295 = vrot.lane.b32.xlu0 %v294, 77
    %v296 = vpop.permute.xlu0 %295
    %vm297 = vcmask 23552
    %s298 = scalar_lea.vmem [#allocation0], 42
    %299 = vst.msk [vmem:[%s298] sm:$0x1] %vm297, %v296
    %s300 = scalar_lea.vmem [#allocation1], 1
    %v301 = vld [vmem:[%s300] sm:$0x1]
    %302 = vrot.lane.b32.xlu0 %v301, 76
    %v303 = vpop.permute.xlu0 %302
    %vm304 = vcmask 23552
    %s305 = scalar_lea.vmem [#allocation0], 160
    %306 = vst.msk [vmem:[%s305] sm:$0x1] %vm304, %v303
    %v307 = vld [vmem:[#allocation1] sm:$0x1]
    %308 = vrot.lane.b32.xlu0 %v307, 74
    %v309 = vpop.permute.xlu0 %308
    %vm310 = vcmask 23552
    %s311 = scalar_lea.vmem [#allocation0], 48
    %312 = vst.msk [vmem:[%s311] sm:$0x1] %vm310, %v309
    %s313 = scalar_lea.vmem [#allocation1], 1
    %v314 = vld [vmem:[%s313] sm:$0x1]
    %315 = vrot.lane.b32.xlu0 %v314, 73
    %v316 = vpop.permute.xlu0 %315
    %vm317 = vcmask 23552
    %s318 = scalar_lea.vmem [#allocation0], 161
    %319 = vst.msk [vmem:[%s318] sm:$0x1] %vm317, %v316
    %v320 = vld [vmem:[#allocation1] sm:$0x1]
    %321 = vrot.lane.b32.xlu0 %v320, 71
    %v322 = vpop.permute.xlu0 %321
    %vm323 = vcmask 23552
    %s324 = scalar_lea.vmem [#allocation0], 49
    %325 = vst.msk [vmem:[%s324] sm:$0x1] %vm323, %v322
    %s326 = scalar_lea.vmem [#allocation1], 1
    %v327 = vld [vmem:[%s326] sm:$0x1]
    %328 = vrot.lane.b32.xlu0 %v327, 70
    %v329 = vpop.permute.xlu0 %328
    %vm330 = vcmask 23552
    %s331 = scalar_lea.vmem [#allocation0], 162
    %332 = vst.msk [vmem:[%s331] sm:$0x1] %vm330, %v329
    %v333 = vld [vmem:[#allocation1] sm:$0x1]
    %334 = vrot.lane.b32.xlu0 %v333, 68
    %v335 = vpop.permute.xlu0 %334
    %vm336 = vcmask 23552
    %s337 = scalar_lea.vmem [#allocation0], 50
    %338 = vst.msk [vmem:[%s337] sm:$0x1] %vm336, %v335
    %s339 = scalar_lea.vmem [#allocation1], 1
    %v340 = vld [vmem:[%s339] sm:$0x1]
    %341 = vrot.lane.b32.xlu0 %v340, 67
    %v342 = vpop.permute.xlu0 %341
    %vm343 = vcmask 23552
    %s344 = scalar_lea.vmem [#allocation0], 168
    %345 = vst.msk [vmem:[%s344] sm:$0x1] %vm343, %v342
    %v346 = vld [vmem:[#allocation1] sm:$0x1]
    %347 = vrot.lane.b32.xlu0 %v346, 65
    %v348 = vpop.permute.xlu0 %347
    %vm349 = vcmask 23552
    %s350 = scalar_lea.vmem [#allocation0], 56
    %351 = vst.msk [vmem:[%s350] sm:$0x1] %vm349, %v348
    %s352 = scalar_lea.vmem [#allocation1], 1
    %v353 = vld [vmem:[%s352] sm:$0x1]
    %354 = vrot.lane.b32.xlu0 %v353, 64
    %v355 = vpop.permute.xlu0 %354
    %vm356 = vcmask 23552
    %s357 = scalar_lea.vmem [#allocation0], 169
    %358 = vst.msk [vmem:[%s357] sm:$0x1] %vm356, %v355
    %v359 = vld [vmem:[#allocation1] sm:$0x1]
    %360 = vrot.lane.b32.xlu0 %v359, 62
    %v361 = vpop.permute.xlu0 %360
    %vm362 = vcmask 23552
    %s363 = scalar_lea.vmem [#allocation0], 57
    %364 = vst.msk [vmem:[%s363] sm:$0x1] %vm362, %v361
    %s365 = scalar_lea.vmem [#allocation1], 1
    %v366 = vld [vmem:[%s365] sm:$0x1]
    %367 = vrot.lane.b32.xlu0 %v366, 61
    %v368 = vpop.permute.xlu0 %367
    %vm369 = vcmask 23552
    %s370 = scalar_lea.vmem [#allocation0], 170
    %371 = vst.msk [vmem:[%s370] sm:$0x1] %vm369, %v368
    %v372 = vld [vmem:[#allocation1] sm:$0x1]
    %373 = vrot.lane.b32.xlu0 %v372, 59
    %v374 = vpop.permute.xlu0 %373
    %vm375 = vcmask 23552
    %s376 = scalar_lea.vmem [#allocation0], 58
    %377 = vst.msk [vmem:[%s376] sm:$0x1] %vm375, %v374
    %s378 = scalar_lea.vmem [#allocation1], 1
    %v379 = vld [vmem:[%s378] sm:$0x1]
    %380 = vrot.lane.b32.xlu0 %v379, 58
    %v381 = vpop.permute.xlu0 %380
    %vm382 = vcmask 23552
    %s383 = scalar_lea.vmem [#allocation0], 176
    %384 = vst.msk [vmem:[%s383] sm:$0x1] %vm382, %v381
    %v385 = vld [vmem:[#allocation1] sm:$0x1]
    %386 = vrot.lane.b32.xlu0 %v385, 56
    %v387 = vpop.permute.xlu0 %386
    %vm388 = vcmask 23552
    %s389 = scalar_lea.vmem [#allocation0], 64
    %390 = vst.msk [vmem:[%s389] sm:$0x1] %vm388, %v387
    %s391 = scalar_lea.vmem [#allocation1], 1
    %v392 = vld [vmem:[%s391] sm:$0x1]
    %393 = vrot.lane.b32.xlu0 %v392, 55
    %v394 = vpop.permute.xlu0 %393
    %vm395 = vcmask 23552
    %s396 = scalar_lea.vmem [#allocation0], 177
    %397 = vst.msk [vmem:[%s396] sm:$0x1] %vm395, %v394
    %v398 = vld [vmem:[#allocation1] sm:$0x1]
    %399 = vrot.lane.b32.xlu0 %v398, 53
    %v400 = vpop.permute.xlu0 %399
    %vm401 = vcmask 23552
    %s402 = scalar_lea.vmem [#allocation0], 65
    %403 = vst.msk [vmem:[%s402] sm:$0x1] %vm401, %v400
    %s404 = scalar_lea.vmem [#allocation1], 1
    %v405 = vld [vmem:[%s404] sm:$0x1]
    %406 = vrot.lane.b32.xlu0 %v405, 52
    %v407 = vpop.permute.xlu0 %406
    %vm408 = vcmask 23552
    %s409 = scalar_lea.vmem [#allocation0], 178
    %410 = vst.msk [vmem:[%s409] sm:$0x1] %vm408, %v407
    %v411 = vld [vmem:[#allocation1] sm:$0x1]
    %412 = vrot.lane.b32.xlu0 %v411, 50
    %v413 = vpop.permute.xlu0 %412
    %vm414 = vcmask 23552
    %s415 = scalar_lea.vmem [#allocation0], 66
    %416 = vst.msk [vmem:[%s415] sm:$0x1] %vm414, %v413
    %s417 = scalar_lea.vmem [#allocation1], 1
    %v418 = vld [vmem:[%s417] sm:$0x1]
    %419 = vrot.lane.b32.xlu0 %v418, 49
    %v420 = vpop.permute.xlu0 %419
    %vm421 = vcmask 23552
    %s422 = scalar_lea.vmem [#allocation0], 184
    %423 = vst.msk [vmem:[%s422] sm:$0x1] %vm421, %v420
    %v424 = vld [vmem:[#allocation1] sm:$0x1]
    %425 = vrot.lane.b32.xlu0 %v424, 47
    %v426 = vpop.permute.xlu0 %425
    %vm427 = vcmask 23552
    %s428 = scalar_lea.vmem [#allocation0], 72
    %429 = vst.msk [vmem:[%s428] sm:$0x1] %vm427, %v426
    %s430 = scalar_lea.vmem [#allocation1], 1
    %v431 = vld [vmem:[%s430] sm:$0x1]
    %432 = vrot.lane.b32.xlu0 %v431, 46
    %v433 = vpop.permute.xlu0 %432
    %vm434 = vcmask 23552
    %s435 = scalar_lea.vmem [#allocation0], 185
    %436 = vst.msk [vmem:[%s435] sm:$0x1] %vm434, %v433
    %v437 = vld [vmem:[#allocation1] sm:$0x1]
    %438 = vrot.lane.b32.xlu0 %v437, 44
    %v439 = vpop.permute.xlu0 %438
    %vm440 = vcmask 23552
    %s441 = scalar_lea.vmem [#allocation0], 73
    %442 = vst.msk [vmem:[%s441] sm:$0x1] %vm440, %v439
    %s443 = scalar_lea.vmem [#allocation1], 1
    %v444 = vld [vmem:[%s443] sm:$0x1]
    %445 = vrot.lane.b32.xlu0 %v444, 43
    %v446 = vpop.permute.xlu0 %445
    %vm447 = vcmask 23552
    %s448 = scalar_lea.vmem [#allocation0], 186
    %449 = vst.msk [vmem:[%s448] sm:$0x1] %vm447, %v446
    %v450 = vld [vmem:[#allocation1] sm:$0x1]
    %451 = vrot.lane.b32.xlu0 %v450, 41
    %v452 = vpop.permute.xlu0 %451
    %vm453 = vcmask 23552
    %s454 = scalar_lea.vmem [#allocation0], 74
    %455 = vst.msk [vmem:[%s454] sm:$0x1] %vm453, %v452
    %s456 = scalar_lea.vmem [#allocation1], 1
    %v457 = vld [vmem:[%s456] sm:$0x1]
    %458 = vrot.lane.b32.xlu0 %v457, 40
    %v459 = vpop.permute.xlu0 %458
    %vm460 = vcmask 23552
    %s461 = scalar_lea.vmem [#allocation0], 192
    %462 = vst.msk [vmem:[%s461] sm:$0x1] %vm460, %v459
    %v463 = vld [vmem:[#allocation1] sm:$0x1]
    %464 = vrot.lane.b32.xlu0 %v463, 38
    %v465 = vpop.permute.xlu0 %464
    %vm466 = vcmask 23552
    %s467 = scalar_lea.vmem [#allocation0], 80
    %468 = vst.msk [vmem:[%s467] sm:$0x1] %vm466, %v465
    %s469 = scalar_lea.vmem [#allocation1], 1
    %v470 = vld [vmem:[%s469] sm:$0x1]
    %471 = vrot.lane.b32.xlu0 %v470, 37
    %v472 = vpop.permute.xlu0 %471
    %vm473 = vcmask 23552
    %s474 = scalar_lea.vmem [#allocation0], 193
    %475 = vst.msk [vmem:[%s474] sm:$0x1] %vm473, %v472
    %v476 = vld [vmem:[#allocation1] sm:$0x1]
    %477 = vrot.lane.b32.xlu0 %v476, 35
    %v478 = vpop.permute.xlu0 %477
    %vm479 = vcmask 23552
    %s480 = scalar_lea.vmem [#allocation0], 81
    %481 = vst.msk [vmem:[%s480] sm:$0x1] %vm479, %v478
    %s482 = scalar_lea.vmem [#allocation1], 1
    %v483 = vld [vmem:[%s482] sm:$0x1]
    %484 = vrot.lane.b32.xlu0 %v483, 34
    %v485 = vpop.permute.xlu0 %484
    %vm486 = vcmask 23552
    %s487 = scalar_lea.vmem [#allocation0], 194
    %488 = vst.msk [vmem:[%s487] sm:$0x1] %vm486, %v485
    %v489 = vld [vmem:[#allocation1] sm:$0x1]
    %490 = vrot.lane.b32.xlu0 %v489, 32
    %v491 = vpop.permute.xlu0 %490
    %vm492 = vcmask 23552
    %s493 = scalar_lea.vmem [#allocation0], 82
    %494 = vst.msk [vmem:[%s493] sm:$0x1] %vm492, %v491
    %s495 = scalar_lea.vmem [#allocation1], 1
    %v496 = vld [vmem:[%s495] sm:$0x1]
    %497 = vrot.lane.b32.xlu0 %v496, 31
    %v498 = vpop.permute.xlu0 %497
    %vm499 = vcmask 23552
    %s500 = scalar_lea.vmem [#allocation0], 200
    %501 = vst.msk [vmem:[%s500] sm:$0x1] %vm499, %v498
    %v502 = vld [vmem:[#allocation1] sm:$0x1]
    %503 = vrot.lane.b32.xlu0 %v502, 29
    %v504 = vpop.permute.xlu0 %503
    %vm505 = vcmask 23552
    %s506 = scalar_lea.vmem [#allocation0], 88
    %507 = vst.msk [vmem:[%s506] sm:$0x1] %vm505, %v504
    %s508 = scalar_lea.vmem [#allocation1], 1
    %v509 = vld [vmem:[%s508] sm:$0x1]
    %510 = vrot.lane.b32.xlu0 %v509, 28
    %v511 = vpop.permute.xlu0 %510
    %vm512 = vcmask 23552
    %s513 = scalar_lea.vmem [#allocation0], 201
    %514 = vst.msk [vmem:[%s513] sm:$0x1] %vm512, %v511
    %v515 = vld [vmem:[#allocation1] sm:$0x1]
    %516 = vrot.lane.b32.xlu0 %v515, 26
    %v517 = vpop.permute.xlu0 %516
    %vm518 = vcmask 23552
    %s519 = scalar_lea.vmem [#allocation0], 89
    %520 = vst.msk [vmem:[%s519] sm:$0x1] %vm518, %v517
    %s521 = scalar_lea.vmem [#allocation1], 1
    %v522 = vld [vmem:[%s521] sm:$0x1]
    %523 = vrot.lane.b32.xlu0 %v522, 25
    %v524 = vpop.permute.xlu0 %523
    %vm525 = vcmask 23552
    %s526 = scalar_lea.vmem [#allocation0], 202
    %527 = vst.msk [vmem:[%s526] sm:$0x1] %vm525, %v524
    %v528 = vld [vmem:[#allocation1] sm:$0x1]
    %529 = vrot.lane.b32.xlu0 %v528, 23
    %v530 = vpop.permute.xlu0 %529
    %vm531 = vcmask 23552
    %s532 = scalar_lea.vmem [#allocation0], 90
    %533 = vst.msk [vmem:[%s532] sm:$0x1] %vm531, %v530
    %s534 = scalar_lea.vmem [#allocation1], 1
    %v535 = vld [vmem:[%s534] sm:$0x1]
    %536 = vrot.lane.b32.xlu0 %v535, 22
    %v537 = vpop.permute.xlu0 %536
    %vm538 = vcmask 23552
    %s539 = scalar_lea.vmem [#allocation0], 208
    %540 = vst.msk [vmem:[%s539] sm:$0x1] %vm538, %v537
    %v541 = vld [vmem:[#allocation1] sm:$0x1]
    %542 = vrot.lane.b32.xlu0 %v541, 20
    %v543 = vpop.permute.xlu0 %542
    %vm544 = vcmask 23552
    %s545 = scalar_lea.vmem [#allocation0], 96
    %546 = vst.msk [vmem:[%s545] sm:$0x1] %vm544, %v543
    %s547 = scalar_lea.vmem [#allocation1], 1
    %v548 = vld [vmem:[%s547] sm:$0x1]
    %549 = vrot.lane.b32.xlu0 %v548, 19
    %v550 = vpop.permute.xlu0 %549
    %vm551 = vcmask 23552
    %s552 = scalar_lea.vmem [#allocation0], 209
    %553 = vst.msk [vmem:[%s552] sm:$0x1] %vm551, %v550
    %v554 = vld [vmem:[#allocation1] sm:$0x1]
    %555 = vrot.lane.b32.xlu0 %v554, 17
    %v556 = vpop.permute.xlu0 %555
    %vm557 = vcmask 23552
    %s558 = scalar_lea.vmem [#allocation0], 97
    %559 = vst.msk [vmem:[%s558] sm:$0x1] %vm557, %v556
    %s560 = scalar_lea.vmem [#allocation1], 1
    %v561 = vld [vmem:[%s560] sm:$0x1]
    %562 = vrot.lane.b32.xlu0 %v561, 16
    %v563 = vpop.permute.xlu0 %562
    %vm564 = vcmask 23552
    %s565 = scalar_lea.vmem [#allocation0], 210
    %566 = vst.msk [vmem:[%s565] sm:$0x1] %vm564, %v563
    %v567 = vld [vmem:[#allocation1] sm:$0x1]
    %568 = vrot.lane.b32.xlu0 %v567, 14
    %v569 = vpop.permute.xlu0 %568
    %vm570 = vcmask 23552
    %s571 = scalar_lea.vmem [#allocation0], 98
    %572 = vst.msk [vmem:[%s571] sm:$0x1] %vm570, %v569
    %s573 = scalar_lea.vmem [#allocation1], 1
    %v574 = vld [vmem:[%s573] sm:$0x1]
    %575 = vrot.lane.b32.xlu0 %v574, 13
    %v576 = vpop.permute.xlu0 %575
    %vm577 = vcmask 23552
    %s578 = scalar_lea.vmem [#allocation0], 216
    %579 = vst.msk [vmem:[%s578] sm:$0x1] %vm577, %v576
    %v580 = vld [vmem:[#allocation1] sm:$0x1]
    %581 = vrot.lane.b32.xlu0 %v580, 11
    %v582 = vpop.permute.xlu0 %581
    %vm583 = vcmask 23552
    %s584 = scalar_lea.vmem [#allocation0], 104
    %585 = vst.msk [vmem:[%s584] sm:$0x1] %vm583, %v582
    %s586 = scalar_lea.vmem [#allocation1], 1
    %v587 = vld [vmem:[%s586] sm:$0x1]
    %588 = vrot.lane.b32.xlu0 %v587, 10
    %v589 = vpop.permute.xlu0 %588
    %vm590 = vcmask 23552
    %s591 = scalar_lea.vmem [#allocation0], 217
    %592 = vst.msk [vmem:[%s591] sm:$0x1] %vm590, %v589
    %v593 = vld [vmem:[#allocation1] sm:$0x1]
    %594 = vrot.lane.b32.xlu0 %v593, 8
    %v595 = vpop.permute.xlu0 %594
    %vm596 = vcmask 23552
    %s597 = scalar_lea.vmem [#allocation0], 105
    %598 = vst.msk [vmem:[%s597] sm:$0x1] %vm596, %v595
    %s599 = scalar_lea.vmem [#allocation1], 1
    %v600 = vld [vmem:[%s599] sm:$0x1]
    %601 = vrot.lane.b32.xlu0 %v600, 7
    %v602 = vpop.permute.xlu0 %601
    %vm603 = vcmask 23552
    %s604 = scalar_lea.vmem [#allocation0], 218
    %605 = vst.msk [vmem:[%s604] sm:$0x1] %vm603, %v602
    %v606 = vld [vmem:[#allocation1] sm:$0x1]
    %607 = vrot.lane.b32.xlu0 %v606, 5
    %v608 = vpop.permute.xlu0 %607
    %vm609 = vcmask 23552
    %s610 = scalar_lea.vmem [#allocation0], 106
    %611 = vst.msk [vmem:[%s610] sm:$0x1] %vm609, %v608
    %s612 = scalar_lea.vmem [#allocation1], 1
    %v613 = vld [vmem:[%s612] sm:$0x1]
    %614 = vrot.lane.b32.xlu0 %v613, 4
    %v615 = vpop.permute.xlu0 %614
    %vm616 = vcmask 23552
    %s617 = scalar_lea.vmem [#allocation0], 224
    %618 = vst.msk [vmem:[%s617] sm:$0x1] %vm616, %v615
    %v619 = vld [vmem:[#allocation1] sm:$0x1]
    %s620 = scalar_lea.vmem [#allocation1], 1
    %v621 = vld [vmem:[%s620] sm:$0x1]
    %vm622 = vcmask 1031168
    %v623 = vsel %vm622, %v621, %v619
    %624 = vrot.lane.b32.xlu0 %v623, 2
    %v625 = vpop.permute.xlu0 %624
    %vm626 = vcmask 15360
    %s627 = scalar_lea.vmem [#allocation0], 112
    %628 = vst.msk [vmem:[%s627] sm:$0x1] %vm626, %v625
    %vm629 = vcmask 23568
    %s630 = scalar_lea.vmem [#allocation0], 112
    %631 = vst.msk [vmem:[%s630] sm:$0x1] %vm629, %v625
    %s632 = scalar_lea.vmem [#allocation1], 1
    %v633 = vld [vmem:[%s632] sm:$0x1]
    %s634 = scalar_lea.vmem [#allocation1], 2
    %v635 = vld [vmem:[%s634] sm:$0x1]
    %vm636 = vcmask 1039360
    %v637 = vsel %vm636, %v635, %v633
    %638 = vrot.lane.b32.xlu0 %v637, 1
    %v639 = vpop.permute.xlu0 %638
    %vm640 = vcmask 7168
    %s641 = scalar_lea.vmem [#allocation0], 225
    %642 = vst.msk [vmem:[%s641] sm:$0x1] %vm640, %v639
    %vm643 = vcmask 23560
    %s644 = scalar_lea.vmem [#allocation0], 225
    %645 = vst.msk [vmem:[%s644] sm:$0x1] %vm643, %v639
    %s647 = sshllo.u32 0, 4
    %v649 = vld [vmem:[#allocation0] sm:%s647]
    %s650 = sshllo.u32 0, 4
    %651 = vst [vmem:[%s1] sm:%s650] %v649
    %s652 = scalar_lea.vmem [#allocation0], 8
    %v653 = vld [vmem:[%s652] sm:%s647]
    %s654 = sshllo.u32 0, 4
    %s655 = scalar_lea.vmem %s1, 4
    %656 = vst [vmem:[%s655] sm:%s654] %v653
    %s657 = scalar_lea.vmem [#allocation0], 16
    %v658 = vld [vmem:[%s657] sm:%s647]
    %s659 = sshllo.u32 0, 4
    %s660 = smul.addr 4, 2
    %s661 = scalar_lea.vmem %s1, %s660
    %662 = vst [vmem:[%s661] sm:%s659] %v658
    %s663 = scalar_lea.vmem [#allocation0], 24
    %v664 = vld [vmem:[%s663] sm:%s647]
    %s665 = sshllo.u32 0, 4
    %s666 = smul.addr 4, 3
    %s667 = scalar_lea.vmem %s1, %s666
    %668 = vst [vmem:[%s667] sm:%s665] %v664
    %s669 = scalar_lea.vmem [#allocation0], 32
    %v670 = vld [vmem:[%s669] sm:%s647]
    %s671 = sshllo.u32 0, 4
    %s672 = smul.addr 4, 4
    %s673 = scalar_lea.vmem %s1, %s672
    %674 = vst [vmem:[%s673] sm:%s671] %v670
    %s675 = scalar_lea.vmem [#allocation0], 40
    %v676 = vld [vmem:[%s675] sm:%s647]
    %s677 = sshllo.u32 0, 4
    %s678 = smul.addr 4, 5
    %s679 = scalar_lea.vmem %s1, %s678
    %680 = vst [vmem:[%s679] sm:%s677] %v676
    %s681 = scalar_lea.vmem [#allocation0], 48
    %v682 = vld [vmem:[%s681] sm:%s647]
    %s683 = sshllo.u32 0, 4
    %s684 = smul.addr 4, 6
    %s685 = scalar_lea.vmem %s1, %s684
    %686 = vst [vmem:[%s685] sm:%s683] %v682
    %s687 = scalar_lea.vmem [#allocation0], 56
    %v688 = vld [vmem:[%s687] sm:%s647]
    %s689 = sshllo.u32 0, 4
    %s690 = smul.addr 4, 7
    %s691 = scalar_lea.vmem %s1, %s690
    %692 = vst [vmem:[%s691] sm:%s689] %v688
    %s693 = scalar_lea.vmem [#allocation0], 64
    %v694 = vld [vmem:[%s693] sm:%s647]
    %s695 = sshllo.u32 0, 4
    %s696 = smul.addr 4, 8
    %s697 = scalar_lea.vmem %s1, %s696
    %698 = vst [vmem:[%s697] sm:%s695] %v694
    %s699 = scalar_lea.vmem [#allocation0], 72
    %v700 = vld [vmem:[%s699] sm:%s647]
    %s701 = sshllo.u32 0, 4
    %s702 = smul.addr 4, 9
    %s703 = scalar_lea.vmem %s1, %s702
    %704 = vst [vmem:[%s703] sm:%s701] %v700
    %s705 = scalar_lea.vmem [#allocation0], 80
    %v706 = vld [vmem:[%s705] sm:%s647]
    %s707 = sshllo.u32 0, 4
    %s708 = smul.addr 4, 10
    %s709 = scalar_lea.vmem %s1, %s708
    %710 = vst [vmem:[%s709] sm:%s707] %v706
    %s711 = scalar_lea.vmem [#allocation0], 88
    %v712 = vld [vmem:[%s711] sm:%s647]
    %s713 = sshllo.u32 0, 4
    %s714 = smul.addr 4, 11
    %s715 = scalar_lea.vmem %s1, %s714
    %716 = vst [vmem:[%s715] sm:%s713] %v712
    %s717 = scalar_lea.vmem [#allocation0], 96
    %v718 = vld [vmem:[%s717] sm:%s647]
    %s719 = sshllo.u32 0, 4
    %s720 = smul.addr 4, 12
    %s721 = scalar_lea.vmem %s1, %s720
    %722 = vst [vmem:[%s721] sm:%s719] %v718
    %s723 = scalar_lea.vmem [#allocation0], 104
    %v724 = vld [vmem:[%s723] sm:%s647]
    %s725 = sshllo.u32 0, 4
    %s726 = smul.addr 4, 13
    %s727 = scalar_lea.vmem %s1, %s726
    %728 = vst [vmem:[%s727] sm:%s725] %v724
    %s729 = scalar_lea.vmem [#allocation0], 112
    %v730 = vld [vmem:[%s729] sm:%s647]
    %s731 = sshllo.u32 0, 4
    %s732 = smul.addr 4, 14
    %s733 = scalar_lea.vmem %s1, %s732
    %734 = vst [vmem:[%s733] sm:%s731] %v730
    %s735 = scalar_lea.vmem [#allocation0], 120
    %v736 = vld [vmem:[%s735] sm:%s647]
    %s737 = sshllo.u32 0, 4
    %s738 = smul.addr 4, 15
    %s739 = scalar_lea.vmem %s1, %s738
    %740 = vst [vmem:[%s739] sm:%s737] %v736
    %s741 = scalar_lea.vmem [#allocation0], 128
    %v742 = vld [vmem:[%s741] sm:%s647]
    %s743 = sshllo.u32 0, 4
    %s744 = smul.addr 4, 16
    %s745 = scalar_lea.vmem %s1, %s744
    %746 = vst [vmem:[%s745] sm:%s743] %v742
    %s747 = scalar_lea.vmem [#allocation0], 136
    %v748 = vld [vmem:[%s747] sm:%s647]
    %s749 = sshllo.u32 0, 4
    %s750 = smul.addr 4, 17
    %s751 = scalar_lea.vmem %s1, %s750
    %752 = vst [vmem:[%s751] sm:%s749] %v748
    %s753 = scalar_lea.vmem [#allocation0], 144
    %v754 = vld [vmem:[%s753] sm:%s647]
    %s755 = sshllo.u32 0, 4
    %s756 = smul.addr 4, 18
    %s757 = scalar_lea.vmem %s1, %s756
    %758 = vst [vmem:[%s757] sm:%s755] %v754
    %s759 = scalar_lea.vmem [#allocation0], 152
    %v760 = vld [vmem:[%s759] sm:%s647]
    %s761 = sshllo.u32 0, 4
    %s762 = smul.addr 4, 19
    %s763 = scalar_lea.vmem %s1, %s762
    %764 = vst [vmem:[%s763] sm:%s761] %v760
    %s765 = scalar_lea.vmem [#allocation0], 160
    %v766 = vld [vmem:[%s765] sm:%s647]
    %s767 = sshllo.u32 0, 4
    %s768 = smul.addr 4, 20
    %s769 = scalar_lea.vmem %s1, %s768
    %770 = vst [vmem:[%s769] sm:%s767] %v766
    %s771 = scalar_lea.vmem [#allocation0], 168
    %v772 = vld [vmem:[%s771] sm:%s647]
    %s773 = sshllo.u32 0, 4
    %s774 = smul.addr 4, 21
    %s775 = scalar_lea.vmem %s1, %s774
    %776 = vst [vmem:[%s775] sm:%s773] %v772
    %s777 = scalar_lea.vmem [#allocation0], 176
    %v778 = vld [vmem:[%s777] sm:%s647]
    %s779 = sshllo.u32 0, 4
    %s780 = smul.addr 4, 22
    %s781 = scalar_lea.vmem %s1, %s780
    %782 = vst [vmem:[%s781] sm:%s779] %v778
    %s783 = scalar_lea.vmem [#allocation0], 184
    %v784 = vld [vmem:[%s783] sm:%s647]
    %s785 = sshllo.u32 0, 4
    %s786 = smul.addr 4, 23
    %s787 = scalar_lea.vmem %s1, %s786
    %788 = vst [vmem:[%s787] sm:%s785] %v784
    %s789 = scalar_lea.vmem [#allocation0], 192
    %v790 = vld [vmem:[%s789] sm:%s647]
    %s791 = sshllo.u32 0, 4
    %s792 = smul.addr 4, 24
    %s793 = scalar_lea.vmem %s1, %s792
    %794 = vst [vmem:[%s793] sm:%s791] %v790
    %s795 = scalar_lea.vmem [#allocation0], 200
    %v796 = vld [vmem:[%s795] sm:%s647]
    %s797 = sshllo.u32 0, 4
    %s798 = smul.addr 4, 25
    %s799 = scalar_lea.vmem %s1, %s798
    %800 = vst [vmem:[%s799] sm:%s797] %v796
    %s801 = scalar_lea.vmem [#allocation0], 208
    %v802 = vld [vmem:[%s801] sm:%s647]
    %s803 = sshllo.u32 0, 4
    %s804 = smul.addr 4, 26
    %s805 = scalar_lea.vmem %s1, %s804
    %806 = vst [vmem:[%s805] sm:%s803] %v802
    %s807 = scalar_lea.vmem [#allocation0], 216
    %v808 = vld [vmem:[%s807] sm:%s647]
    %s809 = sshllo.u32 0, 4
    %s810 = smul.addr 4, 27
    %s811 = scalar_lea.vmem %s1, %s810
    %812 = vst [vmem:[%s811] sm:%s809] %v808
    %s813 = scalar_lea.vmem [#allocation0], 224
    %v814 = vld [vmem:[%s813] sm:%s647]
    %s815 = sshllo.u32 0, 4
    %s816 = smul.addr 4, 28
    %s817 = scalar_lea.vmem %s1, %s816
    %818 = vst [vmem:[%s817] sm:%s815] %v814
    %s819 = scalar_lea.vmem [#allocation0], 232
    %v820 = vld [vmem:[%s819] sm:%s647]
    %s821 = sshllo.u32 0, 4
    %s822 = smul.addr 4, 29
    %s823 = scalar_lea.vmem %s1, %s822
    %824 = vst [vmem:[%s823] sm:%s821] %v820
    %s825 = scalar_lea.vmem [#allocation0], 240
    %v826 = vld [vmem:[%s825] sm:%s647]
    %s827 = sshllo.u32 0, 4
    %s828 = smul.addr 4, 30
    %s829 = scalar_lea.vmem %s1, %s828
    %830 = vst [vmem:[%s829] sm:%s827] %v826
    %s831 = scalar_lea.vmem [#allocation0], 248
    %v832 = vld [vmem:[%s831] sm:%s647]
    %s833 = sshllo.u32 0, 4
    %s834 = smul.addr 4, 31
    %s835 = scalar_lea.vmem %s1, %s834
    %836 = vst [vmem:[%s835] sm:%s833] %v832

// kernel: squeeze.0
$region0: #{squeeze.0}
  %s0 = inlined_call_operand.vmem [shape: f32[36], index: 0, kind: input, shape index: {}]
  %s1 = inlined_call_operand.vmem [shape: f32[4,3,3,1], index: 1, kind: output, shape index: {}]
  $region1: #{squeeze.0} parent=0
    #allocation0 [shape = 'u8[49152]{0}', space=vmem, size = 0xc000, scoped, tag = 'scoped mem for output reshape']
    #allocation1 [shape = 'u8[4096]{0}', space=vmem, size = 0x1000, scoped, tag = 'scoped mem for input reshape']
    %s3 = sshllo.u32 0, 1
    %v4 = vld [vmem:[%s0] sm:%s3]
    %5 = vst [vmem:[#allocation1] sm:%s3] %v4
    %v6 = vld [vmem:[#allocation1] sm:$0x1]
    %vm7 = vcmask 7168
    %8 = vst.msk [vmem:[#allocation0] sm:$0x1] %vm7, %v6
    %v9 = vld [vmem:[#allocation1] sm:$0x1]
    %10 = vrot.lane.b32.xlu0 %v9, 127
    %v11 = vpop.permute.xlu0 %10
    %vm12 = vcmask 7168
    %s13 = scalar_lea.vmem [#allocation0], 1
    %14 = vst.msk [vmem:[%s13] sm:$0x1] %vm12, %v11
    %v15 = vld [vmem:[#allocation1] sm:$0x1]
    %16 = vrot.lane.b32.xlu0 %v15, 126
    %v17 = vpop.permute.xlu0 %16
    %vm18 = vcmask 7168
    %s19 = scalar_lea.vmem [#allocation0], 2
    %20 = vst.msk [vmem:[%s19] sm:$0x1] %vm18, %v17
    %v21 = vld [vmem:[#allocation1] sm:$0x1]
    %22 = vrot.lane.b32.xlu0 %v21, 125
    %v23 = vpop.permute.xlu0 %22
    %vm24 = vcmask 7168
    %s25 = scalar_lea.vmem [#allocation0], 8
    %26 = vst.msk [vmem:[%s25] sm:$0x1] %vm24, %v23
    %v27 = vld [vmem:[#allocation1] sm:$0x1]
    %28 = vrot.lane.b32.xlu0 %v27, 124
    %v29 = vpop.permute.xlu0 %28
    %vm30 = vcmask 7168
    %s31 = scalar_lea.vmem [#allocation0], 9
    %32 = vst.msk [vmem:[%s31] sm:$0x1] %vm30, %v29
    %v33 = vld [vmem:[#allocation1] sm:$0x1]
    %34 = vrot.lane.b32.xlu0 %v33, 123
    %v35 = vpop.permute.xlu0 %34
    %vm36 = vcmask 7168
    %s37 = scalar_lea.vmem [#allocation0], 10
    %38 = vst.msk [vmem:[%s37] sm:$0x1] %vm36, %v35
    %v39 = vld [vmem:[#allocation1] sm:$0x1]
    %40 = vrot.lane.b32.xlu0 %v39, 122
    %v41 = vpop.permute.xlu0 %40
    %vm42 = vcmask 7168
    %s43 = scalar_lea.vmem [#allocation0], 16
    %44 = vst.msk [vmem:[%s43] sm:$0x1] %vm42, %v41
    %v45 = vld [vmem:[#allocation1] sm:$0x1]
    %46 = vrot.lane.b32.xlu0 %v45, 121
    %v47 = vpop.permute.xlu0 %46
    %vm48 = vcmask 7168
    %s49 = scalar_lea.vmem [#allocation0], 17
    %50 = vst.msk [vmem:[%s49] sm:$0x1] %vm48, %v47
    %v51 = vld [vmem:[#allocation1] sm:$0x1]
    %52 = vrot.lane.b32.xlu0 %v51, 120
    %v53 = vpop.permute.xlu0 %52
    %vm54 = vcmask 7168
    %s55 = scalar_lea.vmem [#allocation0], 18
    %56 = vst.msk [vmem:[%s55] sm:$0x1] %vm54, %v53
    %v57 = vld [vmem:[#allocation1] sm:$0x1]
    %58 = vrot.lane.b32.xlu0 %v57, 119
    %v59 = vpop.permute.xlu0 %58
    %vm60 = vcmask 7168
    %s61 = scalar_lea.vmem [#allocation0], 24
    %62 = vst.msk [vmem:[%s61] sm:$0x1] %vm60, %v59
    %v63 = vld [vmem:[#allocation1] sm:$0x1]
    %64 = vrot.lane.b32.xlu0 %v63, 118
    %v65 = vpop.permute.xlu0 %64
    %vm66 = vcmask 7168
    %s67 = scalar_lea.vmem [#allocation0], 25
    %68 = vst.msk [vmem:[%s67] sm:$0x1] %vm66, %v65
    %v69 = vld [vmem:[#allocation1] sm:$0x1]
    %70 = vrot.lane.b32.xlu0 %v69, 117
    %v71 = vpop.permute.xlu0 %70
    %vm72 = vcmask 7168
    %s73 = scalar_lea.vmem [#allocation0], 26
    %74 = vst.msk [vmem:[%s73] sm:$0x1] %vm72, %v71
    %v75 = vld [vmem:[#allocation1] sm:$0x1]
    %76 = vrot.lane.b32.xlu0 %v75, 116
    %v77 = vpop.permute.xlu0 %76
    %vm78 = vcmask 7168
    %s79 = scalar_lea.vmem [#allocation0], 32
    %80 = vst.msk [vmem:[%s79] sm:$0x1] %vm78, %v77
    %v81 = vld [vmem:[#allocation1] sm:$0x1]
    %82 = vrot.lane.b32.xlu0 %v81, 115
    %v83 = vpop.permute.xlu0 %82
    %vm84 = vcmask 7168
    %s85 = scalar_lea.vmem [#allocation0], 33
    %86 = vst.msk [vmem:[%s85] sm:$0x1] %vm84, %v83
    %v87 = vld [vmem:[#allocation1] sm:$0x1]
    %88 = vrot.lane.b32.xlu0 %v87, 114
    %v89 = vpop.permute.xlu0 %88
    %vm90 = vcmask 7168
    %s91 = scalar_lea.vmem [#allocation0], 34
    %92 = vst.msk [vmem:[%s91] sm:$0x1] %vm90, %v89
    %v93 = vld [vmem:[#allocation1] sm:$0x1]
    %94 = vrot.lane.b32.xlu0 %v93, 113
    %v95 = vpop.permute.xlu0 %94
    %vm96 = vcmask 7168
    %s97 = scalar_lea.vmem [#allocation0], 40
    %98 = vst.msk [vmem:[%s97] sm:$0x1] %vm96, %v95
    %v99 = vld [vmem:[#allocation1] sm:$0x1]
    %100 = vrot.lane.b32.xlu0 %v99, 112
    %v101 = vpop.permute.xlu0 %100
    %vm102 = vcmask 7168
    %s103 = scalar_lea.vmem [#allocation0], 41
    %104 = vst.msk [vmem:[%s103] sm:$0x1] %vm102, %v101
    %v105 = vld [vmem:[#allocation1] sm:$0x1]
    %106 = vrot.lane.b32.xlu0 %v105, 111
    %v107 = vpop.permute.xlu0 %106
    %vm108 = vcmask 7168
    %s109 = scalar_lea.vmem [#allocation0], 42
    %110 = vst.msk [vmem:[%s109] sm:$0x1] %vm108, %v107
    %v111 = vld [vmem:[#allocation1] sm:$0x1]
    %112 = vrot.lane.b32.xlu0 %v111, 110
    %v113 = vpop.permute.xlu0 %112
    %vm114 = vcmask 7168
    %s115 = scalar_lea.vmem [#allocation0], 48
    %116 = vst.msk [vmem:[%s115] sm:$0x1] %vm114, %v113
    %v117 = vld [vmem:[#allocation1] sm:$0x1]
    %118 = vrot.lane.b32.xlu0 %v117, 109
    %v119 = vpop.permute.xlu0 %118
    %vm120 = vcmask 7168
    %s121 = scalar_lea.vmem [#allocation0], 49
    %122 = vst.msk [vmem:[%s121] sm:$0x1] %vm120, %v119
    %v123 = vld [vmem:[#allocation1] sm:$0x1]
    %124 = vrot.lane.b32.xlu0 %v123, 108
    %v125 = vpop.permute.xlu0 %124
    %vm126 = vcmask 7168
    %s127 = scalar_lea.vmem [#allocation0], 50
    %128 = vst.msk [vmem:[%s127] sm:$0x1] %vm126, %v125
    %v129 = vld [vmem:[#allocation1] sm:$0x1]
    %130 = vrot.lane.b32.xlu0 %v129, 107
    %v131 = vpop.permute.xlu0 %130
    %vm132 = vcmask 7168
    %s133 = scalar_lea.vmem [#allocation0], 56
    %134 = vst.msk [vmem:[%s133] sm:$0x1] %vm132, %v131
    %v135 = vld [vmem:[#allocation1] sm:$0x1]
    %136 = vrot.lane.b32.xlu0 %v135, 106
    %v137 = vpop.permute.xlu0 %136
    %vm138 = vcmask 7168
    %s139 = scalar_lea.vmem [#allocation0], 57
    %140 = vst.msk [vmem:[%s139] sm:$0x1] %vm138, %v137
    %v141 = vld [vmem:[#allocation1] sm:$0x1]
    %142 = vrot.lane.b32.xlu0 %v141, 105
    %v143 = vpop.permute.xlu0 %142
    %vm144 = vcmask 7168
    %s145 = scalar_lea.vmem [#allocation0], 58
    %146 = vst.msk [vmem:[%s145] sm:$0x1] %vm144, %v143
    %v147 = vld [vmem:[#allocation1] sm:$0x1]
    %148 = vrot.lane.b32.xlu0 %v147, 104
    %v149 = vpop.permute.xlu0 %148
    %vm150 = vcmask 7168
    %s151 = scalar_lea.vmem [#allocation0], 64
    %152 = vst.msk [vmem:[%s151] sm:$0x1] %vm150, %v149
    %v153 = vld [vmem:[#allocation1] sm:$0x1]
    %154 = vrot.lane.b32.xlu0 %v153, 103
    %v155 = vpop.permute.xlu0 %154
    %vm156 = vcmask 7168
    %s157 = scalar_lea.vmem [#allocation0], 65
    %158 = vst.msk [vmem:[%s157] sm:$0x1] %vm156, %v155
    %v159 = vld [vmem:[#allocation1] sm:$0x1]
    %160 = vrot.lane.b32.xlu0 %v159, 102
    %v161 = vpop.permute.xlu0 %160
    %vm162 = vcmask 7168
    %s163 = scalar_lea.vmem [#allocation0], 66
    %164 = vst.msk [vmem:[%s163] sm:$0x1] %vm162, %v161
    %v165 = vld [vmem:[#allocation1] sm:$0x1]
    %166 = vrot.lane.b32.xlu0 %v165, 101
    %v167 = vpop.permute.xlu0 %166
    %vm168 = vcmask 7168
    %s169 = scalar_lea.vmem [#allocation0], 72
    %170 = vst.msk [vmem:[%s169] sm:$0x1] %vm168, %v167
    %v171 = vld [vmem:[#allocation1] sm:$0x1]
    %172 = vrot.lane.b32.xlu0 %v171, 100
    %v173 = vpop.permute.xlu0 %172
    %vm174 = vcmask 7168
    %s175 = scalar_lea.vmem [#allocation0], 73
    %176 = vst.msk [vmem:[%s175] sm:$0x1] %vm174, %v173
    %v177 = vld [vmem:[#allocation1] sm:$0x1]
    %178 = vrot.lane.b32.xlu0 %v177, 99
    %v179 = vpop.permute.xlu0 %178
    %vm180 = vcmask 7168
    %s181 = scalar_lea.vmem [#allocation0], 74
    %182 = vst.msk [vmem:[%s181] sm:$0x1] %vm180, %v179
    %v183 = vld [vmem:[#allocation1] sm:$0x1]
    %184 = vrot.lane.b32.xlu0 %v183, 98
    %v185 = vpop.permute.xlu0 %184
    %vm186 = vcmask 7168
    %s187 = scalar_lea.vmem [#allocation0], 80
    %188 = vst.msk [vmem:[%s187] sm:$0x1] %vm186, %v185
    %v189 = vld [vmem:[#allocation1] sm:$0x1]
    %190 = vrot.lane.b32.xlu0 %v189, 97
    %v191 = vpop.permute.xlu0 %190
    %vm192 = vcmask 7168
    %s193 = scalar_lea.vmem [#allocation0], 81
    %194 = vst.msk [vmem:[%s193] sm:$0x1] %vm192, %v191
    %v195 = vld [vmem:[#allocation1] sm:$0x1]
    %196 = vrot.lane.b32.xlu0 %v195, 96
    %v197 = vpop.permute.xlu0 %196
    %vm198 = vcmask 7168
    %s199 = scalar_lea.vmem [#allocation0], 82
    %200 = vst.msk [vmem:[%s199] sm:$0x1] %vm198, %v197
    %v201 = vld [vmem:[#allocation1] sm:$0x1]
    %202 = vrot.lane.b32.xlu0 %v201, 95
    %v203 = vpop.permute.xlu0 %202
    %vm204 = vcmask 7168
    %s205 = scalar_lea.vmem [#allocation0], 88
    %206 = vst.msk [vmem:[%s205] sm:$0x1] %vm204, %v203
    %v207 = vld [vmem:[#allocation1] sm:$0x1]
    %208 = vrot.lane.b32.xlu0 %v207, 94
    %v209 = vpop.permute.xlu0 %208
    %vm210 = vcmask 7168
    %s211 = scalar_lea.vmem [#allocation0], 89
    %212 = vst.msk [vmem:[%s211] sm:$0x1] %vm210, %v209
    %v213 = vld [vmem:[#allocation1] sm:$0x1]
    %214 = vrot.lane.b32.xlu0 %v213, 93
    %v215 = vpop.permute.xlu0 %214
    %vm216 = vcmask 7168
    %s217 = scalar_lea.vmem [#allocation0], 90
    %218 = vst.msk [vmem:[%s217] sm:$0x1] %vm216, %v215
    %s220 = sshllo.u32 0, 4
    %v222 = vld [vmem:[#allocation0] sm:%s220]
    %s223 = sshllo.u32 0, 4
    %224 = vst [vmem:[%s1] sm:%s223] %v222
    %s225 = scalar_lea.vmem [#allocation0], 8
    %v226 = vld [vmem:[%s225] sm:%s220]
    %s227 = sshllo.u32 0, 4
    %s228 = scalar_lea.vmem %s1, 4
    %229 = vst [vmem:[%s228] sm:%s227] %v226
    %s230 = scalar_lea.vmem [#allocation0], 16
    %v231 = vld [vmem:[%s230] sm:%s220]
    %s232 = sshllo.u32 0, 4
    %s233 = smul.addr 4, 2
    %s234 = scalar_lea.vmem %s1, %s233
    %235 = vst [vmem:[%s234] sm:%s232] %v231
    %s236 = scalar_lea.vmem [#allocation0], 24
    %v237 = vld [vmem:[%s236] sm:%s220]
    %s238 = sshllo.u32 0, 4
    %s239 = smul.addr 4, 3
    %s240 = scalar_lea.vmem %s1, %s239
    %241 = vst [vmem:[%s240] sm:%s238] %v237
    %s242 = scalar_lea.vmem [#allocation0], 32
    %v243 = vld [vmem:[%s242] sm:%s220]
    %s244 = sshllo.u32 0, 4
    %s245 = smul.addr 4, 4
    %s246 = scalar_lea.vmem %s1, %s245
    %247 = vst [vmem:[%s246] sm:%s244] %v243
    %s248 = scalar_lea.vmem [#allocation0], 40
    %v249 = vld [vmem:[%s248] sm:%s220]
    %s250 = sshllo.u32 0, 4
    %s251 = smul.addr 4, 5
    %s252 = scalar_lea.vmem %s1, %s251
    %253 = vst [vmem:[%s252] sm:%s250] %v249
    %s254 = scalar_lea.vmem [#allocation0], 48
    %v255 = vld [vmem:[%s254] sm:%s220]
    %s256 = sshllo.u32 0, 4
    %s257 = smul.addr 4, 6
    %s258 = scalar_lea.vmem %s1, %s257
    %259 = vst [vmem:[%s258] sm:%s256] %v255
    %s260 = scalar_lea.vmem [#allocation0], 56
    %v261 = vld [vmem:[%s260] sm:%s220]
    %s262 = sshllo.u32 0, 4
    %s263 = smul.addr 4, 7
    %s264 = scalar_lea.vmem %s1, %s263
    %265 = vst [vmem:[%s264] sm:%s262] %v261
    %s266 = scalar_lea.vmem [#allocation0], 64
    %v267 = vld [vmem:[%s266] sm:%s220]
    %s268 = sshllo.u32 0, 4
    %s269 = smul.addr 4, 8
    %s270 = scalar_lea.vmem %s1, %s269
    %271 = vst [vmem:[%s270] sm:%s268] %v267
    %s272 = scalar_lea.vmem [#allocation0], 72
    %v273 = vld [vmem:[%s272] sm:%s220]
    %s274 = sshllo.u32 0, 4
    %s275 = smul.addr 4, 9
    %s276 = scalar_lea.vmem %s1, %s275
    %277 = vst [vmem:[%s276] sm:%s274] %v273
    %s278 = scalar_lea.vmem [#allocation0], 80
    %v279 = vld [vmem:[%s278] sm:%s220]
    %s280 = sshllo.u32 0, 4
    %s281 = smul.addr 4, 10
    %s282 = scalar_lea.vmem %s1, %s281
    %283 = vst [vmem:[%s282] sm:%s280] %v279
    %s284 = scalar_lea.vmem [#allocation0], 88
    %v285 = vld [vmem:[%s284] sm:%s220]
    %s286 = sshllo.u32 0, 4
    %s287 = smul.addr 4, 11
    %s288 = scalar_lea.vmem %s1, %s287
    %289 = vst [vmem:[%s288] sm:%s286] %v285

// kernel: _lambda_.1
$region0: #{_lambda_.1}
  #allocation0 [shape = 'u32[]', space=smem, size = 0x4, offset = 0x4, fixed_abs, tag = 'smem constant byte address 0x4 - core index']
  #allocation1 [shape = 'u32[144,128]{1,0:T(1,128)}', space=vmem, size = 0x12000, scoped, tag = 'internal scratch']
  #allocation2 [shape = 'f32[72,512]{1,0:T(8,128)}', space=vmem, size = 0x24000, scoped, tag = 'scratch operand']
  %s0 = inlined_call_operand.vmem [shape: f32[8,512], index: 0, kind: input, shape index: {}]
  %s1 = inlined_call_operand.vmem [shape: s32[1,512], index: 1, kind: input, shape index: {}]
  %s2 = inlined_call_operand.vmem [shape: s32[1,512], index: 2, kind: input, shape index: {}]
  %s3 = inlined_call_operand.vmem [shape: f32[8,72], index: 3, kind: input, shape index: {}]
  %s4 = inlined_call_operand.vmem [shape: f32[8,72], index: 4, kind: input, shape index: {}]
  %s5 = inlined_call_operand.vmem [shape: f32[8,72], index: 5, kind: input, shape index: {}]
  %s6 = inlined_call_operand.vmem [shape: f32[8,512], index: 6, kind: output, shape index: {}]
  %s7 = sld [smem:[#allocation0]]
  $region34: #{_lambda_.1} parent=0
    _
  %s9 = ssub.s32 1, %s7
  %s10 = scalar_select 0, %s9, %s7
  // Predicated region
  $region2: #{_lambda_.1} parent=0 // pred_check
    _
  $region3: #{_lambda_.1} parent=0 // pred_check_branch
    %12 = sbr.rel (0) target = $region5
  $region4: #{_lambda_.1} parent=0 // pred_region
    _
  $region5: #{_lambda_.1} parent=0 // pred_fallthru
    _
  // Predicated region
  $region6: #{_lambda_.1} parent=0 // pred_check
    _
  $region7: #{_lambda_.1} parent=0 // pred_check_branch
    %14 = sbr.rel (0) target = $region9
  $region8: #{_lambda_.1} parent=0 // pred_region
    _
  $region9: #{_lambda_.1} parent=0 // pred_fallthru
    _
  // Predicated region
  $region10: #{_lambda_.1} parent=0 // pred_check
    _
  $region11: #{_lambda_.1} parent=0 // pred_check_branch
    %16 = sbr.rel (0) target = $region13
  $region12: #{_lambda_.1} parent=0 // pred_region
    _
  $region13: #{_lambda_.1} parent=0 // pred_fallthru
    _
  // Predicated region
  $region14: #{_lambda_.1} parent=0 // pred_check
    _
  $region15: #{_lambda_.1} parent=0 // pred_check_branch
    %18 = sbr.rel (0) target = $region17
  $region16: #{_lambda_.1} parent=0 // pred_region
    _
  $region17: #{_lambda_.1} parent=0 // pred_fallthru
    _
  // Predicated region
  $region18: #{_lambda_.1} parent=0 // pred_check
    _
  $region19: #{_lambda_.1} parent=0 // pred_check_branch
    %20 = sbr.rel (0) target = $region21
  $region20: #{_lambda_.1} parent=0 // pred_region
    _
  $region21: #{_lambda_.1} parent=0 // pred_fallthru
    _
  // Predicated region
  $region22: #{_lambda_.1} parent=0 // pred_check
    _
  $region23: #{_lambda_.1} parent=0 // pred_check_branch
    %22 = sbr.rel (0) target = $region25
  $region24: #{_lambda_.1} parent=0 // pred_region
    _
  $region25: #{_lambda_.1} parent=0 // pred_fallthru
    _
  %v23 = vld [vmem:[%s1] sm:$0xf]
  %v24 = vld [vmem:[%s2] sm:$0xf]
  %v25 = vld [vmem:[%s0] sm:$0xff]
  %v26 = vld [vmem:[%s0 + $0x8] sm:$0xff]
  %v27 = vld [vmem:[%s0 + $0x10] sm:$0xff]
  %v28 = vld [vmem:[%s0 + $0x18] sm:$0xff]
  %29 = vrot.lane.b32.xlu0 %v25, 17
  %v30 = vpop.permute.xlu0 %29
  %31 = vrot.lane.b32.xlu0 %v26, 17
  %v32 = vpop.permute.xlu0 %31
  %33 = vrot.lane.b32.xlu0 %v27, 17
  %v34 = vpop.permute.xlu0 %33
  %35 = vrot.lane.b32.xlu0 %v28, 17
  %v36 = vpop.permute.xlu0 %35
  %v37 = vlaneseq
  %v38 = vand.u32 %v37, 127
  %vm39 = vcmp.lt.s32.totalorder %v38, 17
  %v40 = vsel %vm39, %v34, %v36
  %v41 = vsel %vm39, %v32, %v34
  %v42 = vsel %vm39, %v30, %v32
  %v43 = vsel %vm39, %v36, %v30
  %vm44 = vcmp.ge.s32.totalorder %v23, 1
  %vm45 = vcmp.lt.s32.totalorder %v23, 17
  %vm46 = vmand %vm44, %vm45
  %vm47 = vcmp.ge.s32.totalorder %v24, 1
  %vm48 = vmand %vm46, %vm47
  %vm49 = vcmp.lt.s32.totalorder %v24, 17
  %vm50 = vmand %vm48, %vm49
  %v51 = vsel %vm50, 1, 0
  %v52 = vlaneseq
  %v53 = vshrl.u32 %v52, 7
  %v54 = vsub.s32 0, %v53
  %v55 = vrot.slane %v51, %v54
  %v56 = vlaneseq
  %v57 = vshrl.u32 %v56, 7
  %v58 = vsub.s32 1, %v57
  %v59 = vrot.slane %v51, %v58
  %v60 = vlaneseq
  %v61 = vshrl.u32 %v60, 7
  %v62 = vsub.s32 2, %v61
  %v63 = vrot.slane %v51, %v62
  %v64 = vlaneseq
  %v65 = vshrl.u32 %v64, 7
  %v66 = vsub.s32 3, %v65
  %v67 = vrot.slane %v51, %v66
  %vm68 = vcmp.eq.s32.totalorder %v55, 1
  %vm69 = vcmp.eq.s32.totalorder %v59, 1
  %vm70 = vcmp.eq.s32.totalorder %v63, 1
  %vm71 = vcmp.eq.s32.totalorder %v67, 1
  %v72 = vsel %vm68, %v43, 0.0
  %v73 = vsel %vm69, %v42, 0.0
  %v74 = vsel %vm70, %v41, 0.0
  %v75 = vsel %vm71, %v40, 0.0
  %76 = vst [vmem:[#allocation2] sm:$0xff] %v72
  %77 = vst [vmem:[#allocation2 + $0x8] sm:$0xff] %v73
  %78 = vst [vmem:[#allocation2 + $0x10] sm:$0xff] %v74
  %79 = vst [vmem:[#allocation2 + $0x18] sm:$0xff] %v75
  %80 = vrot.lane.b32.xlu0 %v25, 16
  %v81 = vpop.permute.xlu0 %80
  %82 = vrot.lane.b32.xlu0 %v26, 16
  %v83 = vpop.permute.xlu0 %82
  %84 = vrot.lane.b32.xlu0 %v27, 16
  %v85 = vpop.permute.xlu0 %84
  %86 = vrot.lane.b32.xlu0 %v28, 16
  %v87 = vpop.permute.xlu0 %86
  %vm88 = vcmp.lt.s32.totalorder %v38, 16
  %v89 = vsel %vm88, %v85, %v87
  %v90 = vsel %vm88, %v83, %v85
  %v91 = vsel %vm88, %v81, %v83
  %v92 = vsel %vm88, %v87, %v81
  %vm93 = vcmp.ge.s32.totalorder %v24, 0
  %vm94 = vmand %vm46, %vm93
  %vm95 = vcmp.lt.s32.totalorder %v24, 16
  %vm96 = vmand %vm94, %vm95
  %v97 = vsel %vm96, 1, 0
  %v98 = vlaneseq
  %v99 = vshrl.u32 %v98, 7
  %v100 = vsub.s32 0, %v99
  %v101 = vrot.slane %v97, %v100
  %v102 = vlaneseq
  %v103 = vshrl.u32 %v102, 7
  %v104 = vsub.s32 1, %v103
  %v105 = vrot.slane %v97, %v104
  %v106 = vlaneseq
  %v107 = vshrl.u32 %v106, 7
  %v108 = vsub.s32 2, %v107
  %v109 = vrot.slane %v97, %v108
  %v110 = vlaneseq
  %v111 = vshrl.u32 %v110, 7
  %v112 = vsub.s32 3, %v111
  %v113 = vrot.slane %v97, %v112
  %vm114 = vcmp.eq.s32.totalorder %v101, 1
  %vm115 = vcmp.eq.s32.totalorder %v105, 1
  %vm116 = vcmp.eq.s32.totalorder %v109, 1
  %vm117 = vcmp.eq.s32.totalorder %v113, 1
  %v118 = vsel %vm114, %v92, 0.0
  %v119 = vsel %vm115, %v91, 0.0
  %v120 = vsel %vm116, %v90, 0.0
  %v121 = vsel %vm117, %v89, 0.0
  %122 = vst [vmem:[#allocation2 + $0x20] sm:$0xff] %v118
  %123 = vst [vmem:[#allocation2 + $0x28] sm:$0xff] %v119
  %124 = vst [vmem:[#allocation2 + $0x30] sm:$0xff] %v120
  %125 = vst [vmem:[#allocation2 + $0x38] sm:$0xff] %v121
  %126 = vrot.lane.b32.xlu0 %v25, 15
  %v127 = vpop.permute.xlu0 %126
  %128 = vrot.lane.b32.xlu0 %v26, 15
  %v129 = vpop.permute.xlu0 %128
  %130 = vrot.lane.b32.xlu0 %v27, 15
  %v131 = vpop.permute.xlu0 %130
  %132 = vrot.lane.b32.xlu0 %v28, 15
  %v133 = vpop.permute.xlu0 %132
  %vm134 = vcmp.lt.s32.totalorder %v38, 15
  %v135 = vsel %vm134, %v131, %v133
  %v136 = vsel %vm134, %v129, %v131
  %v137 = vsel %vm134, %v127, %v129
  %v138 = vsel %vm134, %v133, %v127
  %vm139 = vcmp.ge.s32.totalorder %v24, 4294967295
  %vm140 = vmand %vm46, %vm139
  %vm141 = vcmp.lt.s32.totalorder %v24, 15
  %vm142 = vmand %vm140, %vm141
  %v143 = vsel %vm142, 1, 0
  %v144 = vlaneseq
  %v145 = vshrl.u32 %v144, 7
  %v146 = vsub.s32 0, %v145
  %v147 = vrot.slane %v143, %v146
  %v148 = vlaneseq
  %v149 = vshrl.u32 %v148, 7
  %v150 = vsub.s32 1, %v149
  %v151 = vrot.slane %v143, %v150
  %v152 = vlaneseq
  %v153 = vshrl.u32 %v152, 7
  %v154 = vsub.s32 2, %v153
  %v155 = vrot.slane %v143, %v154
  %v156 = vlaneseq
  %v157 = vshrl.u32 %v156, 7
  %v158 = vsub.s32 3, %v157
  %v159 = vrot.slane %v143, %v158
  %vm160 = vcmp.eq.s32.totalorder %v147, 1
  %vm161 = vcmp.eq.s32.totalorder %v151, 1
  %vm162 = vcmp.eq.s32.totalorder %v155, 1
  %vm163 = vcmp.eq.s32.totalorder %v159, 1
  %v164 = vsel %vm160, %v138, 0.0
  %v165 = vsel %vm161, %v137, 0.0
  %v166 = vsel %vm162, %v136, 0.0
  %v167 = vsel %vm163, %v135, 0.0
  %168 = vst [vmem:[#allocation2 + $0x40] sm:$0xff] %v164
  %169 = vst [vmem:[#allocation2 + $0x48] sm:$0xff] %v165
  %170 = vst [vmem:[#allocation2 + $0x50] sm:$0xff] %v166
  %171 = vst [vmem:[#allocation2 + $0x58] sm:$0xff] %v167
  %172 = vrot.lane.b32.xlu0 %v25, 1
  %v173 = vpop.permute.xlu0 %172
  %174 = vrot.lane.b32.xlu0 %v26, 1
  %v175 = vpop.permute.xlu0 %174
  %176 = vrot.lane.b32.xlu0 %v27, 1
  %v177 = vpop.permute.xlu0 %176
  %178 = vrot.lane.b32.xlu0 %v28, 1
  %v179 = vpop.permute.xlu0 %178
  %vm180 = vcmp.lt.s32.totalorder %v38, 1
  %v181 = vsel %vm180, %v177, %v179
  %v182 = vsel %vm180, %v175, %v177
  %v183 = vsel %vm180, %v173, %v175
  %v184 = vsel %vm180, %v179, %v173
  %vm185 = vcmp.ge.s32.totalorder %v23, 0
  %vm186 = vcmp.lt.s32.totalorder %v23, 16
  %vm187 = vmand %vm185, %vm186
  %vm188 = vmand %vm187, %vm47
  %vm189 = vmand %vm188, %vm49
  %v190 = vsel %vm189, 1, 0
  %v191 = vlaneseq
  %v192 = vshrl.u32 %v191, 7
  %v193 = vsub.s32 0, %v192
  %v194 = vrot.slane %v190, %v193
  %v195 = vlaneseq
  %v196 = vshrl.u32 %v195, 7
  %v197 = vsub.s32 1, %v196
  %v198 = vrot.slane %v190, %v197
  %v199 = vlaneseq
  %v200 = vshrl.u32 %v199, 7
  %v201 = vsub.s32 2, %v200
  %v202 = vrot.slane %v190, %v201
  %v203 = vlaneseq
  %v204 = vshrl.u32 %v203, 7
  %v205 = vsub.s32 3, %v204
  %v206 = vrot.slane %v190, %v205
  %vm207 = vcmp.eq.s32.totalorder %v194, 1
  %vm208 = vcmp.eq.s32.totalorder %v198, 1
  %vm209 = vcmp.eq.s32.totalorder %v202, 1
  %vm210 = vcmp.eq.s32.totalorder %v206, 1
  %v211 = vsel %vm207, %v184, 0.0
  %v212 = vsel %vm208, %v183, 0.0
  %v213 = vsel %vm209, %v182, 0.0
  %v214 = vsel %vm210, %v181, 0.0
  %215 = vst [vmem:[#allocation2 + $0x60] sm:$0xff] %v211
  %216 = vst [vmem:[#allocation2 + $0x68] sm:$0xff] %v212
  %217 = vst [vmem:[#allocation2 + $0x70] sm:$0xff] %v213
  %218 = vst [vmem:[#allocation2 + $0x78] sm:$0xff] %v214
  %vm219 = vmand %vm187, %vm93
  %vm220 = vmand %vm219, %vm95
  %v221 = vsel %vm220, 1, 0
  %v222 = vlaneseq
  %v223 = vshrl.u32 %v222, 7
  %v224 = vsub.s32 0, %v223
  %v225 = vrot.slane %v221, %v224
  %v226 = vlaneseq
  %v227 = vshrl.u32 %v226, 7
  %v228 = vsub.s32 1, %v227
  %v229 = vrot.slane %v221, %v228
  %v230 = vlaneseq
  %v231 = vshrl.u32 %v230, 7
  %v232 = vsub.s32 2, %v231
  %v233 = vrot.slane %v221, %v232
  %v234 = vlaneseq
  %v235 = vshrl.u32 %v234, 7
  %v236 = vsub.s32 3, %v235
  %v237 = vrot.slane %v221, %v236
  %vm238 = vcmp.eq.s32.totalorder %v225, 1
  %vm239 = vcmp.eq.s32.totalorder %v229, 1
  %vm240 = vcmp.eq.s32.totalorder %v233, 1
  %vm241 = vcmp.eq.s32.totalorder %v237, 1
  %v242 = vsel %vm238, %v25, 0.0
  %v243 = vsel %vm239, %v26, 0.0
  %v244 = vsel %vm240, %v27, 0.0
  %v245 = vsel %vm241, %v28, 0.0
  %246 = vst [vmem:[#allocation2 + $0x80] sm:$0xff] %v242
  %247 = vst [vmem:[#allocation2 + $0x88] sm:$0xff] %v243
  %248 = vst [vmem:[#allocation2 + $0x90] sm:$0xff] %v244
  %249 = vst [vmem:[#allocation2 + $0x98] sm:$0xff] %v245
  %250 = vrot.lane.b32.xlu0 %v25, 127
  %v251 = vpop.permute.xlu0 %250
  %252 = vrot.lane.b32.xlu0 %v26, 127
  %v253 = vpop.permute.xlu0 %252
  %254 = vrot.lane.b32.xlu0 %v27, 127
  %v255 = vpop.permute.xlu0 %254
  %256 = vrot.lane.b32.xlu0 %v28, 127
  %v257 = vpop.permute.xlu0 %256
  %vm258 = vcmp.lt.s32.totalorder %v38, 127
  %v259 = vsel %vm258, %v255, %v257
  %v260 = vsel %vm258, %v253, %v255
  %v261 = vsel %vm258, %v251, %v253
  %v262 = vsel %vm258, %v257, %v251
  %vm263 = vmand %vm187, %vm139
  %vm264 = vmand %vm263, %vm141
  %v265 = vsel %vm264, 1, 0
  %v266 = vlaneseq
  %v267 = vshrl.u32 %v266, 7
  %v268 = vsub.s32 0, %v267
  %v269 = vrot.slane %v265, %v268
  %v270 = vlaneseq
  %v271 = vshrl.u32 %v270, 7
  %v272 = vsub.s32 1, %v271
  %v273 = vrot.slane %v265, %v272
  %v274 = vlaneseq
  %v275 = vshrl.u32 %v274, 7
  %v276 = vsub.s32 2, %v275
  %v277 = vrot.slane %v265, %v276
  %v278 = vlaneseq
  %v279 = vshrl.u32 %v278, 7
  %v280 = vsub.s32 3, %v279
  %v281 = vrot.slane %v265, %v280
  %vm282 = vcmp.eq.s32.totalorder %v269, 1
  %vm283 = vcmp.eq.s32.totalorder %v273, 1
  %vm284 = vcmp.eq.s32.totalorder %v277, 1
  %vm285 = vcmp.eq.s32.totalorder %v281, 1
  %v286 = vsel %vm282, %v261, 0.0
  %v287 = vsel %vm283, %v260, 0.0
  %v288 = vsel %vm284, %v259, 0.0
  %v289 = vsel %vm285, %v262, 0.0
  %290 = vst [vmem:[#allocation2 + $0xa0] sm:$0xff] %v286
  %291 = vst [vmem:[#allocation2 + $0xa8] sm:$0xff] %v287
  %292 = vst [vmem:[#allocation2 + $0xb0] sm:$0xff] %v288
  %293 = vst [vmem:[#allocation2 + $0xb8] sm:$0xff] %v289
  %294 = vrot.lane.b32.xlu0 %v25, 113
  %v295 = vpop.permute.xlu0 %294
  %296 = vrot.lane.b32.xlu0 %v26, 113
  %v297 = vpop.permute.xlu0 %296
  %298 = vrot.lane.b32.xlu0 %v27, 113
  %v299 = vpop.permute.xlu0 %298
  %300 = vrot.lane.b32.xlu0 %v28, 113
  %v301 = vpop.permute.xlu0 %300
  %vm302 = vcmp.lt.s32.totalorder %v38, 113
  %v303 = vsel %vm302, %v299, %v301
  %v304 = vsel %vm302, %v297, %v299
  %v305 = vsel %vm302, %v295, %v297
  %v306 = vsel %vm302, %v301, %v295
  %vm307 = vcmp.ge.s32.totalorder %v23, 4294967295
  %vm308 = vcmp.lt.s32.totalorder %v23, 15
  %vm309 = vmand %vm307, %vm308
  %vm310 = vmand %vm309, %vm47
  %vm311 = vmand %vm310, %vm49
  %v312 = vsel %vm311, 1, 0
  %v313 = vlaneseq
  %v314 = vshrl.u32 %v313, 7
  %v315 = vsub.s32 0, %v314
  %v316 = vrot.slane %v312, %v315
  %v317 = vlaneseq
  %v318 = vshrl.u32 %v317, 7
  %v319 = vsub.s32 1, %v318
  %v320 = vrot.slane %v312, %v319
  %v321 = vlaneseq
  %v322 = vshrl.u32 %v321, 7
  %v323 = vsub.s32 2, %v322
  %v324 = vrot.slane %v312, %v323
  %v325 = vlaneseq
  %v326 = vshrl.u32 %v325, 7
  %v327 = vsub.s32 3, %v326
  %v328 = vrot.slane %v312, %v327
  %vm329 = vcmp.eq.s32.totalorder %v316, 1
  %vm330 = vcmp.eq.s32.totalorder %v320, 1
  %vm331 = vcmp.eq.s32.totalorder %v324, 1
  %vm332 = vcmp.eq.s32.totalorder %v328, 1
  %v333 = vsel %vm329, %v305, 0.0
  %v334 = vsel %vm330, %v304, 0.0
  %v335 = vsel %vm331, %v303, 0.0
  %v336 = vsel %vm332, %v306, 0.0
  %337 = vst [vmem:[#allocation2 + $0xc0] sm:$0xff] %v333
  %338 = vst [vmem:[#allocation2 + $0xc8] sm:$0xff] %v334
  %339 = vst [vmem:[#allocation2 + $0xd0] sm:$0xff] %v335
  %340 = vst [vmem:[#allocation2 + $0xd8] sm:$0xff] %v336
  %341 = vrot.lane.b32.xlu0 %v25, 112
  %v342 = vpop.permute.xlu0 %341
  %343 = vrot.lane.b32.xlu0 %v26, 112
  %v344 = vpop.permute.xlu0 %343
  %345 = vrot.lane.b32.xlu0 %v27, 112
  %v346 = vpop.permute.xlu0 %345
  %347 = vrot.lane.b32.xlu0 %v28, 112
  %v348 = vpop.permute.xlu0 %347
  %vm349 = vcmp.lt.s32.totalorder %v38, 112
  %v350 = vsel %vm349, %v346, %v348
  %v351 = vsel %vm349, %v344, %v346
  %v352 = vsel %vm349, %v342, %v344
  %v353 = vsel %vm349, %v348, %v342
  %vm354 = vmand %vm309, %vm93
  %vm355 = vmand %vm354, %vm95
  %v356 = vsel %vm355, 1, 0
  %v357 = vlaneseq
  %v358 = vshrl.u32 %v357, 7
  %v359 = vsub.s32 0, %v358
  %v360 = vrot.slane %v356, %v359
  %v361 = vlaneseq
  %v362 = vshrl.u32 %v361, 7
  %v363 = vsub.s32 1, %v362
  %v364 = vrot.slane %v356, %v363
  %v365 = vlaneseq
  %v366 = vshrl.u32 %v365, 7
  %v367 = vsub.s32 2, %v366
  %v368 = vrot.slane %v356, %v367
  %v369 = vlaneseq
  %v370 = vshrl.u32 %v369, 7
  %v371 = vsub.s32 3, %v370
  %v372 = vrot.slane %v356, %v371
  %vm373 = vcmp.eq.s32.totalorder %v360, 1
  %vm374 = vcmp.eq.s32.totalorder %v364, 1
  %vm375 = vcmp.eq.s32.totalorder %v368, 1
  %vm376 = vcmp.eq.s32.totalorder %v372, 1
  %v377 = vsel %vm373, %v352, 0.0
  %v378 = vsel %vm374, %v351, 0.0
  %v379 = vsel %vm375, %v350, 0.0
  %v380 = vsel %vm376, %v353, 0.0
  %381 = vst [vmem:[#allocation2 + $0xe0] sm:$0xff] %v377
  %382 = vst [vmem:[#allocation2 + $0xe8] sm:$0xff] %v378
  %383 = vst [vmem:[#allocation2 + $0xf0] sm:$0xff] %v379
  %384 = vst [vmem:[#allocation2 + $0xf8] sm:$0xff] %v380
  %385 = vrot.lane.b32.xlu0 %v25, 111
  %v386 = vpop.permute.xlu0 %385
  %387 = vrot.lane.b32.xlu0 %v26, 111
  %v388 = vpop.permute.xlu0 %387
  %389 = vrot.lane.b32.xlu0 %v27, 111
  %v390 = vpop.permute.xlu0 %389
  %391 = vrot.lane.b32.xlu0 %v28, 111
  %v392 = vpop.permute.xlu0 %391
  %vm393 = vcmp.lt.s32.totalorder %v38, 111
  %v394 = vsel %vm393, %v390, %v392
  %v395 = vsel %vm393, %v388, %v390
  %v396 = vsel %vm393, %v386, %v388
  %v397 = vsel %vm393, %v392, %v386
  %vm398 = vmand %vm309, %vm139
  %vm399 = vmand %vm398, %vm141
  %v400 = vsel %vm399, 1, 0
  %v401 = vlaneseq
  %v402 = vshrl.u32 %v401, 7
  %v403 = vsub.s32 0, %v402
  %v404 = vrot.slane %v400, %v403
  %v405 = vlaneseq
  %v406 = vshrl.u32 %v405, 7
  %v407 = vsub.s32 1, %v406
  %v408 = vrot.slane %v400, %v407
  %v409 = vlaneseq
  %v410 = vshrl.u32 %v409, 7
  %v411 = vsub.s32 2, %v410
  %v412 = vrot.slane %v400, %v411
  %v413 = vlaneseq
  %v414 = vshrl.u32 %v413, 7
  %v415 = vsub.s32 3, %v414
  %v416 = vrot.slane %v400, %v415
  %vm417 = vcmp.eq.s32.totalorder %v404, 1
  %vm418 = vcmp.eq.s32.totalorder %v408, 1
  %vm419 = vcmp.eq.s32.totalorder %v412, 1
  %vm420 = vcmp.eq.s32.totalorder %v416, 1
  %v421 = vsel %vm417, %v396, 0.0
  %v422 = vsel %vm418, %v395, 0.0
  %v423 = vsel %vm419, %v394, 0.0
  %v424 = vsel %vm420, %v397, 0.0
  %425 = vst [vmem:[#allocation2 + $0x100] sm:$0xff] %v421
  %426 = vst [vmem:[#allocation2 + $0x108] sm:$0xff] %v422
  %427 = vst [vmem:[#allocation2 + $0x110] sm:$0xff] %v423
  %428 = vst [vmem:[#allocation2 + $0x118] sm:$0xff] %v424
  %v429 = vld [vmem:[%s3] sm:$0xff]
  %v430 = vld [vmem:[#allocation2] sm:$0xff]
  %v431 = vld [vmem:[#allocation2 + $0x8] sm:$0xff]
  %v432 = vld [vmem:[#allocation2 + $0x10] sm:$0xff]
  %v433 = vld [vmem:[#allocation2 + $0x18] sm:$0xff]
  %v434 = vld [vmem:[#allocation2 + $0x20] sm:$0xff]
  %v435 = vld [vmem:[#allocation2 + $0x28] sm:$0xff]
  %v436 = vld [vmem:[#allocation2 + $0x30] sm:$0xff]
  %v437 = vld [vmem:[#allocation2 + $0x38] sm:$0xff]
  %v438 = vld [vmem:[#allocation2 + $0x40] sm:$0xff]
  %v439 = vld [vmem:[#allocation2 + $0x48] sm:$0xff]
  %v440 = vld [vmem:[#allocation2 + $0x50] sm:$0xff]
  %v441 = vld [vmem:[#allocation2 + $0x58] sm:$0xff]
  %v442 = vld [vmem:[#allocation2 + $0x60] sm:$0xff]
  %v443 = vld [vmem:[#allocation2 + $0x68] sm:$0xff]
  %v444 = vld [vmem:[#allocation2 + $0x70] sm:$0xff]
  %v445 = vld [vmem:[#allocation2 + $0x78] sm:$0xff]
  %v446 = vld [vmem:[#allocation2 + $0x80] sm:$0xff]
  %v447 = vld [vmem:[#allocation2 + $0x88] sm:$0xff]
  %v448 = vld [vmem:[#allocation2 + $0x90] sm:$0xff]
  %v449 = vld [vmem:[#allocation2 + $0x98] sm:$0xff]
  %v450 = vld [vmem:[#allocation2 + $0xa0] sm:$0xff]
  %v451 = vld [vmem:[#allocation2 + $0xa8] sm:$0xff]
  %v452 = vld [vmem:[#allocation2 + $0xb0] sm:$0xff]
  %v453 = vld [vmem:[#allocation2 + $0xb8] sm:$0xff]
  %v454 = vld [vmem:[#allocation2 + $0xc0] sm:$0xff]
  %v455 = vld [vmem:[#allocation2 + $0xc8] sm:$0xff]
  %v456 = vld [vmem:[#allocation2 + $0xd0] sm:$0xff]
  %v457 = vld [vmem:[#allocation2 + $0xd8] sm:$0xff]
  %v458 = vld [vmem:[#allocation2 + $0xe0] sm:$0xff]
  %v459 = vld [vmem:[#allocation2 + $0xe8] sm:$0xff]
  %v460 = vld [vmem:[#allocation2 + $0xf0] sm:$0xff]
  %v461 = vld [vmem:[#allocation2 + $0xf8] sm:$0xff]
  %v462 = vld [vmem:[#allocation2 + $0x100] sm:$0xff]
  %v463 = vld [vmem:[#allocation2 + $0x108] sm:$0xff]
  %v464 = vld [vmem:[#allocation2 + $0x110] sm:$0xff]
  %v465 = vld [vmem:[#allocation2 + $0x118] sm:$0xff]
  %vm466 = vcmask 588800
  %v468 = vsel %vm466, %v429, 0
  %470 = vmatprep.subr.mxu0 %v431
  %471 = vmatpush1.msra.mxu0 %v430
  %472 = vmatprep.subr.mxu0 %v435
  %473 = vmatpush1.msra.mxu0 %v434
  %474 = vmatprep.subr.mxu0 %v439
  %475 = vmatpush1.msra.mxu0 %v438
  %476 = vmatprep.subr.mxu0 %v443
  %477 = vmatpush1.msra.mxu0 %v442
  %478 = vmatprep.subr.mxu0 %v447
  %479 = vmatpush1.msra.mxu0 %v446
  %480 = vmatprep.subr.mxu0 %v451
  %481 = vmatpush1.msra.mxu0 %v450
  %482 = vmatprep.subr.mxu0 %v455
  %483 = vmatpush1.msra.mxu0 %v454
  %484 = vmatprep.subr.mxu0 %v459
  %485 = vmatpush1.msra.mxu0 %v458
  %486 = vmatprep.subr.mxu0 %v463
  %487 = vmatpush1.msra.mxu0 %v462
  %488 = vmatprep.subr.mxu0 0.0
  %489 = vmatpush1.msra.mxu0 0.0
  %490 = vmatprep.subr.mxu0 0.0
  %491 = vmatpush1.msra.mxu0 0.0
  %492 = vmatprep.subr.mxu0 0.0
  %493 = vmatpush1.msra.mxu0 0.0
  %494 = vmatprep.subr.mxu0 0.0
  %495 = vmatpush1.msra.mxu0 0.0
  %496 = vmatprep.subr.mxu0 0.0
  %497 = vmatpush1.msra.mxu0 0.0
  %498 = vmatprep.subr.mxu0 0.0
  %499 = vmatpush1.msra.mxu0 0.0
  %500 = vmatprep.subr.mxu0 0.0
  %501 = vmatpush1.msra.mxu0 0.0
  %502 = vmatprep.subr.mxu0 0.0
  %503 = vmatpush1.msra.mxu0 0.0
  %504 = vmatprep.subr.mxu0 0.0
  %505 = vmatpush1.msra.mxu0 0.0
  %506 = vmatprep.subr.mxu0 0.0
  %507 = vmatpush1.msra.mxu0 0.0
  %508 = vmatprep.subr.mxu0 0.0
  %509 = vmatpush1.msra.mxu0 0.0
  %510 = vmatprep.subr.mxu0 0.0
  %511 = vmatpush1.msra.mxu0 0.0
  %512 = vmatprep.subr.mxu0 0.0
  %513 = vmatpush1.msra.mxu0 0.0
  %514 = vmatprep.subr.mxu0 0.0
  %515 = vmatpush1.msra.mxu0 0.0
  %516 = vmatprep.subr.mxu0 0.0
  %517 = vmatpush1.msra.mxu0 0.0
  %518 = vmatprep.subr.mxu0 0.0
  %519 = vmatpush1.msra.mxu0 0.0
  %520 = vmatprep.subr.mxu0 0.0
  %521 = vmatpush1.msra.mxu0 0.0
  %522 = vmatprep.subr.mxu0 0.0
  %523 = vmatpush1.msra.mxu0 0.0
  %524 = vmatprep.subr.mxu0 0.0
  %525 = vmatpush1.msra.mxu0 0.0
  %526 = vmatprep.subr.mxu0 0.0
  %527 = vmatpush1.msra.mxu0 0.0
  %528 = vmatprep.subr.mxu0 0.0
  %529 = vmatpush1.msra.mxu0 0.0
  %530 = vmatprep.subr.mxu0 0.0
  %531 = vmatpush1.msra.mxu0 0.0
  %532 = vmatprep.subr.mxu0 0.0
  %533 = vmatpush1.msra.mxu0 0.0
  %534 = vmatprep.mubr.f32.mxu0 0.0
  %535 = vmatmul.mubr.f32.gmra.mrb[0].mxu0 %v468
  %v536 = vpop.f32.mrb[0].mxu0
  %v537 = vadd.f32 0.0, %v536
  %v538 = vpop.f32.mrb[0].mxu0
  %v539 = vadd.f32 0.0, %v538
  %540 = vdwg.mxu0
  %541 = vmatprep.subr.mxu0 %v433
  %542 = vmatpush1.msra.mxu0 %v432
  %543 = vmatprep.subr.mxu0 %v437
  %544 = vmatpush1.msra.mxu0 %v436
  %545 = vmatprep.subr.mxu0 %v441
  %546 = vmatpush1.msra.mxu0 %v440
  %547 = vmatprep.subr.mxu0 %v445
  %548 = vmatpush1.msra.mxu0 %v444
  %549 = vmatprep.subr.mxu0 %v449
  %550 = vmatpush1.msra.mxu0 %v448
  %551 = vmatprep.subr.mxu0 %v453
  %552 = vmatpush1.msra.mxu0 %v452
  %553 = vmatprep.subr.mxu0 %v457
  %554 = vmatpush1.msra.mxu0 %v456
  %555 = vmatprep.subr.mxu0 %v461
  %556 = vmatpush1.msra.mxu0 %v460
  %557 = vmatprep.subr.mxu0 %v465
  %558 = vmatpush1.msra.mxu0 %v464
  %559 = vmatprep.subr.mxu0 0.0
  %560 = vmatpush1.msra.mxu0 0.0
  %561 = vmatprep.subr.mxu0 0.0
  %562 = vmatpush1.msra.mxu0 0.0
  %563 = vmatprep.subr.mxu0 0.0
  %564 = vmatpush1.msra.mxu0 0.0
  %565 = vmatprep.subr.mxu0 0.0
  %566 = vmatpush1.msra.mxu0 0.0
  %567 = vmatprep.subr.mxu0 0.0
  %568 = vmatpush1.msra.mxu0 0.0
  %569 = vmatprep.subr.mxu0 0.0
  %570 = vmatpush1.msra.mxu0 0.0
  %571 = vmatprep.subr.mxu0 0.0
  %572 = vmatpush1.msra.mxu0 0.0
  %573 = vmatprep.subr.mxu0 0.0
  %574 = vmatpush1.msra.mxu0 0.0
  %575 = vmatprep.subr.mxu0 0.0
  %576 = vmatpush1.msra.mxu0 0.0
  %577 = vmatprep.subr.mxu0 0.0
  %578 = vmatpush1.msra.mxu0 0.0
  %579 = vmatprep.subr.mxu0 0.0
  %580 = vmatpush1.msra.mxu0 0.0
  %581 = vmatprep.subr.mxu0 0.0
  %582 = vmatpush1.msra.mxu0 0.0
  %583 = vmatprep.subr.mxu0 0.0
  %584 = vmatpush1.msra.mxu0 0.0
  %585 = vmatprep.subr.mxu0 0.0
  %586 = vmatpush1.msra.mxu0 0.0
  %587 = vmatprep.subr.mxu0 0.0
  %588 = vmatpush1.msra.mxu0 0.0
  %589 = vmatprep.subr.mxu0 0.0
  %590 = vmatpush1.msra.mxu0 0.0
  %591 = vmatprep.subr.mxu0 0.0
  %592 = vmatpush1.msra.mxu0 0.0
  %593 = vmatprep.subr.mxu0 0.0
  %594 = vmatpush1.msra.mxu0 0.0
  %595 = vmatprep.subr.mxu0 0.0
  %596 = vmatpush1.msra.mxu0 0.0
  %597 = vmatprep.subr.mxu0 0.0
  %598 = vmatpush1.msra.mxu0 0.0
  %599 = vmatprep.subr.mxu0 0.0
  %600 = vmatpush1.msra.mxu0 0.0
  %601 = vmatprep.subr.mxu0 0.0
  %602 = vmatpush1.msra.mxu0 0.0
  %603 = vmatprep.subr.mxu0 0.0
  %604 = vmatpush1.msra.mxu0 0.0
  %605 = vmatprep.mubr.f32.mxu0 0.0
  %606 = vmatmul.mubr.f32.gmra.mrb[0].mxu0 %v468
  %v607 = vpop.f32.mrb[0].mxu0
  %v608 = vadd.f32 0.0, %v607
  %v609 = vpop.f32.mrb[0].mxu0
  %v610 = vadd.f32 0.0, %v609
  %611 = vdwg.mxu0
  %v612 = vmax.f32 %v537, 0.0
  %v613 = vmax.f32 %v539, 0.0
  %v614 = vmax.f32 %v608, 0.0
  %v615 = vmax.f32 %v610, 0.0
  %616 = vrot.lane.b32.xlu0 %v612, 17
  %v617 = vpop.permute.xlu0 %616
  %618 = vrot.lane.b32.xlu0 %v613, 17
  %v619 = vpop.permute.xlu0 %618
  %620 = vrot.lane.b32.xlu0 %v614, 17
  %v621 = vpop.permute.xlu0 %620
  %622 = vrot.lane.b32.xlu0 %v615, 17
  %v623 = vpop.permute.xlu0 %622
  %v624 = vsel %vm39, %v621, %v623
  %v625 = vsel %vm39, %v619, %v621
  %v626 = vsel %vm39, %v617, %v619
  %v627 = vsel %vm39, %v623, %v617
  %v628 = vsel %vm68, %v627, 0.0
  %v629 = vsel %vm69, %v626, 0.0
  %v630 = vsel %vm70, %v625, 0.0
  %v631 = vsel %vm71, %v624, 0.0
  %632 = vst [vmem:[#allocation2] sm:$0xff] %v628
  %633 = vst [vmem:[#allocation2 + $0x8] sm:$0xff] %v629
  %634 = vst [vmem:[#allocation2 + $0x10] sm:$0xff] %v630
  %635 = vst [vmem:[#allocation2 + $0x18] sm:$0xff] %v631
  %636 = vrot.lane.b32.xlu0 %v612, 16
  %v637 = vpop.permute.xlu0 %636
  %638 = vrot.lane.b32.xlu0 %v613, 16
  %v639 = vpop.permute.xlu0 %638
  %640 = vrot.lane.b32.xlu0 %v614, 16
  %v641 = vpop.permute.xlu0 %640
  %642 = vrot.lane.b32.xlu0 %v615, 16
  %v643 = vpop.permute.xlu0 %642
  %v644 = vsel %vm88, %v641, %v643
  %v645 = vsel %vm88, %v639, %v641
  %v646 = vsel %vm88, %v637, %v639
  %v647 = vsel %vm88, %v643, %v637
  %v648 = vsel %vm114, %v647, 0.0
  %v649 = vsel %vm115, %v646, 0.0
  %v650 = vsel %vm116, %v645, 0.0
  %v651 = vsel %vm117, %v644, 0.0
  %652 = vst [vmem:[#allocation2 + $0x20] sm:$0xff] %v648
  %653 = vst [vmem:[#allocation2 + $0x28] sm:$0xff] %v649
  %654 = vst [vmem:[#allocation2 + $0x30] sm:$0xff] %v650
  %655 = vst [vmem:[#allocation2 + $0x38] sm:$0xff] %v651
  %656 = vrot.lane.b32.xlu0 %v612, 15
  %v657 = vpop.permute.xlu0 %656
  %658 = vrot.lane.b32.xlu0 %v613, 15
  %v659 = vpop.permute.xlu0 %658
  %660 = vrot.lane.b32.xlu0 %v614, 15
  %v661 = vpop.permute.xlu0 %660
  %662 = vrot.lane.b32.xlu0 %v615, 15
  %v663 = vpop.permute.xlu0 %662
  %v664 = vsel %vm134, %v661, %v663
  %v665 = vsel %vm134, %v659, %v661
  %v666 = vsel %vm134, %v657, %v659
  %v667 = vsel %vm134, %v663, %v657
  %v668 = vsel %vm160, %v667, 0.0
  %v669 = vsel %vm161, %v666, 0.0
  %v670 = vsel %vm162, %v665, 0.0
  %v671 = vsel %vm163, %v664, 0.0
  %672 = vst [vmem:[#allocation2 + $0x40] sm:$0xff] %v668
  %673 = vst [vmem:[#allocation2 + $0x48] sm:$0xff] %v669
  %674 = vst [vmem:[#allocation2 + $0x50] sm:$0xff] %v670
  %675 = vst [vmem:[#allocation2 + $0x58] sm:$0xff] %v671
  %676 = vrot.lane.b32.xlu0 %v612, 1
  %v677 = vpop.permute.xlu0 %676
  %678 = vrot.lane.b32.xlu0 %v613, 1
  %v679 = vpop.permute.xlu0 %678
  %680 = vrot.lane.b32.xlu0 %v614, 1
  %v681 = vpop.permute.xlu0 %680
  %682 = vrot.lane.b32.xlu0 %v615, 1
  %v683 = vpop.permute.xlu0 %682
  %v684 = vsel %vm180, %v681, %v683
  %v685 = vsel %vm180, %v679, %v681
  %v686 = vsel %vm180, %v677, %v679
  %v687 = vsel %vm180, %v683, %v677
  %v688 = vsel %vm207, %v687, 0.0
  %v689 = vsel %vm208, %v686, 0.0
  %v690 = vsel %vm209, %v685, 0.0
  %v691 = vsel %vm210, %v684, 0.0
  %692 = vst [vmem:[#allocation2 + $0x60] sm:$0xff] %v688
  %693 = vst [vmem:[#allocation2 + $0x68] sm:$0xff] %v689
  %694 = vst [vmem:[#allocation2 + $0x70] sm:$0xff] %v690
  %695 = vst [vmem:[#allocation2 + $0x78] sm:$0xff] %v691
  %v696 = vsel %vm238, %v612, 0.0
  %v697 = vsel %vm239, %v613, 0.0
  %v698 = vsel %vm240, %v614, 0.0
  %v699 = vsel %vm241, %v615, 0.0
  %700 = vst [vmem:[#allocation2 + $0x80] sm:$0xff] %v696
  %701 = vst [vmem:[#allocation2 + $0x88] sm:$0xff] %v697
  %702 = vst [vmem:[#allocation2 + $0x90] sm:$0xff] %v698
  %703 = vst [vmem:[#allocation2 + $0x98] sm:$0xff] %v699
  %704 = vrot.lane.b32.xlu0 %v612, 127
  %v705 = vpop.permute.xlu0 %704
  %706 = vrot.lane.b32.xlu0 %v613, 127
  %v707 = vpop.permute.xlu0 %706
  %708 = vrot.lane.b32.xlu0 %v614, 127
  %v709 = vpop.permute.xlu0 %708
  %710 = vrot.lane.b32.xlu0 %v615, 127
  %v711 = vpop.permute.xlu0 %710
  %v712 = vsel %vm258, %v709, %v711
  %v713 = vsel %vm258, %v707, %v709
  %v714 = vsel %vm258, %v705, %v707
  %v715 = vsel %vm258, %v711, %v705
  %v716 = vsel %vm282, %v714, 0.0
  %v717 = vsel %vm283, %v713, 0.0
  %v718 = vsel %vm284, %v712, 0.0
  %v719 = vsel %vm285, %v715, 0.0
  %720 = vst [vmem:[#allocation2 + $0xa0] sm:$0xff] %v716
  %721 = vst [vmem:[#allocation2 + $0xa8] sm:$0xff] %v717
  %722 = vst [vmem:[#allocation2 + $0xb0] sm:$0xff] %v718
  %723 = vst [vmem:[#allocation2 + $0xb8] sm:$0xff] %v719
  %724 = vrot.lane.b32.xlu0 %v612, 113
  %v725 = vpop.permute.xlu0 %724
  %726 = vrot.lane.b32.xlu0 %v613, 113
  %v727 = vpop.permute.xlu0 %726
  %728 = vrot.lane.b32.xlu0 %v614, 113
  %v729 = vpop.permute.xlu0 %728
  %730 = vrot.lane.b32.xlu0 %v615, 113
  %v731 = vpop.permute.xlu0 %730
  %v732 = vsel %vm302, %v729, %v731
  %v733 = vsel %vm302, %v727, %v729
  %v734 = vsel %vm302, %v725, %v727
  %v735 = vsel %vm302, %v731, %v725
  %v736 = vsel %vm329, %v734, 0.0
  %v737 = vsel %vm330, %v733, 0.0
  %v738 = vsel %vm331, %v732, 0.0
  %v739 = vsel %vm332, %v735, 0.0
  %740 = vst [vmem:[#allocation2 + $0xc0] sm:$0xff] %v736
  %741 = vst [vmem:[#allocation2 + $0xc8] sm:$0xff] %v737
  %742 = vst [vmem:[#allocation2 + $0xd0] sm:$0xff] %v738
  %743 = vst [vmem:[#allocation2 + $0xd8] sm:$0xff] %v739
  %744 = vrot.lane.b32.xlu0 %v612, 112
  %v745 = vpop.permute.xlu0 %744
  %746 = vrot.lane.b32.xlu0 %v613, 112
  %v747 = vpop.permute.xlu0 %746
  %748 = vrot.lane.b32.xlu0 %v614, 112
  %v749 = vpop.permute.xlu0 %748
  %750 = vrot.lane.b32.xlu0 %v615, 112
  %v751 = vpop.permute.xlu0 %750
  %v752 = vsel %vm349, %v749, %v751
  %v753 = vsel %vm349, %v747, %v749
  %v754 = vsel %vm349, %v745, %v747
  %v755 = vsel %vm349, %v751, %v745
  %v756 = vsel %vm373, %v754, 0.0
  %v757 = vsel %vm374, %v753, 0.0
  %v758 = vsel %vm375, %v752, 0.0
  %v759 = vsel %vm376, %v755, 0.0
  %760 = vst [vmem:[#allocation2 + $0xe0] sm:$0xff] %v756
  %761 = vst [vmem:[#allocation2 + $0xe8] sm:$0xff] %v757
  %762 = vst [vmem:[#allocation2 + $0xf0] sm:$0xff] %v758
  %763 = vst [vmem:[#allocation2 + $0xf8] sm:$0xff] %v759
  %764 = vrot.lane.b32.xlu0 %v612, 111
  %v765 = vpop.permute.xlu0 %764
  %766 = vrot.lane.b32.xlu0 %v613, 111
  %v767 = vpop.permute.xlu0 %766
  %768 = vrot.lane.b32.xlu0 %v614, 111
  %v769 = vpop.permute.xlu0 %768
  %770 = vrot.lane.b32.xlu0 %v615, 111
  %v771 = vpop.permute.xlu0 %770
  %v772 = vsel %vm393, %v769, %v771
  %v773 = vsel %vm393, %v767, %v769
  %v774 = vsel %vm393, %v765, %v767
  %v775 = vsel %vm393, %v771, %v765
  %v776 = vsel %vm417, %v774, 0.0
  %v777 = vsel %vm418, %v773, 0.0
  %v778 = vsel %vm419, %v772, 0.0
  %v779 = vsel %vm420, %v775, 0.0
  %780 = vst [vmem:[#allocation2 + $0x100] sm:$0xff] %v776
  %781 = vst [vmem:[#allocation2 + $0x108] sm:$0xff] %v777
  %782 = vst [vmem:[#allocation2 + $0x110] sm:$0xff] %v778
  %783 = vst [vmem:[#allocation2 + $0x118] sm:$0xff] %v779
  %v784 = vld [vmem:[%s4] sm:$0xff]
  %v785 = vld [vmem:[#allocation2] sm:$0xff]
  %v786 = vld [vmem:[#allocation2 + $0x8] sm:$0xff]
  %v787 = vld [vmem:[#allocation2 + $0x10] sm:$0xff]
  %v788 = vld [vmem:[#allocation2 + $0x18] sm:$0xff]
  %v789 = vld [vmem:[#allocation2 + $0x20] sm:$0xff]
  %v790 = vld [vmem:[#allocation2 + $0x28] sm:$0xff]
  %v791 = vld [vmem:[#allocation2 + $0x30] sm:$0xff]
  %v792 = vld [vmem:[#allocation2 + $0x38] sm:$0xff]
  %v793 = vld [vmem:[#allocation2 + $0x40] sm:$0xff]
  %v794 = vld [vmem:[#allocation2 + $0x48] sm:$0xff]
  %v795 = vld [vmem:[#allocation2 + $0x50] sm:$0xff]
  %v796 = vld [vmem:[#allocation2 + $0x58] sm:$0xff]
  %v797 = vld [vmem:[#allocation2 + $0x60] sm:$0xff]
  %v798 = vld [vmem:[#allocation2 + $0x68] sm:$0xff]
  %v799 = vld [vmem:[#allocation2 + $0x70] sm:$0xff]
  %v800 = vld [vmem:[#allocation2 + $0x78] sm:$0xff]
  %v801 = vld [vmem:[#allocation2 + $0x80] sm:$0xff]
  %v802 = vld [vmem:[#allocation2 + $0x88] sm:$0xff]
  %v803 = vld [vmem:[#allocation2 + $0x90] sm:$0xff]
  %v804 = vld [vmem:[#allocation2 + $0x98] sm:$0xff]
  %v805 = vld [vmem:[#allocation2 + $0xa0] sm:$0xff]
  %v806 = vld [vmem:[#allocation2 + $0xa8] sm:$0xff]
  %v807 = vld [vmem:[#allocation2 + $0xb0] sm:$0xff]
  %v808 = vld [vmem:[#allocation2 + $0xb8] sm:$0xff]
  %v809 = vld [vmem:[#allocation2 + $0xc0] sm:$0xff]
  %v810 = vld [vmem:[#allocation2 + $0xc8] sm:$0xff]
  %v811 = vld [vmem:[#allocation2 + $0xd0] sm:$0xff]
  %v812 = vld [vmem:[#allocation2 + $0xd8] sm:$0xff]
  %v813 = vld [vmem:[#allocation2 + $0xe0] sm:$0xff]
  %v814 = vld [vmem:[#allocation2 + $0xe8] sm:$0xff]
  %v815 = vld [vmem:[#allocation2 + $0xf0] sm:$0xff]
  %v816 = vld [vmem:[#allocation2 + $0xf8] sm:$0xff]
  %v817 = vld [vmem:[#allocation2 + $0x100] sm:$0xff]
  %v818 = vld [vmem:[#allocation2 + $0x108] sm:$0xff]
  %v819 = vld [vmem:[#allocation2 + $0x110] sm:$0xff]
  %v820 = vld [vmem:[#allocation2 + $0x118] sm:$0xff]
  %v822 = vsel %vm466, %v784, 0
  %824 = vmatprep.subr.mxu0 %v786
  %825 = vmatpush1.msra.mxu0 %v785
  %826 = vmatprep.subr.mxu0 %v790
  %827 = vmatpush1.msra.mxu0 %v789
  %828 = vmatprep.subr.mxu0 %v794
  %829 = vmatpush1.msra.mxu0 %v793
  %830 = vmatprep.subr.mxu0 %v798
  %831 = vmatpush1.msra.mxu0 %v797
  %832 = vmatprep.subr.mxu0 %v802
  %833 = vmatpush1.msra.mxu0 %v801
  %834 = vmatprep.subr.mxu0 %v806
  %835 = vmatpush1.msra.mxu0 %v805
  %836 = vmatprep.subr.mxu0 %v810
  %837 = vmatpush1.msra.mxu0 %v809
  %838 = vmatprep.subr.mxu0 %v814
  %839 = vmatpush1.msra.mxu0 %v813
  %840 = vmatprep.subr.mxu0 %v818
  %841 = vmatpush1.msra.mxu0 %v817
  %842 = vmatprep.subr.mxu0 0.0
  %843 = vmatpush1.msra.mxu0 0.0
  %844 = vmatprep.subr.mxu0 0.0
  %845 = vmatpush1.msra.mxu0 0.0
  %846 = vmatprep.subr.mxu0 0.0
  %847 = vmatpush1.msra.mxu0 0.0
  %848 = vmatprep.subr.mxu0 0.0
  %849 = vmatpush1.msra.mxu0 0.0
  %850 = vmatprep.subr.mxu0 0.0
  %851 = vmatpush1.msra.mxu0 0.0
  %852 = vmatprep.subr.mxu0 0.0
  %853 = vmatpush1.msra.mxu0 0.0
  %854 = vmatprep.subr.mxu0 0.0
  %855 = vmatpush1.msra.mxu0 0.0
  %856 = vmatprep.subr.mxu0 0.0
  %857 = vmatpush1.msra.mxu0 0.0
  %858 = vmatprep.subr.mxu0 0.0
  %859 = vmatpush1.msra.mxu0 0.0
  %860 = vmatprep.subr.mxu0 0.0
  %861 = vmatpush1.msra.mxu0 0.0
  %862 = vmatprep.subr.mxu0 0.0
  %863 = vmatpush1.msra.mxu0 0.0
  %864 = vmatprep.subr.mxu0 0.0
  %865 = vmatpush1.msra.mxu0 0.0
  %866 = vmatprep.subr.mxu0 0.0
  %867 = vmatpush1.msra.mxu0 0.0
  %868 = vmatprep.subr.mxu0 0.0
  %869 = vmatpush1.msra.mxu0 0.0
  %870 = vmatprep.subr.mxu0 0.0
  %871 = vmatpush1.msra.mxu0 0.0
  %872 = vmatprep.subr.mxu0 0.0
  %873 = vmatpush1.msra.mxu0 0.0
  %874 = vmatprep.subr.mxu0 0.0
  %875 = vmatpush1.msra.mxu0 0.0
  %876 = vmatprep.subr.mxu0 0.0
  %877 = vmatpush1.msra.mxu0 0.0
  %878 = vmatprep.subr.mxu0 0.0
  %879 = vmatpush1.msra.mxu0 0.0
  %880 = vmatprep.subr.mxu0 0.0
  %881 = vmatpush1.msra.mxu0 0.0
  %882 = vmatprep.subr.mxu0 0.0
  %883 = vmatpush1.msra.mxu0 0.0
  %884 = vmatprep.subr.mxu0 0.0
  %885 = vmatpush1.msra.mxu0 0.0
  %886 = vmatprep.subr.mxu0 0.0
  %887 = vmatpush1.msra.mxu0 0.0
  %888 = vmatprep.mubr.f32.mxu0 0.0
  %889 = vmatmul.mubr.f32.gmra.mrb[0].mxu0 %v822
  %v890 = vpop.f32.mrb[0].mxu0
  %v891 = vadd.f32 0.0, %v890
  %v892 = vpop.f32.mrb[0].mxu0
  %v893 = vadd.f32 0.0, %v892
  %894 = vdwg.mxu0
  %895 = vmatprep.subr.mxu0 %v788
  %896 = vmatpush1.msra.mxu0 %v787
  %897 = vmatprep.subr.mxu0 %v792
  %898 = vmatpush1.msra.mxu0 %v791
  %899 = vmatprep.subr.mxu0 %v796
  %900 = vmatpush1.msra.mxu0 %v795
  %901 = vmatprep.subr.mxu0 %v800
  %902 = vmatpush1.msra.mxu0 %v799
  %903 = vmatprep.subr.mxu0 %v804
  %904 = vmatpush1.msra.mxu0 %v803
  %905 = vmatprep.subr.mxu0 %v808
  %906 = vmatpush1.msra.mxu0 %v807
  %907 = vmatprep.subr.mxu0 %v812
  %908 = vmatpush1.msra.mxu0 %v811
  %909 = vmatprep.subr.mxu0 %v816
  %910 = vmatpush1.msra.mxu0 %v815
  %911 = vmatprep.subr.mxu0 %v820
  %912 = vmatpush1.msra.mxu0 %v819
  %913 = vmatprep.subr.mxu0 0.0
  %914 = vmatpush1.msra.mxu0 0.0
  %915 = vmatprep.subr.mxu0 0.0
  %916 = vmatpush1.msra.mxu0 0.0
  %917 = vmatprep.subr.mxu0 0.0
  %918 = vmatpush1.msra.mxu0 0.0
  %919 = vmatprep.subr.mxu0 0.0
  %920 = vmatpush1.msra.mxu0 0.0
  %921 = vmatprep.subr.mxu0 0.0
  %922 = vmatpush1.msra.mxu0 0.0
  %923 = vmatprep.subr.mxu0 0.0
  %924 = vmatpush1.msra.mxu0 0.0
  %925 = vmatprep.subr.mxu0 0.0
  %926 = vmatpush1.msra.mxu0 0.0
  %927 = vmatprep.subr.mxu0 0.0
  %928 = vmatpush1.msra.mxu0 0.0
  %929 = vmatprep.subr.mxu0 0.0
  %930 = vmatpush1.msra.mxu0 0.0
  %931 = vmatprep.subr.mxu0 0.0
  %932 = vmatpush1.msra.mxu0 0.0
  %933 = vmatprep.subr.mxu0 0.0
  %934 = vmatpush1.msra.mxu0 0.0
  %935 = vmatprep.subr.mxu0 0.0
  %936 = vmatpush1.msra.mxu0 0.0
  %937 = vmatprep.subr.mxu0 0.0
  %938 = vmatpush1.msra.mxu0 0.0
  %939 = vmatprep.subr.mxu0 0.0
  %940 = vmatpush1.msra.mxu0 0.0
  %941 = vmatprep.subr.mxu0 0.0
  %942 = vmatpush1.msra.mxu0 0.0
  %943 = vmatprep.subr.mxu0 0.0
  %944 = vmatpush1.msra.mxu0 0.0
  %945 = vmatprep.subr.mxu0 0.0
  %946 = vmatpush1.msra.mxu0 0.0
  %947 = vmatprep.subr.mxu0 0.0
  %948 = vmatpush1.msra.mxu0 0.0
  %949 = vmatprep.subr.mxu0 0.0
  %950 = vmatpush1.msra.mxu0 0.0
  %951 = vmatprep.subr.mxu0 0.0
  %952 = vmatpush1.msra.mxu0 0.0
  %953 = vmatprep.subr.mxu0 0.0
  %954 = vmatpush1.msra.mxu0 0.0
  %955 = vmatprep.subr.mxu0 0.0
  %956 = vmatpush1.msra.mxu0 0.0
  %957 = vmatprep.subr.mxu0 0.0
  %958 = vmatpush1.msra.mxu0 0.0
  %959 = vmatprep.mubr.f32.mxu0 0.0
  %960 = vmatmul.mubr.f32.gmra.mrb[0].mxu0 %v822
  %v961 = vpop.f32.mrb[0].mxu0
  %v962 = vadd.f32 0.0, %v961
  %v963 = vpop.f32.mrb[0].mxu0
  %v964 = vadd.f32 0.0, %v963
  %965 = vdwg.mxu0
  %v966 = vmax.f32 %v891, 0.0
  %v967 = vmax.f32 %v893, 0.0
  %v968 = vmax.f32 %v962, 0.0
  %v969 = vmax.f32 %v964, 0.0
  %970 = vrot.lane.b32.xlu0 %v966, 17
  %v971 = vpop.permute.xlu0 %970
  %972 = vrot.lane.b32.xlu0 %v967, 17
  %v973 = vpop.permute.xlu0 %972
  %974 = vrot.lane.b32.xlu0 %v968, 17
  %v975 = vpop.permute.xlu0 %974
  %976 = vrot.lane.b32.xlu0 %v969, 17
  %v977 = vpop.permute.xlu0 %976
  %v978 = vsel %vm39, %v975, %v977
  %v979 = vsel %vm39, %v973, %v975
  %v980 = vsel %vm39, %v971, %v973
  %v981 = vsel %vm39, %v977, %v971
  %v982 = vsel %vm68, %v981, 0.0
  %v983 = vsel %vm69, %v980, 0.0
  %v984 = vsel %vm70, %v979, 0.0
  %v985 = vsel %vm71, %v978, 0.0
  %986 = vst [vmem:[#allocation2] sm:$0xff] %v982
  %987 = vst [vmem:[#allocation2 + $0x8] sm:$0xff] %v983
  %988 = vst [vmem:[#allocation2 + $0x10] sm:$0xff] %v984
  %989 = vst [vmem:[#allocation2 + $0x18] sm:$0xff] %v985
  %990 = vrot.lane.b32.xlu0 %v966, 16
  %v991 = vpop.permute.xlu0 %990
  %992 = vrot.lane.b32.xlu0 %v967, 16
  %v993 = vpop.permute.xlu0 %992
  %994 = vrot.lane.b32.xlu0 %v968, 16
  %v995 = vpop.permute.xlu0 %994
  %996 = vrot.lane.b32.xlu0 %v969, 16
  %v997 = vpop.permute.xlu0 %996
  %v998 = vsel %vm88, %v995, %v997
  %v999 = vsel %vm88, %v993, %v995
  %v1000 = vsel %vm88, %v991, %v993
  %v1001 = vsel %vm88, %v997, %v991
  %v1002 = vsel %vm114, %v1001, 0.0
  %v1003 = vsel %vm115, %v1000, 0.0
  %v1004 = vsel %vm116, %v999, 0.0
  %v1005 = vsel %vm117, %v998, 0.0
  %1006 = vst [vmem:[#allocation2 + $0x20] sm:$0xff] %v1002
  %1007 = vst [vmem:[#allocation2 + $0x28] sm:$0xff] %v1003
  %1008 = vst [vmem:[#allocation2 + $0x30] sm:$0xff] %v1004
  %1009 = vst [vmem:[#allocation2 + $0x38] sm:$0xff] %v1005
  %1010 = vrot.lane.b32.xlu0 %v966, 15
  %v1011 = vpop.permute.xlu0 %1010
  %1012 = vrot.lane.b32.xlu0 %v967, 15
  %v1013 = vpop.permute.xlu0 %1012
  %1014 = vrot.lane.b32.xlu0 %v968, 15
  %v1015 = vpop.permute.xlu0 %1014
  %1016 = vrot.lane.b32.xlu0 %v969, 15
  %v1017 = vpop.permute.xlu0 %1016
  %v1018 = vsel %vm134, %v1015, %v1017
  %v1019 = vsel %vm134, %v1013, %v1015
  %v1020 = vsel %vm134, %v1011, %v1013
  %v1021 = vsel %vm134, %v1017, %v1011
  %v1022 = vsel %vm160, %v1021, 0.0
  %v1023 = vsel %vm161, %v1020, 0.0
  %v1024 = vsel %vm162, %v1019, 0.0
  %v1025 = vsel %vm163, %v1018, 0.0
  %1026 = vst [vmem:[#allocation2 + $0x40] sm:$0xff] %v1022
  %1027 = vst [vmem:[#allocation2 + $0x48] sm:$0xff] %v1023
  %1028 = vst [vmem:[#allocation2 + $0x50] sm:$0xff] %v1024
  %1029 = vst [vmem:[#allocation2 + $0x58] sm:$0xff] %v1025
  %1030 = vrot.lane.b32.xlu0 %v966, 1
  %v1031 = vpop.permute.xlu0 %1030
  %1032 = vrot.lane.b32.xlu0 %v967, 1
  %v1033 = vpop.permute.xlu0 %1032
  %1034 = vrot.lane.b32.xlu0 %v968, 1
  %v1035 = vpop.permute.xlu0 %1034
  %1036 = vrot.lane.b32.xlu0 %v969, 1
  %v1037 = vpop.permute.xlu0 %1036
  %v1038 = vsel %vm180, %v1035, %v1037
  %v1039 = vsel %vm180, %v1033, %v1035
  %v1040 = vsel %vm180, %v1031, %v1033
  %v1041 = vsel %vm180, %v1037, %v1031
  %v1042 = vsel %vm207, %v1041, 0.0
  %v1043 = vsel %vm208, %v1040, 0.0
  %v1044 = vsel %vm209, %v1039, 0.0
  %v1045 = vsel %vm210, %v1038, 0.0
  %1046 = vst [vmem:[#allocation2 + $0x60] sm:$0xff] %v1042
  %1047 = vst [vmem:[#allocation2 + $0x68] sm:$0xff] %v1043
  %1048 = vst [vmem:[#allocation2 + $0x70] sm:$0xff] %v1044
  %1049 = vst [vmem:[#allocation2 + $0x78] sm:$0xff] %v1045
  %v1050 = vsel %vm238, %v966, 0.0
  %v1051 = vsel %vm239, %v967, 0.0
  %v1052 = vsel %vm240, %v968, 0.0
  %v1053 = vsel %vm241, %v969, 0.0
  %1054 = vst [vmem:[#allocation2 + $0x80] sm:$0xff] %v1050
  %1055 = vst [vmem:[#allocation2 + $0x88] sm:$0xff] %v1051
  %1056 = vst [vmem:[#allocation2 + $0x90] sm:$0xff] %v1052
  %1057 = vst [vmem:[#allocation2 + $0x98] sm:$0xff] %v1053
  %1058 = vrot.lane.b32.xlu0 %v966, 127
  %v1059 = vpop.permute.xlu0 %1058
  %1060 = vrot.lane.b32.xlu0 %v967, 127
  %v1061 = vpop.permute.xlu0 %1060
  %1062 = vrot.lane.b32.xlu0 %v968, 127
  %v1063 = vpop.permute.xlu0 %1062
  %1064 = vrot.lane.b32.xlu0 %v969, 127
  %v1065 = vpop.permute.xlu0 %1064
  %v1066 = vsel %vm258, %v1063, %v1065
  %v1067 = vsel %vm258, %v1061, %v1063
  %v1068 = vsel %vm258, %v1059, %v1061
  %v1069 = vsel %vm258, %v1065, %v1059
  %v1070 = vsel %vm282, %v1068, 0.0
  %v1071 = vsel %vm283, %v1067, 0.0
  %v1072 = vsel %vm284, %v1066, 0.0
  %v1073 = vsel %vm285, %v1069, 0.0
  %1074 = vst [vmem:[#allocation2 + $0xa0] sm:$0xff] %v1070
  %1075 = vst [vmem:[#allocation2 + $0xa8] sm:$0xff] %v1071
  %1076 = vst [vmem:[#allocation2 + $0xb0] sm:$0xff] %v1072
  %1077 = vst [vmem:[#allocation2 + $0xb8] sm:$0xff] %v1073
  %1078 = vrot.lane.b32.xlu0 %v966, 113
  %v1079 = vpop.permute.xlu0 %1078
  %1080 = vrot.lane.b32.xlu0 %v967, 113
  %v1081 = vpop.permute.xlu0 %1080
  %1082 = vrot.lane.b32.xlu0 %v968, 113
  %v1083 = vpop.permute.xlu0 %1082
  %1084 = vrot.lane.b32.xlu0 %v969, 113
  %v1085 = vpop.permute.xlu0 %1084
  %v1086 = vsel %vm302, %v1083, %v1085
  %v1087 = vsel %vm302, %v1081, %v1083
  %v1088 = vsel %vm302, %v1079, %v1081
  %v1089 = vsel %vm302, %v1085, %v1079
  %v1090 = vsel %vm329, %v1088, 0.0
  %v1091 = vsel %vm330, %v1087, 0.0
  %v1092 = vsel %vm331, %v1086, 0.0
  %v1093 = vsel %vm332, %v1089, 0.0
  %1094 = vst [vmem:[#allocation2 + $0xc0] sm:$0xff] %v1090
  %1095 = vst [vmem:[#allocation2 + $0xc8] sm:$0xff] %v1091
  %1096 = vst [vmem:[#allocation2 + $0xd0] sm:$0xff] %v1092
  %1097 = vst [vmem:[#allocation2 + $0xd8] sm:$0xff] %v1093
  %1098 = vrot.lane.b32.xlu0 %v966, 112
  %v1099 = vpop.permute.xlu0 %1098
  %1100 = vrot.lane.b32.xlu0 %v967, 112
  %v1101 = vpop.permute.xlu0 %1100
  %1102 = vrot.lane.b32.xlu0 %v968, 112
  %v1103 = vpop.permute.xlu0 %1102
  %1104 = vrot.lane.b32.xlu0 %v969, 112
  %v1105 = vpop.permute.xlu0 %1104
  %v1106 = vsel %vm349, %v1103, %v1105
  %v1107 = vsel %vm349, %v1101, %v1103
  %v1108 = vsel %vm349, %v1099, %v1101
  %v1109 = vsel %vm349, %v1105, %v1099
  %v1110 = vsel %vm373, %v1108, 0.0
  %v1111 = vsel %vm374, %v1107, 0.0
  %v1112 = vsel %vm375, %v1106, 0.0
  %v1113 = vsel %vm376, %v1109, 0.0
  %1114 = vst [vmem:[#allocation2 + $0xe0] sm:$0xff] %v1110
  %1115 = vst [vmem:[#allocation2 + $0xe8] sm:$0xff] %v1111
  %1116 = vst [vmem:[#allocation2 + $0xf0] sm:$0xff] %v1112
  %1117 = vst [vmem:[#allocation2 + $0xf8] sm:$0xff] %v1113
  %1118 = vrot.lane.b32.xlu0 %v966, 111
  %v1119 = vpop.permute.xlu0 %1118
  %1120 = vrot.lane.b32.xlu0 %v967, 111
  %v1121 = vpop.permute.xlu0 %1120
  %1122 = vrot.lane.b32.xlu0 %v968, 111
  %v1123 = vpop.permute.xlu0 %1122
  %1124 = vrot.lane.b32.xlu0 %v969, 111
  %v1125 = vpop.permute.xlu0 %1124
  %v1126 = vsel %vm393, %v1123, %v1125
  %v1127 = vsel %vm393, %v1121, %v1123
  %v1128 = vsel %vm393, %v1119, %v1121
  %v1129 = vsel %vm393, %v1125, %v1119
  %v1130 = vsel %vm417, %v1128, 0.0
  %v1131 = vsel %vm418, %v1127, 0.0
  %v1132 = vsel %vm419, %v1126, 0.0
  %v1133 = vsel %vm420, %v1129, 0.0
  %1134 = vst [vmem:[#allocation2 + $0x100] sm:$0xff] %v1130
  %1135 = vst [vmem:[#allocation2 + $0x108] sm:$0xff] %v1131
  %1136 = vst [vmem:[#allocation2 + $0x110] sm:$0xff] %v1132
  %1137 = vst [vmem:[#allocation2 + $0x118] sm:$0xff] %v1133
  %v1138 = vld [vmem:[%s5] sm:$0xff]
  %v1139 = vld [vmem:[#allocation2] sm:$0xff]
  %v1140 = vld [vmem:[#allocation2 + $0x8] sm:$0xff]
  %v1141 = vld [vmem:[#allocation2 + $0x10] sm:$0xff]
  %v1142 = vld [vmem:[#allocation2 + $0x18] sm:$0xff]
  %v1143 = vld [vmem:[#allocation2 + $0x20] sm:$0xff]
  %v1144 = vld [vmem:[#allocation2 + $0x28] sm:$0xff]
  %v1145 = vld [vmem:[#allocation2 + $0x30] sm:$0xff]
  %v1146 = vld [vmem:[#allocation2 + $0x38] sm:$0xff]
  %v1147 = vld [vmem:[#allocation2 + $0x40] sm:$0xff]
  %v1148 = vld [vmem:[#allocation2 + $0x48] sm:$0xff]
  %v1149 = vld [vmem:[#allocation2 + $0x50] sm:$0xff]
  %v1150 = vld [vmem:[#allocation2 + $0x58] sm:$0xff]
  %v1151 = vld [vmem:[#allocation2 + $0x60] sm:$0xff]
  %v1152 = vld [vmem:[#allocation2 + $0x68] sm:$0xff]
  %v1153 = vld [vmem:[#allocation2 + $0x70] sm:$0xff]
  %v1154 = vld [vmem:[#allocation2 + $0x78] sm:$0xff]
  %v1155 = vld [vmem:[#allocation2 + $0x80] sm:$0xff]
  %v1156 = vld [vmem:[#allocation2 + $0x88] sm:$0xff]
  %v1157 = vld [vmem:[#allocation2 + $0x90] sm:$0xff]
  %v1158 = vld [vmem:[#allocation2 + $0x98] sm:$0xff]
  %v1159 = vld [vmem:[#allocation2 + $0xa0] sm:$0xff]
  %v1160 = vld [vmem:[#allocation2 + $0xa8] sm:$0xff]
  %v1161 = vld [vmem:[#allocation2 + $0xb0] sm:$0xff]
  %v1162 = vld [vmem:[#allocation2 + $0xb8] sm:$0xff]
  %v1163 = vld [vmem:[#allocation2 + $0xc0] sm:$0xff]
  %v1164 = vld [vmem:[#allocation2 + $0xc8] sm:$0xff]
  %v1165 = vld [vmem:[#allocation2 + $0xd0] sm:$0xff]
  %v1166 = vld [vmem:[#allocation2 + $0xd8] sm:$0xff]
  %v1167 = vld [vmem:[#allocation2 + $0xe0] sm:$0xff]
  %v1168 = vld [vmem:[#allocation2 + $0xe8] sm:$0xff]
  %v1169 = vld [vmem:[#allocation2 + $0xf0] sm:$0xff]
  %v1170 = vld [vmem:[#allocation2 + $0xf8] sm:$0xff]
  %v1171 = vld [vmem:[#allocation2 + $0x100] sm:$0xff]
  %v1172 = vld [vmem:[#allocation2 + $0x108] sm:$0xff]
  %v1173 = vld [vmem:[#allocation2 + $0x110] sm:$0xff]
  %v1174 = vld [vmem:[#allocation2 + $0x118] sm:$0xff]
  %v1176 = vsel %vm466, %v1138, 0
  %1178 = vmatprep.subr.mxu0 %v1140
  %1179 = vmatpush1.msra.mxu0 %v1139
  %1180 = vmatprep.subr.mxu0 %v1144
  %1181 = vmatpush1.msra.mxu0 %v1143
  %1182 = vmatprep.subr.mxu0 %v1148
  %1183 = vmatpush1.msra.mxu0 %v1147
  %1184 = vmatprep.subr.mxu0 %v1152
  %1185 = vmatpush1.msra.mxu0 %v1151
  %1186 = vmatprep.subr.mxu0 %v1156
  %1187 = vmatpush1.msra.mxu0 %v1155
  %1188 = vmatprep.subr.mxu0 %v1160
  %1189 = vmatpush1.msra.mxu0 %v1159
  %1190 = vmatprep.subr.mxu0 %v1164
  %1191 = vmatpush1.msra.mxu0 %v1163
  %1192 = vmatprep.subr.mxu0 %v1168
  %1193 = vmatpush1.msra.mxu0 %v1167
  %1194 = vmatprep.subr.mxu0 %v1172
  %1195 = vmatpush1.msra.mxu0 %v1171
  %1196 = vmatprep.subr.mxu0 0.0
  %1197 = vmatpush1.msra.mxu0 0.0
  %1198 = vmatprep.subr.mxu0 0.0
  %1199 = vmatpush1.msra.mxu0 0.0
  %1200 = vmatprep.subr.mxu0 0.0
  %1201 = vmatpush1.msra.mxu0 0.0
  %1202 = vmatprep.subr.mxu0 0.0
  %1203 = vmatpush1.msra.mxu0 0.0
  %1204 = vmatprep.subr.mxu0 0.0
  %1205 = vmatpush1.msra.mxu0 0.0
  %1206 = vmatprep.subr.mxu0 0.0
  %1207 = vmatpush1.msra.mxu0 0.0
  %1208 = vmatprep.subr.mxu0 0.0
  %1209 = vmatpush1.msra.mxu0 0.0
  %1210 = vmatprep.subr.mxu0 0.0
  %1211 = vmatpush1.msra.mxu0 0.0
  %1212 = vmatprep.subr.mxu0 0.0
  %1213 = vmatpush1.msra.mxu0 0.0
  %1214 = vmatprep.subr.mxu0 0.0
  %1215 = vmatpush1.msra.mxu0 0.0
  %1216 = vmatprep.subr.mxu0 0.0
  %1217 = vmatpush1.msra.mxu0 0.0
  %1218 = vmatprep.subr.mxu0 0.0
  %1219 = vmatpush1.msra.mxu0 0.0
  %1220 = vmatprep.subr.mxu0 0.0
  %1221 = vmatpush1.msra.mxu0 0.0
  %1222 = vmatprep.subr.mxu0 0.0
  %1223 = vmatpush1.msra.mxu0 0.0
  %1224 = vmatprep.subr.mxu0 0.0
  %1225 = vmatpush1.msra.mxu0 0.0
  %1226 = vmatprep.subr.mxu0 0.0
  %1227 = vmatpush1.msra.mxu0 0.0
  %1228 = vmatprep.subr.mxu0 0.0
  %1229 = vmatpush1.msra.mxu0 0.0
  %1230 = vmatprep.subr.mxu0 0.0
  %1231 = vmatpush1.msra.mxu0 0.0
  %1232 = vmatprep.subr.mxu0 0.0
  %1233 = vmatpush1.msra.mxu0 0.0
  %1234 = vmatprep.subr.mxu0 0.0
  %1235 = vmatpush1.msra.mxu0 0.0
  %1236 = vmatprep.subr.mxu0 0.0
  %1237 = vmatpush1.msra.mxu0 0.0
  %1238 = vmatprep.subr.mxu0 0.0
  %1239 = vmatpush1.msra.mxu0 0.0
  %1240 = vmatprep.subr.mxu0 0.0
  %1241 = vmatpush1.msra.mxu0 0.0
  %1242 = vmatprep.mubr.f32.mxu0 0.0
  %1243 = vmatmul.mubr.f32.gmra.mrb[0].mxu0 %v1176
  %v1244 = vpop.f32.mrb[0].mxu0
  %v1245 = vadd.f32 0.0, %v1244
  %v1246 = vpop.f32.mrb[0].mxu0
  %v1247 = vadd.f32 0.0, %v1246
  %1248 = vdwg.mxu0
  %1249 = vmatprep.subr.mxu0 %v1142
  %1250 = vmatpush1.msra.mxu0 %v1141
  %1251 = vmatprep.subr.mxu0 %v1146
  %1252 = vmatpush1.msra.mxu0 %v1145
  %1253 = vmatprep.subr.mxu0 %v1150
  %1254 = vmatpush1.msra.mxu0 %v1149
  %1255 = vmatprep.subr.mxu0 %v1154
  %1256 = vmatpush1.msra.mxu0 %v1153
  %1257 = vmatprep.subr.mxu0 %v1158
  %1258 = vmatpush1.msra.mxu0 %v1157
  %1259 = vmatprep.subr.mxu0 %v1162
  %1260 = vmatpush1.msra.mxu0 %v1161
  %1261 = vmatprep.subr.mxu0 %v1166
  %1262 = vmatpush1.msra.mxu0 %v1165
  %1263 = vmatprep.subr.mxu0 %v1170
  %1264 = vmatpush1.msra.mxu0 %v1169
  %1265 = vmatprep.subr.mxu0 %v1174
  %1266 = vmatpush1.msra.mxu0 %v1173
  %1267 = vmatprep.subr.mxu0 0.0
  %1268 = vmatpush1.msra.mxu0 0.0
  %1269 = vmatprep.subr.mxu0 0.0
  %1270 = vmatpush1.msra.mxu0 0.0
  %1271 = vmatprep.subr.mxu0 0.0
  %1272 = vmatpush1.msra.mxu0 0.0
  %1273 = vmatprep.subr.mxu0 0.0
  %1274 = vmatpush1.msra.mxu0 0.0
  %1275 = vmatprep.subr.mxu0 0.0
  %1276 = vmatpush1.msra.mxu0 0.0
  %1277 = vmatprep.subr.mxu0 0.0
  %1278 = vmatpush1.msra.mxu0 0.0
  %1279 = vmatprep.subr.mxu0 0.0
  %1280 = vmatpush1.msra.mxu0 0.0
  %1281 = vmatprep.subr.mxu0 0.0
  %1282 = vmatpush1.msra.mxu0 0.0
  %1283 = vmatprep.subr.mxu0 0.0
  %1284 = vmatpush1.msra.mxu0 0.0
  %1285 = vmatprep.subr.mxu0 0.0
  %1286 = vmatpush1.msra.mxu0 0.0
  %1287 = vmatprep.subr.mxu0 0.0
  %1288 = vmatpush1.msra.mxu0 0.0
  %1289 = vmatprep.subr.mxu0 0.0
  %1290 = vmatpush1.msra.mxu0 0.0
  %1291 = vmatprep.subr.mxu0 0.0
  %1292 = vmatpush1.msra.mxu0 0.0
  %1293 = vmatprep.subr.mxu0 0.0
  %1294 = vmatpush1.msra.mxu0 0.0
  %1295 = vmatprep.subr.mxu0 0.0
  %1296 = vmatpush1.msra.mxu0 0.0
  %1297 = vmatprep.subr.mxu0 0.0
  %1298 = vmatpush1.msra.mxu0 0.0
  %1299 = vmatprep.subr.mxu0 0.0
  %1300 = vmatpush1.msra.mxu0 0.0
  %1301 = vmatprep.subr.mxu0 0.0
  %1302 = vmatpush1.msra.mxu0 0.0
  %1303 = vmatprep.subr.mxu0 0.0
  %1304 = vmatpush1.msra.mxu0 0.0
  %1305 = vmatprep.subr.mxu0 0.0
  %1306 = vmatpush1.msra.mxu0 0.0
  %1307 = vmatprep.subr.mxu0 0.0
  %1308 = vmatpush1.msra.mxu0 0.0
  %1309 = vmatprep.subr.mxu0 0.0
  %1310 = vmatpush1.msra.mxu0 0.0
  %1311 = vmatprep.subr.mxu0 0.0
  %1312 = vmatpush1.msra.mxu0 0.0
  %1313 = vmatprep.mubr.f32.mxu0 0.0
  %1314 = vmatmul.mubr.f32.gmra.mrb[0].mxu0 %v1176
  %v1315 = vpop.f32.mrb[0].mxu0
  %v1316 = vadd.f32 0.0, %v1315
  %v1317 = vpop.f32.mrb[0].mxu0
  %v1318 = vadd.f32 0.0, %v1317
  %1319 = vdwg.mxu0
  %v1320 = vmax.f32 %v1245, 0.0
  %v1321 = vmax.f32 %v1247, 0.0
  %v1322 = vmax.f32 %v1316, 0.0
  %v1323 = vmax.f32 %v1318, 0.0
  %1324 = vst [vmem:[%s6] sm:$0xff] %v1320
  %1325 = vst [vmem:[%s6 + $0x8] sm:$0xff] %v1321
  %1326 = vst [vmem:[%s6 + $0x10] sm:$0xff] %v1322
  %1327 = vst [vmem:[%s6 + $0x18] sm:$0xff] %v1323
  // Predicated region
  $region26: #{_lambda_.1} parent=0 // pred_check
    _
  $region27: #{_lambda_.1} parent=0 // pred_check_branch
    %1329 = sbr.rel (0) target = $region29
  $region28: #{_lambda_.1} parent=0 // pred_region
    _
  $region29: #{_lambda_.1} parent=0 // pred_fallthru
    _
  // Predicated region
  $region30: #{_lambda_.1} parent=0 // pred_check
    _
  $region31: #{_lambda_.1} parent=0 // pred_check_branch
    %1331 = sbr.rel (0) target = $region33
  $region32: #{_lambda_.1} parent=0 // pred_region
    _
  $region33: #{_lambda_.1} parent=0 // pred_fallthru
    _

</llo_original>
